<compile_context>
chip_gen: v5e
topology: v5e:2x2
jax: 0.10.0
libtpu: 0.0.40
codegen_flags: <defaults>
</compile_context>

<pallas_src>
import numpy as np
import jax
import jax.numpy as jnp
from jax.experimental import pallas as pl
from jax.experimental.pallas import tpu as pltpu  # noqa: F401  (TPU backend / mem spaces)

# ----------------------------- config -----------------------------
BATCH = 2
IN_CH = 3
IMG = 32
PATCH = 16
HIDDEN = 64
HEADS = 4
HEAD_DIM = HIDDEN // HEADS
MLP_DIM = 128
LAYERS = 2
NUM_CLASSES = 8
HEAD_PAD = 128                      # lane-dense padded head width (sliced outside)
OUT_ROWS = 8                        # sublane-padded logits rows (sliced outside)
N_PATCH = (IMG // PATCH) ** 2
SEQ = N_PATCH + 1
LN_EPS = 1e-6
ATTN_SCALE = 1.0 / float(HEAD_DIM) ** 0.5
NEG_BIG = -1e30                     # additive mask value (exp underflows to 0)

# class-token rows {b*SEQ} must all live inside the first OUT_ROWS rows of the slab
assert (BATCH - 1) * SEQ + 1 <= OUT_ROWS <= BATCH * SEQ
assert HIDDEN % HEADS == 0 and NUM_CLASSES <= HEAD_PAD

LAYER_KEYS = ("ln1_g", "ln1_b", "q_w", "q_b", "k_w", "k_b", "v_w", "v_b",
              "out_w", "out_b", "ln2_g", "ln2_b", "fc1_w", "fc1_b", "fc2_w", "fc2_b")
N_LAYER_REFS = len(LAYER_KEYS)


# ----------------------------- in-kernel helpers -----------------------------
def _layernorm(x, g, b):
    # x: (M, D) f32; g, b: (1, D)
    mu = jnp.mean(x, axis=-1, keepdims=True)
    var = jnp.mean(jnp.square(x - mu), axis=-1, keepdims=True)
    return (x - mu) * jax.lax.rsqrt(var + LN_EPS) * g + b


def _erf(x):
    # Abramowitz & Stegun 7.1.26 rational approximation, |err| < 1.5e-7 (~f32-exact).
    # Built only from exp / mul / add / select / abs so it always lowers in Mosaic.
    # TODO(synk): switch to lax.erf once erf_p lowering inside Pallas TPU is guaranteed.
    p = 0.3275911
    a1, a2, a3, a4, a5 = 0.254829592, -0.284496736, 1.421413741, -1.453152027, 1.061405429
    ax = jnp.abs(x)
    t = 1.0 / (1.0 + p * ax)
    poly = ((((a5 * t + a4) * t + a3) * t + a2) * t + a1) * t
    y = 1.0 - poly * jnp.exp(-(ax * ax))
    return jnp.where(x >= 0, y, -y)


def _gelu_exact(x):
    # torch nn.GELU() default (erf-based, non-approximate)
    return 0.5 * x * (1.0 + _erf(x * 0.7071067811865476))


# ----------------------------- fused kernel -----------------------------
def _vit_fused_kernel(*refs):
    # refs = (patches_pad, patch_w, embed_add, attn_bias,
    #         <16 per-layer params> * LAYERS,
    #         ln_g, ln_b, head_w, head_b,   # final LN + lane-padded head
    #         logits_out)                   # output (OUT_ROWS, HEAD_PAD)
    patches_ref, patch_w_ref, embed_add_ref, attn_bias_ref = refs[0:4]
    layer_refs = refs[4:4 + LAYERS * N_LAYER_REFS]
    ln_g_ref, ln_b_ref, head_w_ref, head_b_ref, logits_ref = refs[4 + LAYERS * N_LAYER_REFS:]

    # ---- patch embedding + token assembly as ONE matmul + ONE add (SSA slab) ----
    # patches_pad has zero rows at the class-token slots; embed_add already carries
    # (cls|patch_b) + positional embedding per row, so no per-row stores are needed.
    h = jnp.dot(patches_ref[...], patch_w_ref[...],
                preferred_element_type=jnp.float32) + embed_add_ref[...]   # (B*S, HID)

    # block-diagonal (per-image) additive attention bias: 0 within an image, -1e30 across
    attn_bias = attn_bias_ref[...]                                          # (B*S, B*S)

    # ---- encoder layers, fully fused & fully unrolled; activations stay SSA values ----
    for l in range(LAYERS):
        (ln1_g, ln1_b, q_w, q_b, k_w, k_b, v_w, v_b, out_w, out_b,
         ln2_g, ln2_b, fc1_w, fc1_b, fc2_w, fc2_b) = \
            layer_refs[l * N_LAYER_REFS:(l + 1) * N_LAYER_REFS]

        # ---------- attention block ----------
        y = _layernorm(h, ln1_g[...], ln1_b[...])                           # (B*S, HID)
        # three lane-aligned projections (no 192-wide tile, no cross-vreg slicing);
        # ATTN_SCALE is already folded into q_w / q_b.
        q = jnp.dot(y, q_w[...], preferred_element_type=jnp.float32) + q_b[...]
        k = jnp.dot(y, k_w[...], preferred_element_type=jnp.float32) + k_b[...]
        v = jnp.dot(y, v_w[...], preferred_element_type=jnp.float32) + v_b[...]
        ow = out_w[...]                                                     # (HID, HID)

        proj = None
        for hh in range(HEADS):          # static unroll; both images handled at once
            c0 = hh * HEAD_DIM
            qh = q[:, c0:c0 + HEAD_DIM]                                     # (B*S, Dh)
            kh = k[:, c0:c0 + HEAD_DIM]
            vh = v[:, c0:c0 + HEAD_DIM]

            s = jnp.dot(qh, kh.T, preferred_element_type=jnp.float32) + attn_bias
            s = s - jnp.max(s, axis=-1, keepdims=True)
            p = jnp.exp(s)                                                  # masked -> 0
            p = p * pl.reciprocal(jnp.sum(p, axis=-1, keepdims=True), approx=True)
            oh = jnp.dot(p, vh, preferred_element_type=jnp.float32)         # (B*S, Dh)

            # head merge folded into the out-projection; single f32 accumulator chain
            # (v7x MRB in-place accumulate; v5e/v6e drain through the MRF).
            contrib = jnp.dot(oh, ow[c0:c0 + HEAD_DIM, :],
                              preferred_element_type=jnp.float32)           # (B*S, HID)
            proj = contrib if proj is None else proj + contrib

        # bias + residual hoisted out of all loops: one broadcast, one full-slab add
        h = h + proj + out_b[...]

        # ---------- MLP block (bias + exact GELU + residual fused) ----------
        z = _layernorm(h, ln2_g[...], ln2_b[...])                           # (B*S, HID)
        z = jnp.dot(z, fc1_w[...], preferred_element_type=jnp.float32) + fc1_b[...]
        z = _gelu_exact(z)                                                  # (B*S, MLP)
        z = jnp.dot(z, fc2_w[...], preferred_element_type=jnp.float32) + fc2_b[...]
        h = h + z

    # ---- final LN + classification head on the first OUT_ROWS rows only ----
    # Rows 0 and SEQ (= the two class tokens) are both inside h[0:OUT_ROWS]; running the
    # tiny head on 8 contiguous rows keeps the load/store unmasked and lane-dense.
    hc = _layernorm(h[0:OUT_ROWS, :], ln_g_ref[...], ln_b_ref[...])         # (8, HID)
    logits_ref[...] = (jnp.dot(hc, head_w_ref[...],
                               preferred_element_type=jnp.float32)
                       + head_b_ref[...])                                   # (8, 128) full store


# ----------------------------- parameters -----------------------------
def init_params(key):
    keys = iter(jax.random.split(key, 8 + LAYERS * 8))

    def nrm(shape, std=0.02):
        return std * jax.random.normal(next(keys), shape, jnp.float32)

    patch_w = nrm((IN_CH * PATCH * PATCH, HIDDEN))      # conv weight, (c,ph,pw) x hidden
    patch_b = jnp.zeros((1, HIDDEN), jnp.float32)
    cls = jnp.zeros((1, HIDDEN), jnp.float32)           # class token init = zeros
    pos = nrm((SEQ, HIDDEN))                            # positional embedding ~ N(0,0.02)

    # fused additive slab (review item 5): row b*SEQ -> cls + pos[0];
    # row b*SEQ+1+i -> patch_b + pos[1+i]  (the zero im2col rows contribute 0 via matmul)
    is_cls = jnp.asarray((np.arange(BATCH * SEQ) % SEQ == 0)[:, None])
    embed_add = jnp.tile(pos, (BATCH, 1)) + jnp.where(is_cls, cls, patch_b)

    # block-diagonal additive attention bias over images (review item 2, mask form)
    img_id = np.arange(BATCH * SEQ) // SEQ
    attn_bias = jnp.asarray(
        np.where(img_id[:, None] == img_id[None, :], 0.0, NEG_BIG), jnp.float32)

    # head weights zero-padded to HEAD_PAD lanes; padded cols stay zero so nothing leaks.
    head_w = jnp.zeros((HIDDEN, HEAD_PAD), jnp.float32)
    head_w = head_w.at[:, :NUM_CLASSES].set(nrm((HIDDEN, NUM_CLASSES)))

    params = {
        "patch_w": patch_w,
        "embed_add": embed_add,
        "attn_bias": attn_bias,
        "ln_g": jnp.ones((1, HIDDEN), jnp.float32),
        "ln_b": jnp.zeros((1, HIDDEN), jnp.float32),
        "head_w": head_w,
        "head_b": jnp.zeros((1, HEAD_PAD), jnp.float32),
        "layers": [],
    }
    for _ in range(LAYERS):
        # in_proj split into lane-aligned Wq/Wk/Wv; ATTN_SCALE folded into Wq AND q bias
        params["layers"].append({
            "ln1_g": jnp.ones((1, HIDDEN), jnp.float32),
            "ln1_b": jnp.zeros((1, HIDDEN), jnp.float32),
            "q_w": nrm((HIDDEN, HIDDEN)) * ATTN_SCALE,
            "q_b": jnp.zeros((1, HIDDEN), jnp.float32) * ATTN_SCALE,
            "k_w": nrm((HIDDEN, HIDDEN)),
            "k_b": jnp.zeros((1, HIDDEN), jnp.float32),
            "v_w": nrm((HIDDEN, HIDDEN)),
            "v_b": jnp.zeros((1, HIDDEN), jnp.float32),
            "out_w": nrm((HIDDEN, HIDDEN)),
            "out_b": jnp.zeros((1, HIDDEN), jnp.float32),
            "ln2_g": jnp.ones((1, HIDDEN), jnp.float32),
            "ln2_b": jnp.zeros((1, HIDDEN), jnp.float32),
            "fc1_w": nrm((HIDDEN, MLP_DIM)),
            "fc1_b": jnp.zeros((1, MLP_DIM), jnp.float32),
            "fc2_w": nrm((MLP_DIM, HIDDEN)),
            "fc2_b": jnp.zeros((1, HIDDEN), jnp.float32),
        })
    return params


# ----------------------------- wrapper -----------------------------
def _extract_patches_with_cls_slots(x):
    # stride==kernel patch conv lowered to im2col ((c, ph, pw) ordering) with a zero row
    # inserted at each image's class-token slot so the kernel's token assembly is a
    # single matmul + add.  One tiny XLA fusion (~30 KB).
    # TODO(synk): fold this im2col into the kernel / an input index_map to drop the
    # separate HBM round trip entirely.
    n, c, h, w = x.shape
    nh, nw = h // PATCH, w // PATCH
    p = (x.reshape(n, c, nh, PATCH, nw, PATCH)
          .transpose(0, 2, 4, 1, 3, 5)
          .reshape(n, nh * nw, c * PATCH * PATCH))
    zeros = jnp.zeros((n, 1, c * PATCH * PATCH), x.dtype)
    return jnp.concatenate([zeros, p], axis=1).reshape(n * SEQ, c * PATCH * PATCH)


def _cost_estimate(n_input_floats):
    bs = BATCH * SEQ
    flops = 2 * bs * IN_CH * PATCH * PATCH * HIDDEN
    flops += LAYERS * (
        3 * 2 * bs * HIDDEN * HIDDEN
        + HEADS * (2 * bs * HEAD_DIM * bs + 2 * bs * bs * HEAD_DIM
                   + 2 * bs * HEAD_DIM * HIDDEN)
        + 2 * bs * HIDDEN * MLP_DIM + 2 * bs * MLP_DIM * HIDDEN)
    flops += 2 * OUT_ROWS * HIDDEN * HEAD_PAD
    trans = LAYERS * (HEADS * bs * bs + bs * MLP_DIM + HEADS * bs) + (2 * LAYERS + 1) * bs
    bytes_accessed = 4 * (n_input_floats + OUT_ROWS * HEAD_PAD)
    return pl.CostEstimate(flops=flops, transcendentals=trans,
                           bytes_accessed=bytes_accessed)


def vit_forward(params, x):
    assert x.shape == (BATCH, IN_CH, IMG, IMG)   # batch size is baked into the kernel
    patches = _extract_patches_with_cls_slots(x)

    flat = [patches, params["patch_w"], params["embed_add"], params["attn_bias"]]
    for lyr in params["layers"]:
        flat.extend(lyr[k] for k in LAYER_KEYS)
    flat.extend([params["ln_g"], params["ln_b"], params["head_w"], params["head_b"]])

    logits_pad = pl.pallas_call(
        _vit_fused_kernel,
        out_shape=jax.ShapeDtypeStruct((OUT_ROWS, HEAD_PAD), jnp.float32),
        cost_estimate=_cost_estimate(sum(int(a.size) for a in flat)),
    )(*flat)
    # class-token rows are 0 and SEQ (both < OUT_ROWS); slice off sublane/lane padding.
    return logits_pad[::SEQ, :NUM_CLASSES]


# ----------------------------- main -----------------------------
if __name__ == "__main__":
    key = jax.random.PRNGKey(0)
    pkey, xkey = jax.random.split(key)
    params = init_params(pkey)
    x = jax.random.normal(xkey, (BATCH, IN_CH, IMG, IMG), jnp.float32)

    logits = jax.jit(vit_forward)(params, x)
    jax.block_until_ready(logits)
    assert logits.shape == (BATCH, NUM_CLASSES), logits.shape
    assert bool(jnp.all(jnp.isfinite(logits)))
    print("KERNEL_OK")
</pallas_src>

<mosaic_0001>
module attributes {stable_mosaic.version = 11 : i64} {
  func.func @_vit_fused_kernel(%arg0: memref<10x768xf32, #tpu.memory_space<vmem>>, %arg1: memref<768x64xf32, #tpu.memory_space<vmem>>, %arg2: memref<10x64xf32, #tpu.memory_space<vmem>>, %arg3: memref<10x10xf32, #tpu.memory_space<vmem>>, %arg4: memref<1x64xf32, #tpu.memory_space<vmem>>, %arg5: memref<1x64xf32, #tpu.memory_space<vmem>>, %arg6: memref<64x64xf32, #tpu.memory_space<vmem>>, %arg7: memref<1x64xf32, #tpu.memory_space<vmem>>, %arg8: memref<64x64xf32, #tpu.memory_space<vmem>>, %arg9: memref<1x64xf32, #tpu.memory_space<vmem>>, %arg10: memref<64x64xf32, #tpu.memory_space<vmem>>, %arg11: memref<1x64xf32, #tpu.memory_space<vmem>>, %arg12: memref<64x64xf32, #tpu.memory_space<vmem>>, %arg13: memref<1x64xf32, #tpu.memory_space<vmem>>, %arg14: memref<1x64xf32, #tpu.memory_space<vmem>>, %arg15: memref<1x64xf32, #tpu.memory_space<vmem>>, %arg16: memref<64x128xf32, #tpu.memory_space<vmem>>, %arg17: memref<1x128xf32, #tpu.memory_space<vmem>>, %arg18: memref<128x64xf32, #tpu.memory_space<vmem>>, %arg19: memref<1x64xf32, #tpu.memory_space<vmem>>, %arg20: memref<1x64xf32, #tpu.memory_space<vmem>>, %arg21: memref<1x64xf32, #tpu.memory_space<vmem>>, %arg22: memref<64x64xf32, #tpu.memory_space<vmem>>, %arg23: memref<1x64xf32, #tpu.memory_space<vmem>>, %arg24: memref<64x64xf32, #tpu.memory_space<vmem>>, %arg25: memref<1x64xf32, #tpu.memory_space<vmem>>, %arg26: memref<64x64xf32, #tpu.memory_space<vmem>>, %arg27: memref<1x64xf32, #tpu.memory_space<vmem>>, %arg28: memref<64x64xf32, #tpu.memory_space<vmem>>, %arg29: memref<1x64xf32, #tpu.memory_space<vmem>>, %arg30: memref<1x64xf32, #tpu.memory_space<vmem>>, %arg31: memref<1x64xf32, #tpu.memory_space<vmem>>, %arg32: memref<64x128xf32, #tpu.memory_space<vmem>>, %arg33: memref<1x128xf32, #tpu.memory_space<vmem>>, %arg34: memref<128x64xf32, #tpu.memory_space<vmem>>, %arg35: memref<1x64xf32, #tpu.memory_space<vmem>>, %arg36: memref<1x64xf32, #tpu.memory_space<vmem>>, %arg37: memref<1x64xf32, #tpu.memory_space<vmem>>, %arg38: memref<64x128xf32, #tpu.memory_space<vmem>>, %arg39: memref<1x128xf32, #tpu.memory_space<vmem>>, %arg40: memref<8x128xf32, #tpu.memory_space<vmem>>) attributes {dimension_semantics = [], scalar_prefetch = 0 : i64, scratch_operands = 0 : i64, tpu.core_type = #tpu.core_type<tc>} {
    %c0 = arith.constant 0 : index
    %c0_0 = arith.constant 0 : index
    %0 = vector.load %arg0[%c0, %c0_0] : memref<10x768xf32, #tpu.memory_space<vmem>>, vector<10x768xf32>
    %c0_1 = arith.constant 0 : index
    %c0_2 = arith.constant 0 : index
    %1 = vector.load %arg1[%c0_1, %c0_2] : memref<768x64xf32, #tpu.memory_space<vmem>>, vector<768x64xf32>
    %cst = arith.constant dense<0.000000e+00> : vector<10x64xf32>
    %2 = tpu.matmul %0, %1, %cst {dimension_numbers = #tpu.dot_dimension_numbers<[1], [0], [0], [1], [0, 0, 1, 1], [], []>} : vector<10x768xf32>, vector<768x64xf32>, vector<10x64xf32> -> vector<10x64xf32>
    %c0_3 = arith.constant 0 : index
    %c0_4 = arith.constant 0 : index
    %3 = vector.load %arg2[%c0_3, %c0_4] : memref<10x64xf32, #tpu.memory_space<vmem>>, vector<10x64xf32>
    %4 = arith.addf %2, %3 : vector<10x64xf32>
    %c0_5 = arith.constant 0 : index
    %c0_6 = arith.constant 0 : index
    %5 = vector.load %arg3[%c0_5, %c0_6] : memref<10x10xf32, #tpu.memory_space<vmem>>, vector<10x10xf32>
    %c0_7 = arith.constant 0 : index
    %c0_8 = arith.constant 0 : index
    %6 = vector.load %arg4[%c0_7, %c0_8] : memref<1x64xf32, #tpu.memory_space<vmem>>, vector<1x64xf32>
    %c0_9 = arith.constant 0 : index
    %c0_10 = arith.constant 0 : index
    %7 = vector.load %arg5[%c0_9, %c0_10] : memref<1x64xf32, #tpu.memory_space<vmem>>, vector<1x64xf32>
    %cst_11 = arith.constant dense<0.000000e+00> : vector<10xf32>
    %8 = vector.multi_reduction <add>, %4, %cst_11 [1] : vector<10x64xf32> to vector<10xf32>
    %9 = vector.shape_cast %8 : vector<10xf32> to vector<10x1xf32>
    %cst_12 = arith.constant 6.400000e+01 : f32
    %10 = vector.broadcast %cst_12 : f32 to vector<10x1xf32>
    %11 = arith.divf %9, %10 : vector<10x1xf32>
    %12 = vector.broadcast %11 : vector<10x1xf32> to vector<10x64xf32>
    %13 = arith.subf %4, %12 : vector<10x64xf32>
    %14 = arith.mulf %13, %13 : vector<10x64xf32>
    %cst_13 = arith.constant dense<0.000000e+00> : vector<10xf32>
    %15 = vector.multi_reduction <add>, %14, %cst_13 [1] : vector<10x64xf32> to vector<10xf32>
    %16 = vector.shape_cast %15 : vector<10xf32> to vector<10x1xf32>
    %cst_14 = arith.constant 6.400000e+01 : f32
    %17 = vector.broadcast %cst_14 : f32 to vector<10x1xf32>
    %18 = arith.divf %16, %17 : vector<10x1xf32>
    %19 = vector.broadcast %11 : vector<10x1xf32> to vector<10x64xf32>
    %20 = arith.subf %4, %19 : vector<10x64xf32>
    %cst_15 = arith.constant 9.99999997E-7 : f32
    %21 = vector.broadcast %cst_15 : f32 to vector<10x1xf32>
    %22 = arith.addf %18, %21 : vector<10x1xf32>
    %23 = math.rsqrt %22 : vector<10x1xf32>
    %24 = vector.broadcast %23 : vector<10x1xf32> to vector<10x64xf32>
    %25 = arith.mulf %20, %24 : vector<10x64xf32>
    %26 = vector.broadcast %6 : vector<1x64xf32> to vector<10x64xf32>
    %27 = arith.mulf %25, %26 : vector<10x64xf32>
    %28 = vector.broadcast %7 : vector<1x64xf32> to vector<10x64xf32>
    %29 = arith.addf %27, %28 : vector<10x64xf32>
    %c0_16 = arith.constant 0 : index
    %c0_17 = arith.constant 0 : index
    %30 = vector.load %arg6[%c0_16, %c0_17] : memref<64x64xf32, #tpu.memory_space<vmem>>, vector<64x64xf32>
    %cst_18 = arith.constant dense<0.000000e+00> : vector<10x64xf32>
    %31 = tpu.matmul %29, %30, %cst_18 {dimension_numbers = #tpu.dot_dimension_numbers<[1], [0], [0], [1], [0, 0, 1, 1], [], []>} : vector<10x64xf32>, vector<64x64xf32>, vector<10x64xf32> -> vector<10x64xf32>
    %c0_19 = arith.constant 0 : index
    %c0_20 = arith.constant 0 : index
    %32 = vector.load %arg7[%c0_19, %c0_20] : memref<1x64xf32, #tpu.memory_space<vmem>>, vector<1x64xf32>
    %33 = vector.broadcast %32 : vector<1x64xf32> to vector<10x64xf32>
    %34 = arith.addf %31, %33 : vector<10x64xf32>
    %c0_21 = arith.constant 0 : index
    %c0_22 = arith.constant 0 : index
    %35 = vector.load %arg8[%c0_21, %c0_22] : memref<64x64xf32, #tpu.memory_space<vmem>>, vector<64x64xf32>
    %cst_23 = arith.constant dense<0.000000e+00> : vector<10x64xf32>
    %36 = tpu.matmul %29, %35, %cst_23 {dimension_numbers = #tpu.dot_dimension_numbers<[1], [0], [0], [1], [0, 0, 1, 1], [], []>} : vector<10x64xf32>, vector<64x64xf32>, vector<10x64xf32> -> vector<10x64xf32>
    %c0_24 = arith.constant 0 : index
    %c0_25 = arith.constant 0 : index
    %37 = vector.load %arg9[%c0_24, %c0_25] : memref<1x64xf32, #tpu.memory_space<vmem>>, vector<1x64xf32>
    %38 = vector.broadcast %37 : vector<1x64xf32> to vector<10x64xf32>
    %39 = arith.addf %36, %38 : vector<10x64xf32>
    %c0_26 = arith.constant 0 : index
    %c0_27 = arith.constant 0 : index
    %40 = vector.load %arg10[%c0_26, %c0_27] : memref<64x64xf32, #tpu.memory_space<vmem>>, vector<64x64xf32>
    %cst_28 = arith.constant dense<0.000000e+00> : vector<10x64xf32>
    %41 = tpu.matmul %29, %40, %cst_28 {dimension_numbers = #tpu.dot_dimension_numbers<[1], [0], [0], [1], [0, 0, 1, 1], [], []>} : vector<10x64xf32>, vector<64x64xf32>, vector<10x64xf32> -> vector<10x64xf32>
    %c0_29 = arith.constant 0 : index
    %c0_30 = arith.constant 0 : index
    %42 = vector.load %arg11[%c0_29, %c0_30] : memref<1x64xf32, #tpu.memory_space<vmem>>, vector<1x64xf32>
    %43 = vector.broadcast %42 : vector<1x64xf32> to vector<10x64xf32>
    %44 = arith.addf %41, %43 : vector<10x64xf32>
    %c0_31 = arith.constant 0 : index
    %c0_32 = arith.constant 0 : index
    %45 = vector.load %arg12[%c0_31, %c0_32] : memref<64x64xf32, #tpu.memory_space<vmem>>, vector<64x64xf32>
    %46 = vector.extract_strided_slice %34 {offsets = [0, 0], sizes = [10, 16], strides = [1, 1]} : vector<10x64xf32> to vector<10x16xf32>
    %47 = vector.extract_strided_slice %39 {offsets = [0, 0], sizes = [10, 16], strides = [1, 1]} : vector<10x64xf32> to vector<10x16xf32>
    %48 = vector.extract_strided_slice %44 {offsets = [0, 0], sizes = [10, 16], strides = [1, 1]} : vector<10x64xf32> to vector<10x16xf32>
    %49 = tpu.transpose %47, [1, 0] : vector<10x16xf32> -> vector<16x10xf32>
    %cst_33 = arith.constant dense<0.000000e+00> : vector<10x10xf32>
    %50 = tpu.matmul %46, %49, %cst_33 {dimension_numbers = #tpu.dot_dimension_numbers<[1], [0], [0], [1], [0, 0, 1, 1], [], []>} : vector<10x16xf32>, vector<16x10xf32>, vector<10x10xf32> -> vector<10x10xf32>
    %51 = arith.addf %50, %5 : vector<10x10xf32>
    %cst_34 = arith.constant dense<0xFF800000> : vector<10xf32>
    %52 = vector.multi_reduction <maximumf>, %51, %cst_34 [1] : vector<10x10xf32> to vector<10xf32>
    %53 = vector.shape_cast %52 : vector<10xf32> to vector<10x1xf32>
    %54 = vector.broadcast %53 : vector<10x1xf32> to vector<10x10xf32>
    %55 = arith.subf %51, %54 : vector<10x10xf32>
    %56 = math.exp %55 : vector<10x10xf32>
    %cst_35 = arith.constant dense<0.000000e+00> : vector<10xf32>
    %57 = vector.multi_reduction <add>, %56, %cst_35 [1] : vector<10x10xf32> to vector<10xf32>
    %58 = vector.shape_cast %57 : vector<10xf32> to vector<10x1xf32>
    %59 = tpu.reciprocal %58 {approx = true} : vector<10x1xf32> -> vector<10x1xf32>
    %60 = vector.broadcast %59 : vector<10x1xf32> to vector<10x10xf32>
    %61 = arith.mulf %56, %60 : vector<10x10xf32>
    %cst_36 = arith.constant dense<0.000000e+00> : vector<10x16xf32>
    %62 = tpu.matmul %61, %48, %cst_36 {dimension_numbers = #tpu.dot_dimension_numbers<[1], [0], [0], [1], [0, 0, 1, 1], [], []>} : vector<10x10xf32>, vector<10x16xf32>, vector<10x16xf32> -> vector<10x16xf32>
    %63 = vector.extract_strided_slice %45 {offsets = [0, 0], sizes = [16, 64], strides = [1, 1]} : vector<64x64xf32> to vector<16x64xf32>
    %cst_37 = arith.constant dense<0.000000e+00> : vector<10x64xf32>
    %64 = tpu.matmul %62, %63, %cst_37 {dimension_numbers = #tpu.dot_dimension_numbers<[1], [0], [0], [1], [0, 0, 1, 1], [], []>} : vector<10x16xf32>, vector<16x64xf32>, vector<10x64xf32> -> vector<10x64xf32>
    %65 = vector.extract_strided_slice %34 {offsets = [0, 16], sizes = [10, 16], strides = [1, 1]} : vector<10x64xf32> to vector<10x16xf32>
    %66 = vector.extract_strided_slice %39 {offsets = [0, 16], sizes = [10, 16], strides = [1, 1]} : vector<10x64xf32> to vector<10x16xf32>
    %67 = vector.extract_strided_slice %44 {offsets = [0, 16], sizes = [10, 16], strides = [1, 1]} : vector<10x64xf32> to vector<10x16xf32>
    %68 = tpu.transpose %66, [1, 0] : vector<10x16xf32> -> vector<16x10xf32>
    %cst_38 = arith.constant dense<0.000000e+00> : vector<10x10xf32>
    %69 = tpu.matmul %65, %68, %cst_38 {dimension_numbers = #tpu.dot_dimension_numbers<[1], [0], [0], [1], [0, 0, 1, 1], [], []>} : vector<10x16xf32>, vector<16x10xf32>, vector<10x10xf32> -> vector<10x10xf32>
    %70 = arith.addf %69, %5 : vector<10x10xf32>
    %cst_39 = arith.constant dense<0xFF800000> : vector<10xf32>
    %71 = vector.multi_reduction <maximumf>, %70, %cst_39 [1] : vector<10x10xf32> to vector<10xf32>
    %72 = vector.shape_cast %71 : vector<10xf32> to vector<10x1xf32>
    %73 = vector.broadcast %72 : vector<10x1xf32> to vector<10x10xf32>
    %74 = arith.subf %70, %73 : vector<10x10xf32>
    %75 = math.exp %74 : vector<10x10xf32>
    %cst_40 = arith.constant dense<0.000000e+00> : vector<10xf32>
    %76 = vector.multi_reduction <add>, %75, %cst_40 [1] : vector<10x10xf32> to vector<10xf32>
    %77 = vector.shape_cast %76 : vector<10xf32> to vector<10x1xf32>
    %78 = tpu.reciprocal %77 {approx = true} : vector<10x1xf32> -> vector<10x1xf32>
    %79 = vector.broadcast %78 : vector<10x1xf32> to vector<10x10xf32>
    %80 = arith.mulf %75, %79 : vector<10x10xf32>
    %cst_41 = arith.constant dense<0.000000e+00> : vector<10x16xf32>
    %81 = tpu.matmul %80, %67, %cst_41 {dimension_numbers = #tpu.dot_dimension_numbers<[1], [0], [0], [1], [0, 0, 1, 1], [], []>} : vector<10x10xf32>, vector<10x16xf32>, vector<10x16xf32> -> vector<10x16xf32>
    %82 = vector.extract_strided_slice %45 {offsets = [16, 0], sizes = [16, 64], strides = [1, 1]} : vector<64x64xf32> to vector<16x64xf32>
    %cst_42 = arith.constant dense<0.000000e+00> : vector<10x64xf32>
    %83 = tpu.matmul %81, %82, %cst_42 {dimension_numbers = #tpu.dot_dimension_numbers<[1], [0], [0], [1], [0, 0, 1, 1], [], []>} : vector<10x16xf32>, vector<16x64xf32>, vector<10x64xf32> -> vector<10x64xf32>
    %84 = arith.addf %64, %83 : vector<10x64xf32>
    %85 = vector.extract_strided_slice %34 {offsets = [0, 32], sizes = [10, 16], strides = [1, 1]} : vector<10x64xf32> to vector<10x16xf32>
    %86 = vector.extract_strided_slice %39 {offsets = [0, 32], sizes = [10, 16], strides = [1, 1]} : vector<10x64xf32> to vector<10x16xf32>
    %87 = vector.extract_strided_slice %44 {offsets = [0, 32], sizes = [10, 16], strides = [1, 1]} : vector<10x64xf32> to vector<10x16xf32>
    %88 = tpu.transpose %86, [1, 0] : vector<10x16xf32> -> vector<16x10xf32>
    %cst_43 = arith.constant dense<0.000000e+00> : vector<10x10xf32>
    %89 = tpu.matmul %85, %88, %cst_43 {dimension_numbers = #tpu.dot_dimension_numbers<[1], [0], [0], [1], [0, 0, 1, 1], [], []>} : vector<10x16xf32>, vector<16x10xf32>, vector<10x10xf32> -> vector<10x10xf32>
    %90 = arith.addf %89, %5 : vector<10x10xf32>
    %cst_44 = arith.constant dense<0xFF800000> : vector<10xf32>
    %91 = vector.multi_reduction <maximumf>, %90, %cst_44 [1] : vector<10x10xf32> to vector<10xf32>
    %92 = vector.shape_cast %91 : vector<10xf32> to vector<10x1xf32>
    %93 = vector.broadcast %92 : vector<10x1xf32> to vector<10x10xf32>
    %94 = arith.subf %90, %93 : vector<10x10xf32>
    %95 = math.exp %94 : vector<10x10xf32>
    %cst_45 = arith.constant dense<0.000000e+00> : vector<10xf32>
    %96 = vector.multi_reduction <add>, %95, %cst_45 [1] : vector<10x10xf32> to vector<10xf32>
    %97 = vector.shape_cast %96 : vector<10xf32> to vector<10x1xf32>
    %98 = tpu.reciprocal %97 {approx = true} : vector<10x1xf32> -> vector<10x1xf32>
    %99 = vector.broadcast %98 : vector<10x1xf32> to vector<10x10xf32>
    %100 = arith.mulf %95, %99 : vector<10x10xf32>
    %cst_46 = arith.constant dense<0.000000e+00> : vector<10x16xf32>
    %101 = tpu.matmul %100, %87, %cst_46 {dimension_numbers = #tpu.dot_dimension_numbers<[1], [0], [0], [1], [0, 0, 1, 1], [], []>} : vector<10x10xf32>, vector<10x16xf32>, vector<10x16xf32> -> vector<10x16xf32>
    %102 = vector.extract_strided_slice %45 {offsets = [32, 0], sizes = [16, 64], strides = [1, 1]} : vector<64x64xf32> to vector<16x64xf32>
    %cst_47 = arith.constant dense<0.000000e+00> : vector<10x64xf32>
    %103 = tpu.matmul %101, %102, %cst_47 {dimension_numbers = #tpu.dot_dimension_numbers<[1], [0], [0], [1], [0, 0, 1, 1], [], []>} : vector<10x16xf32>, vector<16x64xf32>, vector<10x64xf32> -> vector<10x64xf32>
    %104 = arith.addf %84, %103 : vector<10x64xf32>
    %105 = vector.extract_strided_slice %34 {offsets = [0, 48], sizes = [10, 16], strides = [1, 1]} : vector<10x64xf32> to vector<10x16xf32>
    %106 = vector.extract_strided_slice %39 {offsets = [0, 48], sizes = [10, 16], strides = [1, 1]} : vector<10x64xf32> to vector<10x16xf32>
    %107 = vector.extract_strided_slice %44 {offsets = [0, 48], sizes = [10, 16], strides = [1, 1]} : vector<10x64xf32> to vector<10x16xf32>
    %108 = tpu.transpose %106, [1, 0] : vector<10x16xf32> -> vector<16x10xf32>
    %cst_48 = arith.constant dense<0.000000e+00> : vector<10x10xf32>
    %109 = tpu.matmul %105, %108, %cst_48 {dimension_numbers = #tpu.dot_dimension_numbers<[1], [0], [0], [1], [0, 0, 1, 1], [], []>} : vector<10x16xf32>, vector<16x10xf32>, vector<10x10xf32> -> vector<10x10xf32>
    %110 = arith.addf %109, %5 : vector<10x10xf32>
    %cst_49 = arith.constant dense<0xFF800000> : vector<10xf32>
    %111 = vector.multi_reduction <maximumf>, %110, %cst_49 [1] : vector<10x10xf32> to vector<10xf32>
    %112 = vector.shape_cast %111 : vector<10xf32> to vector<10x1xf32>
    %113 = vector.broadcast %112 : vector<10x1xf32> to vector<10x10xf32>
    %114 = arith.subf %110, %113 : vector<10x10xf32>
    %115 = math.exp %114 : vector<10x10xf32>
    %cst_50 = arith.constant dense<0.000000e+00> : vector<10xf32>
    %116 = vector.multi_reduction <add>, %115, %cst_50 [1] : vector<10x10xf32> to vector<10xf32>
    %117 = vector.shape_cast %116 : vector<10xf32> to vector<10x1xf32>
    %118 = tpu.reciprocal %117 {approx = true} : vector<10x1xf32> -> vector<10x1xf32>
    %119 = vector.broadcast %118 : vector<10x1xf32> to vector<10x10xf32>
    %120 = arith.mulf %115, %119 : vector<10x10xf32>
    %cst_51 = arith.constant dense<0.000000e+00> : vector<10x16xf32>
    %121 = tpu.matmul %120, %107, %cst_51 {dimension_numbers = #tpu.dot_dimension_numbers<[1], [0], [0], [1], [0, 0, 1, 1], [], []>} : vector<10x10xf32>, vector<10x16xf32>, vector<10x16xf32> -> vector<10x16xf32>
    %122 = vector.extract_strided_slice %45 {offsets = [48, 0], sizes = [16, 64], strides = [1, 1]} : vector<64x64xf32> to vector<16x64xf32>
    %cst_52 = arith.constant dense<0.000000e+00> : vector<10x64xf32>
    %123 = tpu.matmul %121, %122, %cst_52 {dimension_numbers = #tpu.dot_dimension_numbers<[1], [0], [0], [1], [0, 0, 1, 1], [], []>} : vector<10x16xf32>, vector<16x64xf32>, vector<10x64xf32> -> vector<10x64xf32>
    %124 = arith.addf %104, %123 : vector<10x64xf32>
    %125 = arith.addf %4, %124 : vector<10x64xf32>
    %c0_53 = arith.constant 0 : index
    %c0_54 = arith.constant 0 : index
    %126 = vector.load %arg13[%c0_53, %c0_54] : memref<1x64xf32, #tpu.memory_space<vmem>>, vector<1x64xf32>
    %127 = vector.broadcast %126 : vector<1x64xf32> to vector<10x64xf32>
    %128 = arith.addf %125, %127 : vector<10x64xf32>
    %c0_55 = arith.constant 0 : index
    %c0_56 = arith.constant 0 : index
    %129 = vector.load %arg14[%c0_55, %c0_56] : memref<1x64xf32, #tpu.memory_space<vmem>>, vector<1x64xf32>
    %c0_57 = arith.constant 0 : index
    %c0_58 = arith.constant 0 : index
    %130 = vector.load %arg15[%c0_57, %c0_58] : memref<1x64xf32, #tpu.memory_space<vmem>>, vector<1x64xf32>
    %cst_59 = arith.constant dense<0.000000e+00> : vector<10xf32>
    %131 = vector.multi_reduction <add>, %128, %cst_59 [1] : vector<10x64xf32> to vector<10xf32>
    %132 = vector.shape_cast %131 : vector<10xf32> to vector<10x1xf32>
    %cst_60 = arith.constant 6.400000e+01 : f32
    %133 = vector.broadcast %cst_60 : f32 to vector<10x1xf32>
    %134 = arith.divf %132, %133 : vector<10x1xf32>
    %135 = vector.broadcast %134 : vector<10x1xf32> to vector<10x64xf32>
    %136 = arith.subf %128, %135 : vector<10x64xf32>
    %137 = arith.mulf %136, %136 : vector<10x64xf32>
    %cst_61 = arith.constant dense<0.000000e+00> : vector<10xf32>
    %138 = vector.multi_reduction <add>, %137, %cst_61 [1] : vector<10x64xf32> to vector<10xf32>
    %139 = vector.shape_cast %138 : vector<10xf32> to vector<10x1xf32>
    %cst_62 = arith.constant 6.400000e+01 : f32
    %140 = vector.broadcast %cst_62 : f32 to vector<10x1xf32>
    %141 = arith.divf %139, %140 : vector<10x1xf32>
    %142 = vector.broadcast %134 : vector<10x1xf32> to vector<10x64xf32>
    %143 = arith.subf %128, %142 : vector<10x64xf32>
    %cst_63 = arith.constant 9.99999997E-7 : f32
    %144 = vector.broadcast %cst_63 : f32 to vector<10x1xf32>
    %145 = arith.addf %141, %144 : vector<10x1xf32>
    %146 = math.rsqrt %145 : vector<10x1xf32>
    %147 = vector.broadcast %146 : vector<10x1xf32> to vector<10x64xf32>
    %148 = arith.mulf %143, %147 : vector<10x64xf32>
    %149 = vector.broadcast %129 : vector<1x64xf32> to vector<10x64xf32>
    %150 = arith.mulf %148, %149 : vector<10x64xf32>
    %151 = vector.broadcast %130 : vector<1x64xf32> to vector<10x64xf32>
    %152 = arith.addf %150, %151 : vector<10x64xf32>
    %c0_64 = arith.constant 0 : index
    %c0_65 = arith.constant 0 : index
    %153 = vector.load %arg16[%c0_64, %c0_65] : memref<64x128xf32, #tpu.memory_space<vmem>>, vector<64x128xf32>
    %cst_66 = arith.constant dense<0.000000e+00> : vector<10x128xf32>
    %154 = tpu.matmul %152, %153, %cst_66 {dimension_numbers = #tpu.dot_dimension_numbers<[1], [0], [0], [1], [0, 0, 1, 1], [], []>} : vector<10x64xf32>, vector<64x128xf32>, vector<10x128xf32> -> vector<10x128xf32>
    %c0_67 = arith.constant 0 : index
    %c0_68 = arith.constant 0 : index
    %155 = vector.load %arg17[%c0_67, %c0_68] : memref<1x128xf32, #tpu.memory_space<vmem>>, vector<1x128xf32>
    %156 = vector.broadcast %155 : vector<1x128xf32> to vector<10x128xf32>
    %157 = arith.addf %154, %156 : vector<10x128xf32>
    %cst_69 = arith.constant 5.000000e-01 : f32
    %158 = vector.broadcast %cst_69 : f32 to vector<10x128xf32>
    %159 = arith.mulf %158, %157 : vector<10x128xf32>
    %cst_70 = arith.constant 0.707106769 : f32
    %160 = vector.broadcast %cst_70 : f32 to vector<10x128xf32>
    %161 = arith.mulf %157, %160 : vector<10x128xf32>
    %162 = math.absf %161 : vector<10x128xf32>
    %cst_71 = arith.constant 0.327591091 : f32
    %163 = vector.broadcast %cst_71 : f32 to vector<10x128xf32>
    %164 = arith.mulf %163, %162 : vector<10x128xf32>
    %cst_72 = arith.constant 1.000000e+00 : f32
    %165 = vector.broadcast %cst_72 : f32 to vector<10x128xf32>
    %166 = arith.addf %165, %164 : vector<10x128xf32>
    %cst_73 = arith.constant 1.000000e+00 : f32
    %167 = vector.broadcast %cst_73 : f32 to vector<10x128xf32>
    %168 = arith.divf %167, %166 : vector<10x128xf32>
    %cst_74 = arith.constant 1.06140542 : f32
    %169 = vector.broadcast %cst_74 : f32 to vector<10x128xf32>
    %170 = arith.mulf %169, %168 : vector<10x128xf32>
    %cst_75 = arith.constant -1.45315206 : f32
    %171 = vector.broadcast %cst_75 : f32 to vector<10x128xf32>
    %172 = arith.addf %170, %171 : vector<10x128xf32>
    %173 = arith.mulf %172, %168 : vector<10x128xf32>
    %cst_76 = arith.constant 1.42141378 : f32
    %174 = vector.broadcast %cst_76 : f32 to vector<10x128xf32>
    %175 = arith.addf %173, %174 : vector<10x128xf32>
    %176 = arith.mulf %175, %168 : vector<10x128xf32>
    %cst_77 = arith.constant -0.284496725 : f32
    %177 = vector.broadcast %cst_77 : f32 to vector<10x128xf32>
    %178 = arith.addf %176, %177 : vector<10x128xf32>
    %179 = arith.mulf %178, %168 : vector<10x128xf32>
    %cst_78 = arith.constant 0.254829586 : f32
    %180 = vector.broadcast %cst_78 : f32 to vector<10x128xf32>
    %181 = arith.addf %179, %180 : vector<10x128xf32>
    %182 = arith.mulf %181, %168 : vector<10x128xf32>
    %183 = arith.mulf %162, %162 : vector<10x128xf32>
    %cst_79 = arith.constant 0.000000e+00 : f32
    %184 = vector.broadcast %cst_79 : f32 to vector<10x128xf32>
    %185 = arith.subf %184, %183 : vector<10x128xf32>
    %186 = math.exp %185 : vector<10x128xf32>
    %187 = arith.mulf %182, %186 : vector<10x128xf32>
    %cst_80 = arith.constant 1.000000e+00 : f32
    %188 = vector.broadcast %cst_80 : f32 to vector<10x128xf32>
    %189 = arith.subf %188, %187 : vector<10x128xf32>
    %cst_81 = arith.constant 0.000000e+00 : f32
    %190 = vector.broadcast %cst_81 : f32 to vector<10x128xf32>
    %191 = arith.cmpf oge, %161, %190 : vector<10x128xf32>
    %cst_82 = arith.constant 0.000000e+00 : f32
    %192 = vector.broadcast %cst_82 : f32 to vector<10x128xf32>
    %193 = arith.subf %192, %189 : vector<10x128xf32>
    %194 = arith.select %191, %189, %193 : vector<10x128xi1>, vector<10x128xf32>
    %cst_83 = arith.constant 1.000000e+00 : f32
    %195 = vector.broadcast %cst_83 : f32 to vector<10x128xf32>
    %196 = arith.addf %195, %194 : vector<10x128xf32>
    %197 = arith.mulf %159, %196 : vector<10x128xf32>
    %c0_84 = arith.constant 0 : index
    %c0_85 = arith.constant 0 : index
    %198 = vector.load %arg18[%c0_84, %c0_85] : memref<128x64xf32, #tpu.memory_space<vmem>>, vector<128x64xf32>
    %cst_86 = arith.constant dense<0.000000e+00> : vector<10x64xf32>
    %199 = tpu.matmul %197, %198, %cst_86 {dimension_numbers = #tpu.dot_dimension_numbers<[1], [0], [0], [1], [0, 0, 1, 1], [], []>} : vector<10x128xf32>, vector<128x64xf32>, vector<10x64xf32> -> vector<10x64xf32>
    %c0_87 = arith.constant 0 : index
    %c0_88 = arith.constant 0 : index
    %200 = vector.load %arg19[%c0_87, %c0_88] : memref<1x64xf32, #tpu.memory_space<vmem>>, vector<1x64xf32>
    %201 = vector.broadcast %200 : vector<1x64xf32> to vector<10x64xf32>
    %202 = arith.addf %199, %201 : vector<10x64xf32>
    %203 = arith.addf %128, %202 : vector<10x64xf32>
    %c0_89 = arith.constant 0 : index
    %c0_90 = arith.constant 0 : index
    %204 = vector.load %arg20[%c0_89, %c0_90] : memref<1x64xf32, #tpu.memory_space<vmem>>, vector<1x64xf32>
    %c0_91 = arith.constant 0 : index
    %c0_92 = arith.constant 0 : index
    %205 = vector.load %arg21[%c0_91, %c0_92] : memref<1x64xf32, #tpu.memory_space<vmem>>, vector<1x64xf32>
    %cst_93 = arith.constant dense<0.000000e+00> : vector<10xf32>
    %206 = vector.multi_reduction <add>, %203, %cst_93 [1] : vector<10x64xf32> to vector<10xf32>
    %207 = vector.shape_cast %206 : vector<10xf32> to vector<10x1xf32>
    %cst_94 = arith.constant 6.400000e+01 : f32
    %208 = vector.broadcast %cst_94 : f32 to vector<10x1xf32>
    %209 = arith.divf %207, %208 : vector<10x1xf32>
    %210 = vector.broadcast %209 : vector<10x1xf32> to vector<10x64xf32>
    %211 = arith.subf %203, %210 : vector<10x64xf32>
    %212 = arith.mulf %211, %211 : vector<10x64xf32>
    %cst_95 = arith.constant dense<0.000000e+00> : vector<10xf32>
    %213 = vector.multi_reduction <add>, %212, %cst_95 [1] : vector<10x64xf32> to vector<10xf32>
    %214 = vector.shape_cast %213 : vector<10xf32> to vector<10x1xf32>
    %cst_96 = arith.constant 6.400000e+01 : f32
    %215 = vector.broadcast %cst_96 : f32 to vector<10x1xf32>
    %216 = arith.divf %214, %215 : vector<10x1xf32>
    %217 = vector.broadcast %209 : vector<10x1xf32> to vector<10x64xf32>
    %218 = arith.subf %203, %217 : vector<10x64xf32>
    %cst_97 = arith.constant 9.99999997E-7 : f32
    %219 = vector.broadcast %cst_97 : f32 to vector<10x1xf32>
    %220 = arith.addf %216, %219 : vector<10x1xf32>
    %221 = math.rsqrt %220 : vector<10x1xf32>
    %222 = vector.broadcast %221 : vector<10x1xf32> to vector<10x64xf32>
    %223 = arith.mulf %218, %222 : vector<10x64xf32>
    %224 = vector.broadcast %204 : vector<1x64xf32> to vector<10x64xf32>
    %225 = arith.mulf %223, %224 : vector<10x64xf32>
    %226 = vector.broadcast %205 : vector<1x64xf32> to vector<10x64xf32>
    %227 = arith.addf %225, %226 : vector<10x64xf32>
    %c0_98 = arith.constant 0 : index
    %c0_99 = arith.constant 0 : index
    %228 = vector.load %arg22[%c0_98, %c0_99] : memref<64x64xf32, #tpu.memory_space<vmem>>, vector<64x64xf32>
    %cst_100 = arith.constant dense<0.000000e+00> : vector<10x64xf32>
    %229 = tpu.matmul %227, %228, %cst_100 {dimension_numbers = #tpu.dot_dimension_numbers<[1], [0], [0], [1], [0, 0, 1, 1], [], []>} : vector<10x64xf32>, vector<64x64xf32>, vector<10x64xf32> -> vector<10x64xf32>
    %c0_101 = arith.constant 0 : index
    %c0_102 = arith.constant 0 : index
    %230 = vector.load %arg23[%c0_101, %c0_102] : memref<1x64xf32, #tpu.memory_space<vmem>>, vector<1x64xf32>
    %231 = vector.broadcast %230 : vector<1x64xf32> to vector<10x64xf32>
    %232 = arith.addf %229, %231 : vector<10x64xf32>
    %c0_103 = arith.constant 0 : index
    %c0_104 = arith.constant 0 : index
    %233 = vector.load %arg24[%c0_103, %c0_104] : memref<64x64xf32, #tpu.memory_space<vmem>>, vector<64x64xf32>
    %cst_105 = arith.constant dense<0.000000e+00> : vector<10x64xf32>
    %234 = tpu.matmul %227, %233, %cst_105 {dimension_numbers = #tpu.dot_dimension_numbers<[1], [0], [0], [1], [0, 0, 1, 1], [], []>} : vector<10x64xf32>, vector<64x64xf32>, vector<10x64xf32> -> vector<10x64xf32>
    %c0_106 = arith.constant 0 : index
    %c0_107 = arith.constant 0 : index
    %235 = vector.load %arg25[%c0_106, %c0_107] : memref<1x64xf32, #tpu.memory_space<vmem>>, vector<1x64xf32>
    %236 = vector.broadcast %235 : vector<1x64xf32> to vector<10x64xf32>
    %237 = arith.addf %234, %236 : vector<10x64xf32>
    %c0_108 = arith.constant 0 : index
    %c0_109 = arith.constant 0 : index
    %238 = vector.load %arg26[%c0_108, %c0_109] : memref<64x64xf32, #tpu.memory_space<vmem>>, vector<64x64xf32>
    %cst_110 = arith.constant dense<0.000000e+00> : vector<10x64xf32>
    %239 = tpu.matmul %227, %238, %cst_110 {dimension_numbers = #tpu.dot_dimension_numbers<[1], [0], [0], [1], [0, 0, 1, 1], [], []>} : vector<10x64xf32>, vector<64x64xf32>, vector<10x64xf32> -> vector<10x64xf32>
    %c0_111 = arith.constant 0 : index
    %c0_112 = arith.constant 0 : index
    %240 = vector.load %arg27[%c0_111, %c0_112] : memref<1x64xf32, #tpu.memory_space<vmem>>, vector<1x64xf32>
    %241 = vector.broadcast %240 : vector<1x64xf32> to vector<10x64xf32>
    %242 = arith.addf %239, %241 : vector<10x64xf32>
    %c0_113 = arith.constant 0 : index
    %c0_114 = arith.constant 0 : index
    %243 = vector.load %arg28[%c0_113, %c0_114] : memref<64x64xf32, #tpu.memory_space<vmem>>, vector<64x64xf32>
    %244 = vector.extract_strided_slice %232 {offsets = [0, 0], sizes = [10, 16], strides = [1, 1]} : vector<10x64xf32> to vector<10x16xf32>
    %245 = vector.extract_strided_slice %237 {offsets = [0, 0], sizes = [10, 16], strides = [1, 1]} : vector<10x64xf32> to vector<10x16xf32>
    %246 = vector.extract_strided_slice %242 {offsets = [0, 0], sizes = [10, 16], strides = [1, 1]} : vector<10x64xf32> to vector<10x16xf32>
    %247 = tpu.transpose %245, [1, 0] : vector<10x16xf32> -> vector<16x10xf32>
    %cst_115 = arith.constant dense<0.000000e+00> : vector<10x10xf32>
    %248 = tpu.matmul %244, %247, %cst_115 {dimension_numbers = #tpu.dot_dimension_numbers<[1], [0], [0], [1], [0, 0, 1, 1], [], []>} : vector<10x16xf32>, vector<16x10xf32>, vector<10x10xf32> -> vector<10x10xf32>
    %249 = arith.addf %248, %5 : vector<10x10xf32>
    %cst_116 = arith.constant dense<0xFF800000> : vector<10xf32>
    %250 = vector.multi_reduction <maximumf>, %249, %cst_116 [1] : vector<10x10xf32> to vector<10xf32>
    %251 = vector.shape_cast %250 : vector<10xf32> to vector<10x1xf32>
    %252 = vector.broadcast %251 : vector<10x1xf32> to vector<10x10xf32>
    %253 = arith.subf %249, %252 : vector<10x10xf32>
    %254 = math.exp %253 : vector<10x10xf32>
    %cst_117 = arith.constant dense<0.000000e+00> : vector<10xf32>
    %255 = vector.multi_reduction <add>, %254, %cst_117 [1] : vector<10x10xf32> to vector<10xf32>
    %256 = vector.shape_cast %255 : vector<10xf32> to vector<10x1xf32>
    %257 = tpu.reciprocal %256 {approx = true} : vector<10x1xf32> -> vector<10x1xf32>
    %258 = vector.broadcast %257 : vector<10x1xf32> to vector<10x10xf32>
    %259 = arith.mulf %254, %258 : vector<10x10xf32>
    %cst_118 = arith.constant dense<0.000000e+00> : vector<10x16xf32>
    %260 = tpu.matmul %259, %246, %cst_118 {dimension_numbers = #tpu.dot_dimension_numbers<[1], [0], [0], [1], [0, 0, 1, 1], [], []>} : vector<10x10xf32>, vector<10x16xf32>, vector<10x16xf32> -> vector<10x16xf32>
    %261 = vector.extract_strided_slice %243 {offsets = [0, 0], sizes = [16, 64], strides = [1, 1]} : vector<64x64xf32> to vector<16x64xf32>
    %cst_119 = arith.constant dense<0.000000e+00> : vector<10x64xf32>
    %262 = tpu.matmul %260, %261, %cst_119 {dimension_numbers = #tpu.dot_dimension_numbers<[1], [0], [0], [1], [0, 0, 1, 1], [], []>} : vector<10x16xf32>, vector<16x64xf32>, vector<10x64xf32> -> vector<10x64xf32>
    %263 = vector.extract_strided_slice %232 {offsets = [0, 16], sizes = [10, 16], strides = [1, 1]} : vector<10x64xf32> to vector<10x16xf32>
    %264 = vector.extract_strided_slice %237 {offsets = [0, 16], sizes = [10, 16], strides = [1, 1]} : vector<10x64xf32> to vector<10x16xf32>
    %265 = vector.extract_strided_slice %242 {offsets = [0, 16], sizes = [10, 16], strides = [1, 1]} : vector<10x64xf32> to vector<10x16xf32>
    %266 = tpu.transpose %264, [1, 0] : vector<10x16xf32> -> vector<16x10xf32>
    %cst_120 = arith.constant dense<0.000000e+00> : vector<10x10xf32>
    %267 = tpu.matmul %263, %266, %cst_120 {dimension_numbers = #tpu.dot_dimension_numbers<[1], [0], [0], [1], [0, 0, 1, 1], [], []>} : vector<10x16xf32>, vector<16x10xf32>, vector<10x10xf32> -> vector<10x10xf32>
    %268 = arith.addf %267, %5 : vector<10x10xf32>
    %cst_121 = arith.constant dense<0xFF800000> : vector<10xf32>
    %269 = vector.multi_reduction <maximumf>, %268, %cst_121 [1] : vector<10x10xf32> to vector<10xf32>
    %270 = vector.shape_cast %269 : vector<10xf32> to vector<10x1xf32>
    %271 = vector.broadcast %270 : vector<10x1xf32> to vector<10x10xf32>
    %272 = arith.subf %268, %271 : vector<10x10xf32>
    %273 = math.exp %272 : vector<10x10xf32>
    %cst_122 = arith.constant dense<0.000000e+00> : vector<10xf32>
    %274 = vector.multi_reduction <add>, %273, %cst_122 [1] : vector<10x10xf32> to vector<10xf32>
    %275 = vector.shape_cast %274 : vector<10xf32> to vector<10x1xf32>
    %276 = tpu.reciprocal %275 {approx = true} : vector<10x1xf32> -> vector<10x1xf32>
    %277 = vector.broadcast %276 : vector<10x1xf32> to vector<10x10xf32>
    %278 = arith.mulf %273, %277 : vector<10x10xf32>
    %cst_123 = arith.constant dense<0.000000e+00> : vector<10x16xf32>
    %279 = tpu.matmul %278, %265, %cst_123 {dimension_numbers = #tpu.dot_dimension_numbers<[1], [0], [0], [1], [0, 0, 1, 1], [], []>} : vector<10x10xf32>, vector<10x16xf32>, vector<10x16xf32> -> vector<10x16xf32>
    %280 = vector.extract_strided_slice %243 {offsets = [16, 0], sizes = [16, 64], strides = [1, 1]} : vector<64x64xf32> to vector<16x64xf32>
    %cst_124 = arith.constant dense<0.000000e+00> : vector<10x64xf32>
    %281 = tpu.matmul %279, %280, %cst_124 {dimension_numbers = #tpu.dot_dimension_numbers<[1], [0], [0], [1], [0, 0, 1, 1], [], []>} : vector<10x16xf32>, vector<16x64xf32>, vector<10x64xf32> -> vector<10x64xf32>
    %282 = arith.addf %262, %281 : vector<10x64xf32>
    %283 = vector.extract_strided_slice %232 {offsets = [0, 32], sizes = [10, 16], strides = [1, 1]} : vector<10x64xf32> to vector<10x16xf32>
    %284 = vector.extract_strided_slice %237 {offsets = [0, 32], sizes = [10, 16], strides = [1, 1]} : vector<10x64xf32> to vector<10x16xf32>
    %285 = vector.extract_strided_slice %242 {offsets = [0, 32], sizes = [10, 16], strides = [1, 1]} : vector<10x64xf32> to vector<10x16xf32>
    %286 = tpu.transpose %284, [1, 0] : vector<10x16xf32> -> vector<16x10xf32>
    %cst_125 = arith.constant dense<0.000000e+00> : vector<10x10xf32>
    %287 = tpu.matmul %283, %286, %cst_125 {dimension_numbers = #tpu.dot_dimension_numbers<[1], [0], [0], [1], [0, 0, 1, 1], [], []>} : vector<10x16xf32>, vector<16x10xf32>, vector<10x10xf32> -> vector<10x10xf32>
    %288 = arith.addf %287, %5 : vector<10x10xf32>
    %cst_126 = arith.constant dense<0xFF800000> : vector<10xf32>
    %289 = vector.multi_reduction <maximumf>, %288, %cst_126 [1] : vector<10x10xf32> to vector<10xf32>
    %290 = vector.shape_cast %289 : vector<10xf32> to vector<10x1xf32>
    %291 = vector.broadcast %290 : vector<10x1xf32> to vector<10x10xf32>
    %292 = arith.subf %288, %291 : vector<10x10xf32>
    %293 = math.exp %292 : vector<10x10xf32>
    %cst_127 = arith.constant dense<0.000000e+00> : vector<10xf32>
    %294 = vector.multi_reduction <add>, %293, %cst_127 [1] : vector<10x10xf32> to vector<10xf32>
    %295 = vector.shape_cast %294 : vector<10xf32> to vector<10x1xf32>
    %296 = tpu.reciprocal %295 {approx = true} : vector<10x1xf32> -> vector<10x1xf32>
    %297 = vector.broadcast %296 : vector<10x1xf32> to vector<10x10xf32>
    %298 = arith.mulf %293, %297 : vector<10x10xf32>
    %cst_128 = arith.constant dense<0.000000e+00> : vector<10x16xf32>
    %299 = tpu.matmul %298, %285, %cst_128 {dimension_numbers = #tpu.dot_dimension_numbers<[1], [0], [0], [1], [0, 0, 1, 1], [], []>} : vector<10x10xf32>, vector<10x16xf32>, vector<10x16xf32> -> vector<10x16xf32>
    %300 = vector.extract_strided_slice %243 {offsets = [32, 0], sizes = [16, 64], strides = [1, 1]} : vector<64x64xf32> to vector<16x64xf32>
    %cst_129 = arith.constant dense<0.000000e+00> : vector<10x64xf32>
    %301 = tpu.matmul %299, %300, %cst_129 {dimension_numbers = #tpu.dot_dimension_numbers<[1], [0], [0], [1], [0, 0, 1, 1], [], []>} : vector<10x16xf32>, vector<16x64xf32>, vector<10x64xf32> -> vector<10x64xf32>
    %302 = arith.addf %282, %301 : vector<10x64xf32>
    %303 = vector.extract_strided_slice %232 {offsets = [0, 48], sizes = [10, 16], strides = [1, 1]} : vector<10x64xf32> to vector<10x16xf32>
    %304 = vector.extract_strided_slice %237 {offsets = [0, 48], sizes = [10, 16], strides = [1, 1]} : vector<10x64xf32> to vector<10x16xf32>
    %305 = vector.extract_strided_slice %242 {offsets = [0, 48], sizes = [10, 16], strides = [1, 1]} : vector<10x64xf32> to vector<10x16xf32>
    %306 = tpu.transpose %304, [1, 0] : vector<10x16xf32> -> vector<16x10xf32>
    %cst_130 = arith.constant dense<0.000000e+00> : vector<10x10xf32>
    %307 = tpu.matmul %303, %306, %cst_130 {dimension_numbers = #tpu.dot_dimension_numbers<[1], [0], [0], [1], [0, 0, 1, 1], [], []>} : vector<10x16xf32>, vector<16x10xf32>, vector<10x10xf32> -> vector<10x10xf32>
    %308 = arith.addf %307, %5 : vector<10x10xf32>
    %cst_131 = arith.constant dense<0xFF800000> : vector<10xf32>
    %309 = vector.multi_reduction <maximumf>, %308, %cst_131 [1] : vector<10x10xf32> to vector<10xf32>
    %310 = vector.shape_cast %309 : vector<10xf32> to vector<10x1xf32>
    %311 = vector.broadcast %310 : vector<10x1xf32> to vector<10x10xf32>
    %312 = arith.subf %308, %311 : vector<10x10xf32>
    %313 = math.exp %312 : vector<10x10xf32>
    %cst_132 = arith.constant dense<0.000000e+00> : vector<10xf32>
    %314 = vector.multi_reduction <add>, %313, %cst_132 [1] : vector<10x10xf32> to vector<10xf32>
    %315 = vector.shape_cast %314 : vector<10xf32> to vector<10x1xf32>
    %316 = tpu.reciprocal %315 {approx = true} : vector<10x1xf32> -> vector<10x1xf32>
    %317 = vector.broadcast %316 : vector<10x1xf32> to vector<10x10xf32>
    %318 = arith.mulf %313, %317 : vector<10x10xf32>
    %cst_133 = arith.constant dense<0.000000e+00> : vector<10x16xf32>
    %319 = tpu.matmul %318, %305, %cst_133 {dimension_numbers = #tpu.dot_dimension_numbers<[1], [0], [0], [1], [0, 0, 1, 1], [], []>} : vector<10x10xf32>, vector<10x16xf32>, vector<10x16xf32> -> vector<10x16xf32>
    %320 = vector.extract_strided_slice %243 {offsets = [48, 0], sizes = [16, 64], strides = [1, 1]} : vector<64x64xf32> to vector<16x64xf32>
    %cst_134 = arith.constant dense<0.000000e+00> : vector<10x64xf32>
    %321 = tpu.matmul %319, %320, %cst_134 {dimension_numbers = #tpu.dot_dimension_numbers<[1], [0], [0], [1], [0, 0, 1, 1], [], []>} : vector<10x16xf32>, vector<16x64xf32>, vector<10x64xf32> -> vector<10x64xf32>
    %322 = arith.addf %302, %321 : vector<10x64xf32>
    %323 = arith.addf %203, %322 : vector<10x64xf32>
    %c0_135 = arith.constant 0 : index
    %c0_136 = arith.constant 0 : index
    %324 = vector.load %arg29[%c0_135, %c0_136] : memref<1x64xf32, #tpu.memory_space<vmem>>, vector<1x64xf32>
    %325 = vector.broadcast %324 : vector<1x64xf32> to vector<10x64xf32>
    %326 = arith.addf %323, %325 : vector<10x64xf32>
    %c0_137 = arith.constant 0 : index
    %c0_138 = arith.constant 0 : index
    %327 = vector.load %arg30[%c0_137, %c0_138] : memref<1x64xf32, #tpu.memory_space<vmem>>, vector<1x64xf32>
    %c0_139 = arith.constant 0 : index
    %c0_140 = arith.constant 0 : index
    %328 = vector.load %arg31[%c0_139, %c0_140] : memref<1x64xf32, #tpu.memory_space<vmem>>, vector<1x64xf32>
    %cst_141 = arith.constant dense<0.000000e+00> : vector<10xf32>
    %329 = vector.multi_reduction <add>, %326, %cst_141 [1] : vector<10x64xf32> to vector<10xf32>
    %330 = vector.shape_cast %329 : vector<10xf32> to vector<10x1xf32>
    %cst_142 = arith.constant 6.400000e+01 : f32
    %331 = vector.broadcast %cst_142 : f32 to vector<10x1xf32>
    %332 = arith.divf %330, %331 : vector<10x1xf32>
    %333 = vector.broadcast %332 : vector<10x1xf32> to vector<10x64xf32>
    %334 = arith.subf %326, %333 : vector<10x64xf32>
    %335 = arith.mulf %334, %334 : vector<10x64xf32>
    %cst_143 = arith.constant dense<0.000000e+00> : vector<10xf32>
    %336 = vector.multi_reduction <add>, %335, %cst_143 [1] : vector<10x64xf32> to vector<10xf32>
    %337 = vector.shape_cast %336 : vector<10xf32> to vector<10x1xf32>
    %cst_144 = arith.constant 6.400000e+01 : f32
    %338 = vector.broadcast %cst_144 : f32 to vector<10x1xf32>
    %339 = arith.divf %337, %338 : vector<10x1xf32>
    %340 = vector.broadcast %332 : vector<10x1xf32> to vector<10x64xf32>
    %341 = arith.subf %326, %340 : vector<10x64xf32>
    %cst_145 = arith.constant 9.99999997E-7 : f32
    %342 = vector.broadcast %cst_145 : f32 to vector<10x1xf32>
    %343 = arith.addf %339, %342 : vector<10x1xf32>
    %344 = math.rsqrt %343 : vector<10x1xf32>
    %345 = vector.broadcast %344 : vector<10x1xf32> to vector<10x64xf32>
    %346 = arith.mulf %341, %345 : vector<10x64xf32>
    %347 = vector.broadcast %327 : vector<1x64xf32> to vector<10x64xf32>
    %348 = arith.mulf %346, %347 : vector<10x64xf32>
    %349 = vector.broadcast %328 : vector<1x64xf32> to vector<10x64xf32>
    %350 = arith.addf %348, %349 : vector<10x64xf32>
    %c0_146 = arith.constant 0 : index
    %c0_147 = arith.constant 0 : index
    %351 = vector.load %arg32[%c0_146, %c0_147] : memref<64x128xf32, #tpu.memory_space<vmem>>, vector<64x128xf32>
    %cst_148 = arith.constant dense<0.000000e+00> : vector<10x128xf32>
    %352 = tpu.matmul %350, %351, %cst_148 {dimension_numbers = #tpu.dot_dimension_numbers<[1], [0], [0], [1], [0, 0, 1, 1], [], []>} : vector<10x64xf32>, vector<64x128xf32>, vector<10x128xf32> -> vector<10x128xf32>
    %c0_149 = arith.constant 0 : index
    %c0_150 = arith.constant 0 : index
    %353 = vector.load %arg33[%c0_149, %c0_150] : memref<1x128xf32, #tpu.memory_space<vmem>>, vector<1x128xf32>
    %354 = vector.broadcast %353 : vector<1x128xf32> to vector<10x128xf32>
    %355 = arith.addf %352, %354 : vector<10x128xf32>
    %cst_151 = arith.constant 5.000000e-01 : f32
    %356 = vector.broadcast %cst_151 : f32 to vector<10x128xf32>
    %357 = arith.mulf %356, %355 : vector<10x128xf32>
    %cst_152 = arith.constant 0.707106769 : f32
    %358 = vector.broadcast %cst_152 : f32 to vector<10x128xf32>
    %359 = arith.mulf %355, %358 : vector<10x128xf32>
    %360 = math.absf %359 : vector<10x128xf32>
    %cst_153 = arith.constant 0.327591091 : f32
    %361 = vector.broadcast %cst_153 : f32 to vector<10x128xf32>
    %362 = arith.mulf %361, %360 : vector<10x128xf32>
    %cst_154 = arith.constant 1.000000e+00 : f32
    %363 = vector.broadcast %cst_154 : f32 to vector<10x128xf32>
    %364 = arith.addf %363, %362 : vector<10x128xf32>
    %cst_155 = arith.constant 1.000000e+00 : f32
    %365 = vector.broadcast %cst_155 : f32 to vector<10x128xf32>
    %366 = arith.divf %365, %364 : vector<10x128xf32>
    %cst_156 = arith.constant 1.06140542 : f32
    %367 = vector.broadcast %cst_156 : f32 to vector<10x128xf32>
    %368 = arith.mulf %367, %366 : vector<10x128xf32>
    %cst_157 = arith.constant -1.45315206 : f32
    %369 = vector.broadcast %cst_157 : f32 to vector<10x128xf32>
    %370 = arith.addf %368, %369 : vector<10x128xf32>
    %371 = arith.mulf %370, %366 : vector<10x128xf32>
    %cst_158 = arith.constant 1.42141378 : f32
    %372 = vector.broadcast %cst_158 : f32 to vector<10x128xf32>
    %373 = arith.addf %371, %372 : vector<10x128xf32>
    %374 = arith.mulf %373, %366 : vector<10x128xf32>
    %cst_159 = arith.constant -0.284496725 : f32
    %375 = vector.broadcast %cst_159 : f32 to vector<10x128xf32>
    %376 = arith.addf %374, %375 : vector<10x128xf32>
    %377 = arith.mulf %376, %366 : vector<10x128xf32>
    %cst_160 = arith.constant 0.254829586 : f32
    %378 = vector.broadcast %cst_160 : f32 to vector<10x128xf32>
    %379 = arith.addf %377, %378 : vector<10x128xf32>
    %380 = arith.mulf %379, %366 : vector<10x128xf32>
    %381 = arith.mulf %360, %360 : vector<10x128xf32>
    %cst_161 = arith.constant 0.000000e+00 : f32
    %382 = vector.broadcast %cst_161 : f32 to vector<10x128xf32>
    %383 = arith.subf %382, %381 : vector<10x128xf32>
    %384 = math.exp %383 : vector<10x128xf32>
    %385 = arith.mulf %380, %384 : vector<10x128xf32>
    %cst_162 = arith.constant 1.000000e+00 : f32
    %386 = vector.broadcast %cst_162 : f32 to vector<10x128xf32>
    %387 = arith.subf %386, %385 : vector<10x128xf32>
    %cst_163 = arith.constant 0.000000e+00 : f32
    %388 = vector.broadcast %cst_163 : f32 to vector<10x128xf32>
    %389 = arith.cmpf oge, %359, %388 : vector<10x128xf32>
    %cst_164 = arith.constant 0.000000e+00 : f32
    %390 = vector.broadcast %cst_164 : f32 to vector<10x128xf32>
    %391 = arith.subf %390, %387 : vector<10x128xf32>
    %392 = arith.select %389, %387, %391 : vector<10x128xi1>, vector<10x128xf32>
    %cst_165 = arith.constant 1.000000e+00 : f32
    %393 = vector.broadcast %cst_165 : f32 to vector<10x128xf32>
    %394 = arith.addf %393, %392 : vector<10x128xf32>
    %395 = arith.mulf %357, %394 : vector<10x128xf32>
    %c0_166 = arith.constant 0 : index
    %c0_167 = arith.constant 0 : index
    %396 = vector.load %arg34[%c0_166, %c0_167] : memref<128x64xf32, #tpu.memory_space<vmem>>, vector<128x64xf32>
    %cst_168 = arith.constant dense<0.000000e+00> : vector<10x64xf32>
    %397 = tpu.matmul %395, %396, %cst_168 {dimension_numbers = #tpu.dot_dimension_numbers<[1], [0], [0], [1], [0, 0, 1, 1], [], []>} : vector<10x128xf32>, vector<128x64xf32>, vector<10x64xf32> -> vector<10x64xf32>
    %c0_169 = arith.constant 0 : index
    %c0_170 = arith.constant 0 : index
    %398 = vector.load %arg35[%c0_169, %c0_170] : memref<1x64xf32, #tpu.memory_space<vmem>>, vector<1x64xf32>
    %399 = vector.broadcast %398 : vector<1x64xf32> to vector<10x64xf32>
    %400 = arith.addf %397, %399 : vector<10x64xf32>
    %401 = arith.addf %326, %400 : vector<10x64xf32>
    %402 = vector.extract_strided_slice %401 {offsets = [0, 0], sizes = [8, 64], strides = [1, 1]} : vector<10x64xf32> to vector<8x64xf32>
    %c0_171 = arith.constant 0 : index
    %c0_172 = arith.constant 0 : index
    %403 = vector.load %arg36[%c0_171, %c0_172] : memref<1x64xf32, #tpu.memory_space<vmem>>, vector<1x64xf32>
    %c0_173 = arith.constant 0 : index
    %c0_174 = arith.constant 0 : index
    %404 = vector.load %arg37[%c0_173, %c0_174] : memref<1x64xf32, #tpu.memory_space<vmem>>, vector<1x64xf32>
    %cst_175 = arith.constant dense<0.000000e+00> : vector<8xf32>
    %405 = vector.multi_reduction <add>, %402, %cst_175 [1] : vector<8x64xf32> to vector<8xf32>
    %406 = vector.shape_cast %405 : vector<8xf32> to vector<8x1xf32>
    %cst_176 = arith.constant 6.400000e+01 : f32
    %407 = vector.broadcast %cst_176 : f32 to vector<8x1xf32>
    %408 = arith.divf %406, %407 : vector<8x1xf32>
    %409 = vector.broadcast %408 : vector<8x1xf32> to vector<8x64xf32>
    %410 = arith.subf %402, %409 : vector<8x64xf32>
    %411 = arith.mulf %410, %410 : vector<8x64xf32>
    %cst_177 = arith.constant dense<0.000000e+00> : vector<8xf32>
    %412 = vector.multi_reduction <add>, %411, %cst_177 [1] : vector<8x64xf32> to vector<8xf32>
    %413 = vector.shape_cast %412 : vector<8xf32> to vector<8x1xf32>
    %cst_178 = arith.constant 6.400000e+01 : f32
    %414 = vector.broadcast %cst_178 : f32 to vector<8x1xf32>
    %415 = arith.divf %413, %414 : vector<8x1xf32>
    %416 = vector.broadcast %408 : vector<8x1xf32> to vector<8x64xf32>
    %417 = arith.subf %402, %416 : vector<8x64xf32>
    %cst_179 = arith.constant 9.99999997E-7 : f32
    %418 = vector.broadcast %cst_179 : f32 to vector<8x1xf32>
    %419 = arith.addf %415, %418 : vector<8x1xf32>
    %420 = math.rsqrt %419 : vector<8x1xf32>
    %421 = vector.broadcast %420 : vector<8x1xf32> to vector<8x64xf32>
    %422 = arith.mulf %417, %421 : vector<8x64xf32>
    %423 = vector.broadcast %403 : vector<1x64xf32> to vector<8x64xf32>
    %424 = arith.mulf %422, %423 : vector<8x64xf32>
    %425 = vector.broadcast %404 : vector<1x64xf32> to vector<8x64xf32>
    %426 = arith.addf %424, %425 : vector<8x64xf32>
    %c0_180 = arith.constant 0 : index
    %c0_181 = arith.constant 0 : index
    %427 = vector.load %arg38[%c0_180, %c0_181] : memref<64x128xf32, #tpu.memory_space<vmem>>, vector<64x128xf32>
    %cst_182 = arith.constant dense<0.000000e+00> : vector<8x128xf32>
    %428 = tpu.matmul %426, %427, %cst_182 {dimension_numbers = #tpu.dot_dimension_numbers<[1], [0], [0], [1], [0, 0, 1, 1], [], []>} : vector<8x64xf32>, vector<64x128xf32>, vector<8x128xf32> -> vector<8x128xf32>
    %c0_183 = arith.constant 0 : index
    %c0_184 = arith.constant 0 : index
    %429 = vector.load %arg39[%c0_183, %c0_184] : memref<1x128xf32, #tpu.memory_space<vmem>>, vector<1x128xf32>
    %430 = vector.broadcast %429 : vector<1x128xf32> to vector<8x128xf32>
    %431 = arith.addf %428, %430 : vector<8x128xf32>
    %c0_185 = arith.constant 0 : index
    %c0_186 = arith.constant 0 : index
    %432 = vector.load %arg40[%c0_185, %c0_186] : memref<8x128xf32, #tpu.memory_space<vmem>>, vector<8x128xf32>
    tpu.vector_store %arg40[%c0_185, %c0_186], %431 {strides = array<i32>} : memref<8x128xf32, #tpu.memory_space<vmem>>, vector<8x128xf32>,
    return
  }
}

</mosaic_0001>

<llo_original>
// kernel: vit_forward.1
$region0: #{vit_forward.1}
  #allocation0 [shape = 'u32[]', space=smem, size = 0x4, offset = 0x4, fixed_abs, tag = 'smem constant byte address 0x4 - core index']
  #allocation1 [shape = 'u32[72,128]{1,0:T(1,128)}', space=vmem, size = 0x9000, scoped, tag = 'internal scratch']
  %s0 = inlined_call_operand.smem [shape: u32[41], index: -1, kind: input, shape index: {}]
  %s1 = sld [smem:[%s0]]
  %s2 = scalar_lea.smem %s0, 1
  %s3 = sld [smem:[%s2]]
  %s4 = scalar_lea.smem %s0, 2
  %s5 = sld [smem:[%s4]]
  %s6 = scalar_lea.smem %s0, 3
  %s7 = sld [smem:[%s6]]
  %s8 = scalar_lea.smem %s0, 4
  %s9 = sld [smem:[%s8]]
  %s10 = scalar_lea.smem %s0, 5
  %s11 = sld [smem:[%s10]]
  %s12 = scalar_lea.smem %s0, 6
  %s13 = sld [smem:[%s12]]
  %s14 = scalar_lea.smem %s0, 7
  %s15 = sld [smem:[%s14]]
  %s16 = scalar_lea.smem %s0, 8
  %s17 = sld [smem:[%s16]]
  %s18 = scalar_lea.smem %s0, 9
  %s19 = sld [smem:[%s18]]
  %s20 = scalar_lea.smem %s0, 10
  %s21 = sld [smem:[%s20]]
  %s22 = scalar_lea.smem %s0, 11
  %s23 = sld [smem:[%s22]]
  %s24 = scalar_lea.smem %s0, 12
  %s25 = sld [smem:[%s24]]
  %s26 = scalar_lea.smem %s0, 13
  %s27 = sld [smem:[%s26]]
  %s28 = scalar_lea.smem %s0, 14
  %s29 = sld [smem:[%s28]]
  %s30 = scalar_lea.smem %s0, 15
  %s31 = sld [smem:[%s30]]
  %s32 = scalar_lea.smem %s0, 16
  %s33 = sld [smem:[%s32]]
  %s34 = scalar_lea.smem %s0, 17
  %s35 = sld [smem:[%s34]]
  %s36 = scalar_lea.smem %s0, 18
  %s37 = sld [smem:[%s36]]
  %s38 = scalar_lea.smem %s0, 19
  %s39 = sld [smem:[%s38]]
  %s40 = scalar_lea.smem %s0, 20
  %s41 = sld [smem:[%s40]]
  %s42 = scalar_lea.smem %s0, 21
  %s43 = sld [smem:[%s42]]
  %s44 = scalar_lea.smem %s0, 22
  %s45 = sld [smem:[%s44]]
  %s46 = scalar_lea.smem %s0, 23
  %s47 = sld [smem:[%s46]]
  %s48 = scalar_lea.smem %s0, 24
  %s49 = sld [smem:[%s48]]
  %s50 = scalar_lea.smem %s0, 25
  %s51 = sld [smem:[%s50]]
  %s52 = scalar_lea.smem %s0, 26
  %s53 = sld [smem:[%s52]]
  %s54 = scalar_lea.smem %s0, 27
  %s55 = sld [smem:[%s54]]
  %s56 = scalar_lea.smem %s0, 28
  %s57 = sld [smem:[%s56]]
  %s58 = scalar_lea.smem %s0, 29
  %s59 = sld [smem:[%s58]]
  %s60 = scalar_lea.smem %s0, 30
  %s61 = sld [smem:[%s60]]
  %s62 = scalar_lea.smem %s0, 31
  %s63 = sld [smem:[%s62]]
  %s64 = scalar_lea.smem %s0, 32
  %s65 = sld [smem:[%s64]]
  %s66 = scalar_lea.smem %s0, 33
  %s67 = sld [smem:[%s66]]
  %s68 = scalar_lea.smem %s0, 34
  %s69 = sld [smem:[%s68]]
  %s70 = scalar_lea.smem %s0, 35
  %s71 = sld [smem:[%s70]]
  %s72 = scalar_lea.smem %s0, 36
  %s73 = sld [smem:[%s72]]
  %s74 = scalar_lea.smem %s0, 37
  %s75 = sld [smem:[%s74]]
  %s76 = scalar_lea.smem %s0, 38
  %s77 = sld [smem:[%s76]]
  %s78 = scalar_lea.smem %s0, 39
  %s79 = sld [smem:[%s78]]
  %s80 = scalar_lea.smem %s0, 40
  %s81 = sld [smem:[%s80]]
  %s82 = sld [smem:[#allocation0]]
  $region170: #{vit_forward.1} parent=0
    _
  %s84 = ssub.s32 1, %s82
  %s85 = scalar_select 0, %s84, %s82
  // Predicated region
  $region2: #{vit_forward.1} parent=0 // pred_check
    _
  $region3: #{vit_forward.1} parent=0 // pred_check_branch
    %87 = sbr.rel (0) target = $region5
  $region4: #{vit_forward.1} parent=0 // pred_region
    _
  $region5: #{vit_forward.1} parent=0 // pred_fallthru
    _
  // Predicated region
  $region6: #{vit_forward.1} parent=0 // pred_check
    _
  $region7: #{vit_forward.1} parent=0 // pred_check_branch
    %89 = sbr.rel (0) target = $region9
  $region8: #{vit_forward.1} parent=0 // pred_region
    _
  $region9: #{vit_forward.1} parent=0 // pred_fallthru
    _
  // Predicated region
  $region10: #{vit_forward.1} parent=0 // pred_check
    _
  $region11: #{vit_forward.1} parent=0 // pred_check_branch
    %91 = sbr.rel (0) target = $region13
  $region12: #{vit_forward.1} parent=0 // pred_region
    _
  $region13: #{vit_forward.1} parent=0 // pred_fallthru
    _
  // Predicated region
  $region14: #{vit_forward.1} parent=0 // pred_check
    _
  $region15: #{vit_forward.1} parent=0 // pred_check_branch
    %93 = sbr.rel (0) target = $region17
  $region16: #{vit_forward.1} parent=0 // pred_region
    _
  $region17: #{vit_forward.1} parent=0 // pred_fallthru
    _
  // Predicated region
  $region18: #{vit_forward.1} parent=0 // pred_check
    _
  $region19: #{vit_forward.1} parent=0 // pred_check_branch
    %95 = sbr.rel (0) target = $region21
  $region20: #{vit_forward.1} parent=0 // pred_region
    _
  $region21: #{vit_forward.1} parent=0 // pred_fallthru
    _
  // Predicated region
  $region22: #{vit_forward.1} parent=0 // pred_check
    _
  $region23: #{vit_forward.1} parent=0 // pred_check_branch
    %97 = sbr.rel (0) target = $region25
  $region24: #{vit_forward.1} parent=0 // pred_region
    _
  $region25: #{vit_forward.1} parent=0 // pred_fallthru
    _
  // Predicated region
  $region26: #{vit_forward.1} parent=0 // pred_check
    _
  $region27: #{vit_forward.1} parent=0 // pred_check_branch
    %99 = sbr.rel (0) target = $region29
  $region28: #{vit_forward.1} parent=0 // pred_region
    _
  $region29: #{vit_forward.1} parent=0 // pred_fallthru
    _
  // Predicated region
  $region30: #{vit_forward.1} parent=0 // pred_check
    _
  $region31: #{vit_forward.1} parent=0 // pred_check_branch
    %101 = sbr.rel (0) target = $region33
  $region32: #{vit_forward.1} parent=0 // pred_region
    _
  $region33: #{vit_forward.1} parent=0 // pred_fallthru
    _
  // Predicated region
  $region34: #{vit_forward.1} parent=0 // pred_check
    _
  $region35: #{vit_forward.1} parent=0 // pred_check_branch
    %103 = sbr.rel (0) target = $region37
  $region36: #{vit_forward.1} parent=0 // pred_region
    _
  $region37: #{vit_forward.1} parent=0 // pred_fallthru
    _
  // Predicated region
  $region38: #{vit_forward.1} parent=0 // pred_check
    _
  $region39: #{vit_forward.1} parent=0 // pred_check_branch
    %105 = sbr.rel (0) target = $region41
  $region40: #{vit_forward.1} parent=0 // pred_region
    _
  $region41: #{vit_forward.1} parent=0 // pred_fallthru
    _
  // Predicated region
  $region42: #{vit_forward.1} parent=0 // pred_check
    _
  $region43: #{vit_forward.1} parent=0 // pred_check_branch
    %107 = sbr.rel (0) target = $region45
  $region44: #{vit_forward.1} parent=0 // pred_region
    _
  $region45: #{vit_forward.1} parent=0 // pred_fallthru
    _
  // Predicated region
  $region46: #{vit_forward.1} parent=0 // pred_check
    _
  $region47: #{vit_forward.1} parent=0 // pred_check_branch
    %109 = sbr.rel (0) target = $region49
  $region48: #{vit_forward.1} parent=0 // pred_region
    _
  $region49: #{vit_forward.1} parent=0 // pred_fallthru
    _
  // Predicated region
  $region50: #{vit_forward.1} parent=0 // pred_check
    _
  $region51: #{vit_forward.1} parent=0 // pred_check_branch
    %111 = sbr.rel (0) target = $region53
  $region52: #{vit_forward.1} parent=0 // pred_region
    _
  $region53: #{vit_forward.1} parent=0 // pred_fallthru
    _
  // Predicated region
  $region54: #{vit_forward.1} parent=0 // pred_check
    _
  $region55: #{vit_forward.1} parent=0 // pred_check_branch
    %113 = sbr.rel (0) target = $region57
  $region56: #{vit_forward.1} parent=0 // pred_region
    _
  $region57: #{vit_forward.1} parent=0 // pred_fallthru
    _
  // Predicated region
  $region58: #{vit_forward.1} parent=0 // pred_check
    _
  $region59: #{vit_forward.1} parent=0 // pred_check_branch
    %115 = sbr.rel (0) target = $region61
  $region60: #{vit_forward.1} parent=0 // pred_region
    _
  $region61: #{vit_forward.1} parent=0 // pred_fallthru
    _
  // Predicated region
  $region62: #{vit_forward.1} parent=0 // pred_check
    _
  $region63: #{vit_forward.1} parent=0 // pred_check_branch
    %117 = sbr.rel (0) target = $region65
  $region64: #{vit_forward.1} parent=0 // pred_region
    _
  $region65: #{vit_forward.1} parent=0 // pred_fallthru
    _
  // Predicated region
  $region66: #{vit_forward.1} parent=0 // pred_check
    _
  $region67: #{vit_forward.1} parent=0 // pred_check_branch
    %119 = sbr.rel (0) target = $region69
  $region68: #{vit_forward.1} parent=0 // pred_region
    _
  $region69: #{vit_forward.1} parent=0 // pred_fallthru
    _
  // Predicated region
  $region70: #{vit_forward.1} parent=0 // pred_check
    _
  $region71: #{vit_forward.1} parent=0 // pred_check_branch
    %121 = sbr.rel (0) target = $region73
  $region72: #{vit_forward.1} parent=0 // pred_region
    _
  $region73: #{vit_forward.1} parent=0 // pred_fallthru
    _
  // Predicated region
  $region74: #{vit_forward.1} parent=0 // pred_check
    _
  $region75: #{vit_forward.1} parent=0 // pred_check_branch
    %123 = sbr.rel (0) target = $region77
  $region76: #{vit_forward.1} parent=0 // pred_region
    _
  $region77: #{vit_forward.1} parent=0 // pred_fallthru
    _
  // Predicated region
  $region78: #{vit_forward.1} parent=0 // pred_check
    _
  $region79: #{vit_forward.1} parent=0 // pred_check_branch
    %125 = sbr.rel (0) target = $region81
  $region80: #{vit_forward.1} parent=0 // pred_region
    _
  $region81: #{vit_forward.1} parent=0 // pred_fallthru
    _
  // Predicated region
  $region82: #{vit_forward.1} parent=0 // pred_check
    _
  $region83: #{vit_forward.1} parent=0 // pred_check_branch
    %127 = sbr.rel (0) target = $region85
  $region84: #{vit_forward.1} parent=0 // pred_region
    _
  $region85: #{vit_forward.1} parent=0 // pred_fallthru
    _
  // Predicated region
  $region86: #{vit_forward.1} parent=0 // pred_check
    _
  $region87: #{vit_forward.1} parent=0 // pred_check_branch
    %129 = sbr.rel (0) target = $region89
  $region88: #{vit_forward.1} parent=0 // pred_region
    _
  $region89: #{vit_forward.1} parent=0 // pred_fallthru
    _
  // Predicated region
  $region90: #{vit_forward.1} parent=0 // pred_check
    _
  $region91: #{vit_forward.1} parent=0 // pred_check_branch
    %131 = sbr.rel (0) target = $region93
  $region92: #{vit_forward.1} parent=0 // pred_region
    _
  $region93: #{vit_forward.1} parent=0 // pred_fallthru
    _
  // Predicated region
  $region94: #{vit_forward.1} parent=0 // pred_check
    _
  $region95: #{vit_forward.1} parent=0 // pred_check_branch
    %133 = sbr.rel (0) target = $region97
  $region96: #{vit_forward.1} parent=0 // pred_region
    _
  $region97: #{vit_forward.1} parent=0 // pred_fallthru
    _
  // Predicated region
  $region98: #{vit_forward.1} parent=0 // pred_check
    _
  $region99: #{vit_forward.1} parent=0 // pred_check_branch
    %135 = sbr.rel (0) target = $region101
  $region100: #{vit_forward.1} parent=0 // pred_region
    _
  $region101: #{vit_forward.1} parent=0 // pred_fallthru
    _
  // Predicated region
  $region102: #{vit_forward.1} parent=0 // pred_check
    _
  $region103: #{vit_forward.1} parent=0 // pred_check_branch
    %137 = sbr.rel (0) target = $region105
  $region104: #{vit_forward.1} parent=0 // pred_region
    _
  $region105: #{vit_forward.1} parent=0 // pred_fallthru
    _
  // Predicated region
  $region106: #{vit_forward.1} parent=0 // pred_check
    _
  $region107: #{vit_forward.1} parent=0 // pred_check_branch
    %139 = sbr.rel (0) target = $region109
  $region108: #{vit_forward.1} parent=0 // pred_region
    _
  $region109: #{vit_forward.1} parent=0 // pred_fallthru
    _
  // Predicated region
  $region110: #{vit_forward.1} parent=0 // pred_check
    _
  $region111: #{vit_forward.1} parent=0 // pred_check_branch
    %141 = sbr.rel (0) target = $region113
  $region112: #{vit_forward.1} parent=0 // pred_region
    _
  $region113: #{vit_forward.1} parent=0 // pred_fallthru
    _
  // Predicated region
  $region114: #{vit_forward.1} parent=0 // pred_check
    _
  $region115: #{vit_forward.1} parent=0 // pred_check_branch
    %143 = sbr.rel (0) target = $region117
  $region116: #{vit_forward.1} parent=0 // pred_region
    _
  $region117: #{vit_forward.1} parent=0 // pred_fallthru
    _
  // Predicated region
  $region118: #{vit_forward.1} parent=0 // pred_check
    _
  $region119: #{vit_forward.1} parent=0 // pred_check_branch
    %145 = sbr.rel (0) target = $region121
  $region120: #{vit_forward.1} parent=0 // pred_region
    _
  $region121: #{vit_forward.1} parent=0 // pred_fallthru
    _
  // Predicated region
  $region122: #{vit_forward.1} parent=0 // pred_check
    _
  $region123: #{vit_forward.1} parent=0 // pred_check_branch
    %147 = sbr.rel (0) target = $region125
  $region124: #{vit_forward.1} parent=0 // pred_region
    _
  $region125: #{vit_forward.1} parent=0 // pred_fallthru
    _
  // Predicated region
  $region126: #{vit_forward.1} parent=0 // pred_check
    _
  $region127: #{vit_forward.1} parent=0 // pred_check_branch
    %149 = sbr.rel (0) target = $region129
  $region128: #{vit_forward.1} parent=0 // pred_region
    _
  $region129: #{vit_forward.1} parent=0 // pred_fallthru
    _
  // Predicated region
  $region130: #{vit_forward.1} parent=0 // pred_check
    _
  $region131: #{vit_forward.1} parent=0 // pred_check_branch
    %151 = sbr.rel (0) target = $region133
  $region132: #{vit_forward.1} parent=0 // pred_region
    _
  $region133: #{vit_forward.1} parent=0 // pred_fallthru
    _
  // Predicated region
  $region134: #{vit_forward.1} parent=0 // pred_check
    _
  $region135: #{vit_forward.1} parent=0 // pred_check_branch
    %153 = sbr.rel (0) target = $region137
  $region136: #{vit_forward.1} parent=0 // pred_region
    _
  $region137: #{vit_forward.1} parent=0 // pred_fallthru
    _
  // Predicated region
  $region138: #{vit_forward.1} parent=0 // pred_check
    _
  $region139: #{vit_forward.1} parent=0 // pred_check_branch
    %155 = sbr.rel (0) target = $region141
  $region140: #{vit_forward.1} parent=0 // pred_region
    _
  $region141: #{vit_forward.1} parent=0 // pred_fallthru
    _
  // Predicated region
  $region142: #{vit_forward.1} parent=0 // pred_check
    _
  $region143: #{vit_forward.1} parent=0 // pred_check_branch
    %157 = sbr.rel (0) target = $region145
  $region144: #{vit_forward.1} parent=0 // pred_region
    _
  $region145: #{vit_forward.1} parent=0 // pred_fallthru
    _
  // Predicated region
  $region146: #{vit_forward.1} parent=0 // pred_check
    _
  $region147: #{vit_forward.1} parent=0 // pred_check_branch
    %159 = sbr.rel (0) target = $region149
  $region148: #{vit_forward.1} parent=0 // pred_region
    _
  $region149: #{vit_forward.1} parent=0 // pred_fallthru
    _
  // Predicated region
  $region150: #{vit_forward.1} parent=0 // pred_check
    _
  $region151: #{vit_forward.1} parent=0 // pred_check_branch
    %161 = sbr.rel (0) target = $region153
  $region152: #{vit_forward.1} parent=0 // pred_region
    _
  $region153: #{vit_forward.1} parent=0 // pred_fallthru
    _
  // Predicated region
  $region154: #{vit_forward.1} parent=0 // pred_check
    _
  $region155: #{vit_forward.1} parent=0 // pred_check_branch
    %163 = sbr.rel (0) target = $region157
  $region156: #{vit_forward.1} parent=0 // pred_region
    _
  $region157: #{vit_forward.1} parent=0 // pred_fallthru
    _
  // Predicated region
  $region158: #{vit_forward.1} parent=0 // pred_check
    _
  $region159: #{vit_forward.1} parent=0 // pred_check_branch
    %165 = sbr.rel (0) target = $region161
  $region160: #{vit_forward.1} parent=0 // pred_region
    _
  $region161: #{vit_forward.1} parent=0 // pred_fallthru
    _
  %v166 = vld [vmem:[%s1] sm:$0xff]
  %v167 = vld [vmem:[%s1 + $0x8] sm:$0xff]
  %v168 = vld [vmem:[%s1 + $0x10] sm:$0xff]
  %v169 = vld [vmem:[%s1 + $0x18] sm:$0xff]
  %v170 = vld [vmem:[%s1 + $0x20] sm:$0xff]
  %v171 = vld [vmem:[%s1 + $0x28] sm:$0xff]
  %v172 = vld [vmem:[%s1 + $0x30] sm:$0x3]
  %v173 = vld [vmem:[%s1 + $0x38] sm:$0x3]
  %v174 = vld [vmem:[%s1 + $0x40] sm:$0x3]
  %v175 = vld [vmem:[%s1 + $0x48] sm:$0x3]
  %v176 = vld [vmem:[%s1 + $0x50] sm:$0x3]
  %v177 = vld [vmem:[%s1 + $0x58] sm:$0x3]
  %v178 = vld [vmem:[%s3] sm:$0xff]
  %v179 = vld [vmem:[%s3 + $0x8] sm:$0xff]
  %v180 = vld [vmem:[%s3 + $0x10] sm:$0xff]
  %v181 = vld [vmem:[%s3 + $0x18] sm:$0xff]
  %v182 = vld [vmem:[%s3 + $0x20] sm:$0xff]
  %v183 = vld [vmem:[%s3 + $0x28] sm:$0xff]
  %v184 = vld [vmem:[%s3 + $0x30] sm:$0xff]
  %v185 = vld [vmem:[%s3 + $0x38] sm:$0xff]
  %v186 = vld [vmem:[%s3 + $0x40] sm:$0xff]
  %v187 = vld [vmem:[%s3 + $0x48] sm:$0xff]
  %v188 = vld [vmem:[%s3 + $0x50] sm:$0xff]
  %v189 = vld [vmem:[%s3 + $0x58] sm:$0xff]
  %v190 = vld [vmem:[%s3 + $0x60] sm:$0xff]
  %v191 = vld [vmem:[%s3 + $0x68] sm:$0xff]
  %v192 = vld [vmem:[%s3 + $0x70] sm:$0xff]
  %v193 = vld [vmem:[%s3 + $0x78] sm:$0xff]
  %v194 = vld [vmem:[%s3 + $0x80] sm:$0xff]
  %v195 = vld [vmem:[%s3 + $0x88] sm:$0xff]
  %v196 = vld [vmem:[%s3 + $0x90] sm:$0xff]
  %v197 = vld [vmem:[%s3 + $0x98] sm:$0xff]
  %v198 = vld [vmem:[%s3 + $0xa0] sm:$0xff]
  %v199 = vld [vmem:[%s3 + $0xa8] sm:$0xff]
  %v200 = vld [vmem:[%s3 + $0xb0] sm:$0xff]
  %v201 = vld [vmem:[%s3 + $0xb8] sm:$0xff]
  %v202 = vld [vmem:[%s3 + $0xc0] sm:$0xff]
  %v203 = vld [vmem:[%s3 + $0xc8] sm:$0xff]
  %v204 = vld [vmem:[%s3 + $0xd0] sm:$0xff]
  %v205 = vld [vmem:[%s3 + $0xd8] sm:$0xff]
  %v206 = vld [vmem:[%s3 + $0xe0] sm:$0xff]
  %v207 = vld [vmem:[%s3 + $0xe8] sm:$0xff]
  %v208 = vld [vmem:[%s3 + $0xf0] sm:$0xff]
  %v209 = vld [vmem:[%s3 + $0xf8] sm:$0xff]
  %v210 = vld [vmem:[%s3 + $0x100] sm:$0xff]
  %v211 = vld [vmem:[%s3 + $0x108] sm:$0xff]
  %v212 = vld [vmem:[%s3 + $0x110] sm:$0xff]
  %v213 = vld [vmem:[%s3 + $0x118] sm:$0xff]
  %v214 = vld [vmem:[%s3 + $0x120] sm:$0xff]
  %v215 = vld [vmem:[%s3 + $0x128] sm:$0xff]
  %v216 = vld [vmem:[%s3 + $0x130] sm:$0xff]
  %v217 = vld [vmem:[%s3 + $0x138] sm:$0xff]
  %v218 = vld [vmem:[%s3 + $0x140] sm:$0xff]
  %v219 = vld [vmem:[%s3 + $0x148] sm:$0xff]
  %v220 = vld [vmem:[%s3 + $0x150] sm:$0xff]
  %v221 = vld [vmem:[%s3 + $0x158] sm:$0xff]
  %v222 = vld [vmem:[%s3 + $0x160] sm:$0xff]
  %v223 = vld [vmem:[%s3 + $0x168] sm:$0xff]
  %v224 = vld [vmem:[%s3 + $0x170] sm:$0xff]
  %v225 = vld [vmem:[%s3 + $0x178] sm:$0xff]
  %v226 = vld [vmem:[%s3 + $0x180] sm:$0xff]
  %v227 = vld [vmem:[%s3 + $0x188] sm:$0xff]
  %v228 = vld [vmem:[%s3 + $0x190] sm:$0xff]
  %v229 = vld [vmem:[%s3 + $0x198] sm:$0xff]
  %v230 = vld [vmem:[%s3 + $0x1a0] sm:$0xff]
  %v231 = vld [vmem:[%s3 + $0x1a8] sm:$0xff]
  %v232 = vld [vmem:[%s3 + $0x1b0] sm:$0xff]
  %v233 = vld [vmem:[%s3 + $0x1b8] sm:$0xff]
  %v234 = vld [vmem:[%s3 + $0x1c0] sm:$0xff]
  %v235 = vld [vmem:[%s3 + $0x1c8] sm:$0xff]
  %v236 = vld [vmem:[%s3 + $0x1d0] sm:$0xff]
  %v237 = vld [vmem:[%s3 + $0x1d8] sm:$0xff]
  %v238 = vld [vmem:[%s3 + $0x1e0] sm:$0xff]
  %v239 = vld [vmem:[%s3 + $0x1e8] sm:$0xff]
  %v240 = vld [vmem:[%s3 + $0x1f0] sm:$0xff]
  %v241 = vld [vmem:[%s3 + $0x1f8] sm:$0xff]
  %v242 = vld [vmem:[%s3 + $0x200] sm:$0xff]
  %v243 = vld [vmem:[%s3 + $0x208] sm:$0xff]
  %v244 = vld [vmem:[%s3 + $0x210] sm:$0xff]
  %v245 = vld [vmem:[%s3 + $0x218] sm:$0xff]
  %v246 = vld [vmem:[%s3 + $0x220] sm:$0xff]
  %v247 = vld [vmem:[%s3 + $0x228] sm:$0xff]
  %v248 = vld [vmem:[%s3 + $0x230] sm:$0xff]
  %v249 = vld [vmem:[%s3 + $0x238] sm:$0xff]
  %v250 = vld [vmem:[%s3 + $0x240] sm:$0xff]
  %v251 = vld [vmem:[%s3 + $0x248] sm:$0xff]
  %v252 = vld [vmem:[%s3 + $0x250] sm:$0xff]
  %v253 = vld [vmem:[%s3 + $0x258] sm:$0xff]
  %v254 = vld [vmem:[%s3 + $0x260] sm:$0xff]
  %v255 = vld [vmem:[%s3 + $0x268] sm:$0xff]
  %v256 = vld [vmem:[%s3 + $0x270] sm:$0xff]
  %v257 = vld [vmem:[%s3 + $0x278] sm:$0xff]
  %v258 = vld [vmem:[%s3 + $0x280] sm:$0xff]
  %v259 = vld [vmem:[%s3 + $0x288] sm:$0xff]
  %v260 = vld [vmem:[%s3 + $0x290] sm:$0xff]
  %v261 = vld [vmem:[%s3 + $0x298] sm:$0xff]
  %v262 = vld [vmem:[%s3 + $0x2a0] sm:$0xff]
  %v263 = vld [vmem:[%s3 + $0x2a8] sm:$0xff]
  %v264 = vld [vmem:[%s3 + $0x2b0] sm:$0xff]
  %v265 = vld [vmem:[%s3 + $0x2b8] sm:$0xff]
  %v266 = vld [vmem:[%s3 + $0x2c0] sm:$0xff]
  %v267 = vld [vmem:[%s3 + $0x2c8] sm:$0xff]
  %v268 = vld [vmem:[%s3 + $0x2d0] sm:$0xff]
  %v269 = vld [vmem:[%s3 + $0x2d8] sm:$0xff]
  %v270 = vld [vmem:[%s3 + $0x2e0] sm:$0xff]
  %v271 = vld [vmem:[%s3 + $0x2e8] sm:$0xff]
  %v272 = vld [vmem:[%s3 + $0x2f0] sm:$0xff]
  %v273 = vld [vmem:[%s3 + $0x2f8] sm:$0xff]
  %v274 = vld [vmem:[%s5] sm:$0xff]
  %v275 = vld [vmem:[%s5 + $0x8] sm:$0x3]
  %276 = vmatpush.msra.mxu0 %v193
  %277 = vmatpush.msra.mxu0 %v192
  %278 = vmatpush.msra.mxu0 %v191
  %279 = vmatpush.msra.mxu0 %v190
  %280 = vmatpush.msra.mxu0 %v189
  %281 = vmatpush.msra.mxu0 %v188
  %282 = vmatpush.msra.mxu0 %v187
  %283 = vmatpush.msra.mxu0 %v186
  %284 = vmatpush.msra.mxu0 %v185
  %285 = vmatpush.msra.mxu0 %v184
  %286 = vmatpush.msra.mxu0 %v183
  %287 = vmatpush.msra.mxu0 %v182
  %288 = vmatpush.msra.mxu0 %v181
  %289 = vmatpush.msra.mxu0 %v180
  %290 = vmatpush.msra.mxu0 %v179
  %291 = vmatpush.msra.mxu0 %v178
  %292 = vmatmul.f32.gmra.mxu0 %v166
  %v293 = vpop.f32.mrf.mxu0
  %v294 = vadd.f32 %v274, %v293
  %295 = vmatmul.f32.gmra.mxu0 %v172
  %v296 = vpop.f32.mrf.mxu0
  %v297 = vadd.f32 %v275, %v296
  %298 = vdwg.mxu0
  %299 = vmatpush.msra.mxu0 %v209
  %300 = vmatpush.msra.mxu0 %v208
  %301 = vmatpush.msra.mxu0 %v207
  %302 = vmatpush.msra.mxu0 %v206
  %303 = vmatpush.msra.mxu0 %v205
  %304 = vmatpush.msra.mxu0 %v204
  %305 = vmatpush.msra.mxu0 %v203
  %306 = vmatpush.msra.mxu0 %v202
  %307 = vmatpush.msra.mxu0 %v201
  %308 = vmatpush.msra.mxu0 %v200
  %309 = vmatpush.msra.mxu0 %v199
  %310 = vmatpush.msra.mxu0 %v198
  %311 = vmatpush.msra.mxu0 %v197
  %312 = vmatpush.msra.mxu0 %v196
  %313 = vmatpush.msra.mxu0 %v195
  %314 = vmatpush.msra.mxu0 %v194
  %315 = vmatmul.f32.gmra.mxu0 %v167
  %v316 = vpop.f32.mrf.mxu0
  %v317 = vadd.f32 %v294, %v316
  %318 = vmatmul.f32.gmra.mxu0 %v173
  %v319 = vpop.f32.mrf.mxu0
  %v320 = vadd.f32 %v297, %v319
  %321 = vdwg.mxu0
  %322 = vmatpush.msra.mxu0 %v225
  %323 = vmatpush.msra.mxu0 %v224
  %324 = vmatpush.msra.mxu0 %v223
  %325 = vmatpush.msra.mxu0 %v222
  %326 = vmatpush.msra.mxu0 %v221
  %327 = vmatpush.msra.mxu0 %v220
  %328 = vmatpush.msra.mxu0 %v219
  %329 = vmatpush.msra.mxu0 %v218
  %330 = vmatpush.msra.mxu0 %v217
  %331 = vmatpush.msra.mxu0 %v216
  %332 = vmatpush.msra.mxu0 %v215
  %333 = vmatpush.msra.mxu0 %v214
  %334 = vmatpush.msra.mxu0 %v213
  %335 = vmatpush.msra.mxu0 %v212
  %336 = vmatpush.msra.mxu0 %v211
  %337 = vmatpush.msra.mxu0 %v210
  %338 = vmatmul.f32.gmra.mxu0 %v168
  %v339 = vpop.f32.mrf.mxu0
  %v340 = vadd.f32 %v317, %v339
  %341 = vmatmul.f32.gmra.mxu0 %v174
  %v342 = vpop.f32.mrf.mxu0
  %v343 = vadd.f32 %v320, %v342
  %344 = vdwg.mxu0
  %345 = vmatpush.msra.mxu0 %v241
  %346 = vmatpush.msra.mxu0 %v240
  %347 = vmatpush.msra.mxu0 %v239
  %348 = vmatpush.msra.mxu0 %v238
  %349 = vmatpush.msra.mxu0 %v237
  %350 = vmatpush.msra.mxu0 %v236
  %351 = vmatpush.msra.mxu0 %v235
  %352 = vmatpush.msra.mxu0 %v234
  %353 = vmatpush.msra.mxu0 %v233
  %354 = vmatpush.msra.mxu0 %v232
  %355 = vmatpush.msra.mxu0 %v231
  %356 = vmatpush.msra.mxu0 %v230
  %357 = vmatpush.msra.mxu0 %v229
  %358 = vmatpush.msra.mxu0 %v228
  %359 = vmatpush.msra.mxu0 %v227
  %360 = vmatpush.msra.mxu0 %v226
  %361 = vmatmul.f32.gmra.mxu0 %v169
  %v362 = vpop.f32.mrf.mxu0
  %v363 = vadd.f32 %v340, %v362
  %364 = vmatmul.f32.gmra.mxu0 %v175
  %v365 = vpop.f32.mrf.mxu0
  %v366 = vadd.f32 %v343, %v365
  %367 = vdwg.mxu0
  %368 = vmatpush.msra.mxu0 %v257
  %369 = vmatpush.msra.mxu0 %v256
  %370 = vmatpush.msra.mxu0 %v255
  %371 = vmatpush.msra.mxu0 %v254
  %372 = vmatpush.msra.mxu0 %v253
  %373 = vmatpush.msra.mxu0 %v252
  %374 = vmatpush.msra.mxu0 %v251
  %375 = vmatpush.msra.mxu0 %v250
  %376 = vmatpush.msra.mxu0 %v249
  %377 = vmatpush.msra.mxu0 %v248
  %378 = vmatpush.msra.mxu0 %v247
  %379 = vmatpush.msra.mxu0 %v246
  %380 = vmatpush.msra.mxu0 %v245
  %381 = vmatpush.msra.mxu0 %v244
  %382 = vmatpush.msra.mxu0 %v243
  %383 = vmatpush.msra.mxu0 %v242
  %384 = vmatmul.f32.gmra.mxu0 %v170
  %v385 = vpop.f32.mrf.mxu0
  %v386 = vadd.f32 %v363, %v385
  %387 = vmatmul.f32.gmra.mxu0 %v176
  %v388 = vpop.f32.mrf.mxu0
  %v389 = vadd.f32 %v366, %v388
  %390 = vdwg.mxu0
  %391 = vmatpush.msra.mxu0 %v273
  %392 = vmatpush.msra.mxu0 %v272
  %393 = vmatpush.msra.mxu0 %v271
  %394 = vmatpush.msra.mxu0 %v270
  %395 = vmatpush.msra.mxu0 %v269
  %396 = vmatpush.msra.mxu0 %v268
  %397 = vmatpush.msra.mxu0 %v267
  %398 = vmatpush.msra.mxu0 %v266
  %399 = vmatpush.msra.mxu0 %v265
  %400 = vmatpush.msra.mxu0 %v264
  %401 = vmatpush.msra.mxu0 %v263
  %402 = vmatpush.msra.mxu0 %v262
  %403 = vmatpush.msra.mxu0 %v261
  %404 = vmatpush.msra.mxu0 %v260
  %405 = vmatpush.msra.mxu0 %v259
  %406 = vmatpush.msra.mxu0 %v258
  %407 = vmatmul.f32.gmra.mxu0 %v171
  %v408 = vpop.f32.mrf.mxu0
  %v409 = vadd.f32 %v386, %v408
  %410 = vmatmul.f32.gmra.mxu0 %v177
  %v411 = vpop.f32.mrf.mxu0
  %v412 = vadd.f32 %v389, %v411
  %413 = vdwg.mxu0
  %v414 = vld [vmem:[%s7] sm:$0xff]
  %v415 = vld [vmem:[%s7 + $0x8] sm:$0x3]
  %v416 = vld [vmem:[%s9] sm:$0x1]
  %v417 = vld [vmem:[%s11] sm:$0x1]
  %vm418 = vcmask 523264
  %v419 = vsel %vm418, %v409, 0.0
  %420 = vadd.xlane.f32.xlu0 %v419
  %v421 = vpop.xlane.xlu0 %420
  %vm422 = vcmask 517120
  %v423 = vsel %vm422, %v412, 0.0
  %424 = vadd.xlane.f32.xlu0 %v423
  %v425 = vpop.xlane.xlu0 %424
  %v426 = vrcp.pop 64.0
  %v427 = vmul.f32 64.0, %v426
  %v428 = vsub.f32 1.0, %v427
  %v429 = vmul.f32 %v426, %v428
  %v430 = vadd.f32 %v426, %v429
  %vm431 = vweird.f32 %v426
  %v432 = vsel %vm431, %v426, %v430
  %v433 = vmul.f32 %v421, %v432
  %v434 = vmul.f32 %v425, %v432
  %v435 = vsub.f32 %v409, %v433
  %v436 = vsub.f32 %v412, %v434
  %v437 = vmul.f32 %v435, %v435
  %v438 = vmul.f32 %v436, %v436
  %v439 = vsel %vm418, %v437, 0.0
  %440 = vadd.xlane.f32.xlu0 %v439
  %v441 = vpop.xlane.xlu0 %440
  %v442 = vsel %vm422, %v438, 0.0
  %443 = vadd.xlane.f32.xlu0 %v442
  %v444 = vpop.xlane.xlu0 %443
  %v445 = vmul.f32 %v441, %v432
  %v446 = vmul.f32 %v444, %v432
  %v447 = vadd.f32 %v445, 1e-06
  %v448 = vadd.f32 %v446, 1e-06
  %v449 = vrsqrt.pop %v447
  %v450 = vmul.f32 %v449, %v447
  %v451 = vmul.f32 %v450, %v449
  %v452 = vmul.f32 0.5, %v451
  %v453 = vsub.f32 1.5, %v452
  %v454 = vmul.f32 %v449, %v453
  %vm455 = vweird.f32 %v447
  %vm456 = vweird.f32 %v449
  %vm457 = vmor %vm455, %vm456
  %v458 = vsel %vm457, %v449, %v454
  %v459 = vrsqrt.pop %v448
  %v460 = vmul.f32 %v459, %v448
  %v461 = vmul.f32 %v460, %v459
  %v462 = vmul.f32 0.5, %v461
  %v463 = vsub.f32 1.5, %v462
  %v464 = vmul.f32 %v459, %v463
  %vm465 = vweird.f32 %v448
  %vm466 = vweird.f32 %v459
  %vm467 = vmor %vm465, %vm466
  %v468 = vsel %vm467, %v459, %v464
  %v469 = vmul.f32 %v435, %v458
  %v470 = vmul.f32 %v436, %v468
  %v472 = vperm.slane %v416, 0
  %v474 = vmul.f32 %v469, %v472
  %v475 = vmul.f32 %v470, %v472
  %v477 = vperm.slane %v417, 0
  %v479 = vadd.f32 %v474, %v477
  %v480 = vadd.f32 %v475, %v477
  %v481 = vld [vmem:[%s13] sm:$0xff]
  %v482 = vld [vmem:[%s13 + $0x8] sm:$0xff]
  %v483 = vld [vmem:[%s13 + $0x10] sm:$0xff]
  %v484 = vld [vmem:[%s13 + $0x18] sm:$0xff]
  %v485 = vld [vmem:[%s13 + $0x20] sm:$0xff]
  %v486 = vld [vmem:[%s13 + $0x28] sm:$0xff]
  %v487 = vld [vmem:[%s13 + $0x30] sm:$0xff]
  %v488 = vld [vmem:[%s13 + $0x38] sm:$0xff]
  %v489 = vld [vmem:[%s15] sm:$0x1]
  %v491 = vperm.slane %v489, 0
  %v494 = vsel %vm418, %v479, 0
  %v497 = vsel %vm418, %v480, 0
  %499 = vmatpush.msra.mxu0 0.0
  %500 = vmatpush.msra.mxu0 0.0
  %501 = vmatpush.msra.mxu0 0.0
  %502 = vmatpush.msra.mxu0 0.0
  %503 = vmatpush.msra.mxu0 0.0
  %504 = vmatpush.msra.mxu0 0.0
  %505 = vmatpush.msra.mxu0 0.0
  %506 = vmatpush.msra.mxu0 0.0
  %507 = vmatpush.msra.mxu0 %v488
  %508 = vmatpush.msra.mxu0 %v487
  %509 = vmatpush.msra.mxu0 %v486
  %510 = vmatpush.msra.mxu0 %v485
  %511 = vmatpush.msra.mxu0 %v484
  %512 = vmatpush.msra.mxu0 %v483
  %513 = vmatpush.msra.mxu0 %v482
  %514 = vmatpush.msra.mxu0 %v481
  %515 = vmatmul.f32.gmra.mxu0 %v494
  %v516 = vpop.f32.mrf.mxu0
  %v517 = vadd.f32 %v491, %v516
  %518 = vmatmul.f32.gmra.mxu0 %v497
  %v519 = vpop.f32.mrf.mxu0
  %v520 = vadd.f32 %v491, %v519
  %521 = vdwg.mxu0
  %v522 = vld [vmem:[%s17] sm:$0xff]
  %v523 = vld [vmem:[%s17 + $0x8] sm:$0xff]
  %v524 = vld [vmem:[%s17 + $0x10] sm:$0xff]
  %v525 = vld [vmem:[%s17 + $0x18] sm:$0xff]
  %v526 = vld [vmem:[%s17 + $0x20] sm:$0xff]
  %v527 = vld [vmem:[%s17 + $0x28] sm:$0xff]
  %v528 = vld [vmem:[%s17 + $0x30] sm:$0xff]
  %v529 = vld [vmem:[%s17 + $0x38] sm:$0xff]
  %v530 = vld [vmem:[%s19] sm:$0x1]
  %v532 = vperm.slane %v530, 0
  %534 = vmatpush.msra.mxu0 0.0
  %535 = vmatpush.msra.mxu0 0.0
  %536 = vmatpush.msra.mxu0 0.0
  %537 = vmatpush.msra.mxu0 0.0
  %538 = vmatpush.msra.mxu0 0.0
  %539 = vmatpush.msra.mxu0 0.0
  %540 = vmatpush.msra.mxu0 0.0
  %541 = vmatpush.msra.mxu0 0.0
  %542 = vmatpush.msra.mxu0 %v529
  %543 = vmatpush.msra.mxu0 %v528
  %544 = vmatpush.msra.mxu0 %v527
  %545 = vmatpush.msra.mxu0 %v526
  %546 = vmatpush.msra.mxu0 %v525
  %547 = vmatpush.msra.mxu0 %v524
  %548 = vmatpush.msra.mxu0 %v523
  %549 = vmatpush.msra.mxu0 %v522
  %550 = vmatmul.f32.gmra.mxu0 %v494
  %v551 = vpop.f32.mrf.mxu0
  %v552 = vadd.f32 %v532, %v551
  %553 = vmatmul.f32.gmra.mxu0 %v497
  %v554 = vpop.f32.mrf.mxu0
  %v555 = vadd.f32 %v532, %v554
  %556 = vdwg.mxu0
  %v557 = vld [vmem:[%s21] sm:$0xff]
  %v558 = vld [vmem:[%s21 + $0x8] sm:$0xff]
  %v559 = vld [vmem:[%s21 + $0x10] sm:$0xff]
  %v560 = vld [vmem:[%s21 + $0x18] sm:$0xff]
  %v561 = vld [vmem:[%s21 + $0x20] sm:$0xff]
  %v562 = vld [vmem:[%s21 + $0x28] sm:$0xff]
  %v563 = vld [vmem:[%s21 + $0x30] sm:$0xff]
  %v564 = vld [vmem:[%s21 + $0x38] sm:$0xff]
  %v565 = vld [vmem:[%s23] sm:$0x1]
  %v567 = vperm.slane %v565, 0
  %569 = vmatpush.msra.mxu0 0.0
  %570 = vmatpush.msra.mxu0 0.0
  %571 = vmatpush.msra.mxu0 0.0
  %572 = vmatpush.msra.mxu0 0.0
  %573 = vmatpush.msra.mxu0 0.0
  %574 = vmatpush.msra.mxu0 0.0
  %575 = vmatpush.msra.mxu0 0.0
  %576 = vmatpush.msra.mxu0 0.0
  %577 = vmatpush.msra.mxu0 %v564
  %578 = vmatpush.msra.mxu0 %v563
  %579 = vmatpush.msra.mxu0 %v562
  %580 = vmatpush.msra.mxu0 %v561
  %581 = vmatpush.msra.mxu0 %v560
  %582 = vmatpush.msra.mxu0 %v559
  %583 = vmatpush.msra.mxu0 %v558
  %584 = vmatpush.msra.mxu0 %v557
  %585 = vmatmul.f32.gmra.mxu0 %v494
  %v586 = vpop.f32.mrf.mxu0
  %v587 = vadd.f32 %v567, %v586
  %588 = vmatmul.f32.gmra.mxu0 %v497
  %v589 = vpop.f32.mrf.mxu0
  %v590 = vadd.f32 %v567, %v589
  %591 = vdwg.mxu0
  %v592 = vld [vmem:[%s25] sm:$0xff]
  %v593 = vld [vmem:[%s25 + $0x8] sm:$0xff]
  %v594 = vld [vmem:[%s25 + $0x10] sm:$0xff]
  %v595 = vld [vmem:[%s25 + $0x18] sm:$0xff]
  %v596 = vld [vmem:[%s25 + $0x20] sm:$0xff]
  %v597 = vld [vmem:[%s25 + $0x28] sm:$0xff]
  %v598 = vld [vmem:[%s25 + $0x30] sm:$0xff]
  %v599 = vld [vmem:[%s25 + $0x38] sm:$0xff]
  %vm600 = vcmask 130048
  %v602 = vsel %vm600, %v517, 0
  %v605 = vsel %vm600, %v520, 0
  %v608 = vsel %vm600, %v552, 0
  %v611 = vsel %vm600, %v555, 0
  %613 = vmatpush.xpose.msra.mxu0 0.0
  %614 = vmatpush.xpose.msra.mxu0 0.0
  %615 = vmatpush.xpose.msra.mxu0 0.0
  %616 = vmatpush.xpose.msra.mxu0 0.0
  %617 = vmatpush.xpose.msra.mxu0 0.0
  %618 = vmatpush.xpose.msra.mxu0 0.0
  %619 = vmatpush.xpose.msra.mxu0 0.0
  %620 = vmatpush.xpose.msra.mxu0 0.0
  %621 = vmatpush.xpose.msra.mxu0 0.0
  %622 = vmatpush.xpose.msra.mxu0 0.0
  %623 = vmatpush.xpose.msra.mxu0 0.0
  %624 = vmatpush.xpose.msra.mxu0 0.0
  %625 = vmatpush.xpose.msra.mxu0 0.0
  %626 = vmatpush.xpose.msra.mxu0 0.0
  %627 = vmatpush.xpose.msra.mxu0 %v611
  %628 = vmatpush.xpose.msra.mxu0 %v608
  %629 = vmatmul.f32.gmra.mxu0 %v602
  %v630 = vpop.f32.mrf.mxu0
  %v631 = vadd.f32 %v414, %v630
  %632 = vmatmul.f32.gmra.mxu0 %v605
  %v633 = vpop.f32.mrf.mxu0
  %v634 = vadd.f32 %v415, %v633
  %635 = vdwg.mxu0
  %vm636 = vcmask 80896
  %v637 = vsel %vm636, %v631, -inf
  %638 = vmax.xlane.f32.xlu0 %v637
  %v639 = vpop.xlane.xlu0 %638
  %vm640 = vcmask 74752
  %v641 = vsel %vm640, %v634, -inf
  %642 = vmax.xlane.f32.xlu0 %v641
  %v643 = vpop.xlane.xlu0 %642
  %v644 = vsub.f32 %v631, %v639
  %v645 = vsub.f32 %v634, %v643
  %v646 = vmul.f32 %v644, 1.442695
  %v647 = vpow.pop %v646
  %v648 = vmul.f32 %v645, 1.442695
  %v649 = vpow.pop %v648
  %v650 = vsel %vm636, %v647, 0.0
  %651 = vadd.xlane.f32.xlu0 %v650
  %v652 = vpop.xlane.xlu0 %651
  %v653 = vsel %vm640, %v649, 0.0
  %654 = vadd.xlane.f32.xlu0 %v653
  %v655 = vpop.xlane.xlu0 %654
  %v656 = vrcp.pop %v652
  %v657 = vrcp.pop %v655
  %v658 = vmul.f32 %v647, %v656
  %v659 = vmul.f32 %v649, %v657
  %v661 = vsel %vm636, %v658, 0
  %v664 = vsel %vm636, %v659, 0
  %vm666 = vcmask 1041408
  %v668 = vsel %vm666, %v590, 0
  %670 = vmatpush.msra.mxu0 0.0
  %671 = vmatpush.msra.mxu0 0.0
  %672 = vmatpush.msra.mxu0 0.0
  %673 = vmatpush.msra.mxu0 0.0
  %674 = vmatpush.msra.mxu0 0.0
  %675 = vmatpush.msra.mxu0 0.0
  %676 = vmatpush.msra.mxu0 0.0
  %677 = vmatpush.msra.mxu0 0.0
  %678 = vmatpush.msra.mxu0 0.0
  %679 = vmatpush.msra.mxu0 0.0
  %680 = vmatpush.msra.mxu0 0.0
  %681 = vmatpush.msra.mxu0 0.0
  %682 = vmatpush.msra.mxu0 0.0
  %683 = vmatpush.msra.mxu0 0.0
  %684 = vmatpush.msra.mxu0 %v668
  %685 = vmatpush.msra.mxu0 %v587
  %686 = vmatmul.f32.gmra.mxu0 %v661
  %v687 = vpop.f32.mrf.mxu0
  %v688 = vadd.f32 0.0, %v687
  %689 = vmatmul.f32.gmra.mxu0 %v664
  %v690 = vpop.f32.mrf.mxu0
  %v691 = vadd.f32 0.0, %v690
  %692 = vdwg.mxu0
  %693 = vrot.lane.b32.xlu0 %v517, 112
  %v694 = vpop.permute.xlu0 %693
  %695 = vrot.lane.b32.xlu0 %v520, 112
  %v696 = vpop.permute.xlu0 %695
  %697 = vrot.lane.b32.xlu0 %v552, 112
  %v698 = vpop.permute.xlu0 %697
  %699 = vrot.lane.b32.xlu0 %v555, 112
  %v700 = vpop.permute.xlu0 %699
  %v701 = vsel %vm600, %v694, 0
  %v703 = vsel %vm600, %v696, 0
  %v705 = vsel %vm600, %v698, 0
  %v707 = vsel %vm600, %v700, 0
  %709 = vmatpush.xpose.msra.mxu0 0.0
  %710 = vmatpush.xpose.msra.mxu0 0.0
  %711 = vmatpush.xpose.msra.mxu0 0.0
  %712 = vmatpush.xpose.msra.mxu0 0.0
  %713 = vmatpush.xpose.msra.mxu0 0.0
  %714 = vmatpush.xpose.msra.mxu0 0.0
  %715 = vmatpush.xpose.msra.mxu0 0.0
  %716 = vmatpush.xpose.msra.mxu0 0.0
  %717 = vmatpush.xpose.msra.mxu0 0.0
  %718 = vmatpush.xpose.msra.mxu0 0.0
  %719 = vmatpush.xpose.msra.mxu0 0.0
  %720 = vmatpush.xpose.msra.mxu0 0.0
  %721 = vmatpush.xpose.msra.mxu0 0.0
  %722 = vmatpush.xpose.msra.mxu0 0.0
  %723 = vmatpush.xpose.msra.mxu0 %v707
  %724 = vmatpush.xpose.msra.mxu0 %v705
  %725 = vmatmul.f32.gmra.mxu0 %v701
  %v726 = vpop.f32.mrf.mxu0
  %v727 = vadd.f32 %v414, %v726
  %728 = vmatmul.f32.gmra.mxu0 %v703
  %v729 = vpop.f32.mrf.mxu0
  %v730 = vadd.f32 %v415, %v729
  %731 = vdwg.mxu0
  %v732 = vsel %vm636, %v727, -inf
  %733 = vmax.xlane.f32.xlu0 %v732
  %v734 = vpop.xlane.xlu0 %733
  %v735 = vsel %vm640, %v730, -inf
  %736 = vmax.xlane.f32.xlu0 %v735
  %v737 = vpop.xlane.xlu0 %736
  %v738 = vsub.f32 %v727, %v734
  %v739 = vsub.f32 %v730, %v737
  %v740 = vmul.f32 %v738, 1.442695
  %v741 = vpow.pop %v740
  %v742 = vmul.f32 %v739, 1.442695
  %v743 = vpow.pop %v742
  %v744 = vsel %vm636, %v741, 0.0
  %745 = vadd.xlane.f32.xlu0 %v744
  %v746 = vpop.xlane.xlu0 %745
  %v747 = vsel %vm640, %v743, 0.0
  %748 = vadd.xlane.f32.xlu0 %v747
  %v749 = vpop.xlane.xlu0 %748
  %v750 = vrcp.pop %v746
  %v751 = vrcp.pop %v749
  %v752 = vmul.f32 %v741, %v750
  %v753 = vmul.f32 %v743, %v751
  %755 = vrot.lane.b32.xlu0 %v587, 112
  %v756 = vpop.permute.xlu0 %755
  %757 = vrot.lane.b32.xlu0 %v590, 112
  %v758 = vpop.permute.xlu0 %757
  %v761 = vsel %vm636, %v752, 0
  %v764 = vsel %vm636, %v753, 0
  %v766 = vsel %vm666, %v758, 0
  %768 = vmatpush.msra.mxu0 0.0
  %769 = vmatpush.msra.mxu0 0.0
  %770 = vmatpush.msra.mxu0 0.0
  %771 = vmatpush.msra.mxu0 0.0
  %772 = vmatpush.msra.mxu0 0.0
  %773 = vmatpush.msra.mxu0 0.0
  %774 = vmatpush.msra.mxu0 0.0
  %775 = vmatpush.msra.mxu0 0.0
  %776 = vmatpush.msra.mxu0 0.0
  %777 = vmatpush.msra.mxu0 0.0
  %778 = vmatpush.msra.mxu0 0.0
  %779 = vmatpush.msra.mxu0 0.0
  %780 = vmatpush.msra.mxu0 0.0
  %781 = vmatpush.msra.mxu0 0.0
  %782 = vmatpush.msra.mxu0 %v766
  %783 = vmatpush.msra.mxu0 %v756
  %784 = vmatmul.f32.gmra.mxu0 %v761
  %v785 = vpop.f32.mrf.mxu0
  %v786 = vadd.f32 0.0, %v785
  %787 = vmatmul.f32.gmra.mxu0 %v764
  %v788 = vpop.f32.mrf.mxu0
  %v789 = vadd.f32 0.0, %v788
  %790 = vdwg.mxu0
  %v792 = vsel %vm600, %v786, 0
  %v795 = vsel %vm600, %v789, 0
  %797 = vmatpush.msra.mxu0 0.0
  %798 = vmatpush.msra.mxu0 0.0
  %799 = vmatpush.msra.mxu0 0.0
  %800 = vmatpush.msra.mxu0 0.0
  %801 = vmatpush.msra.mxu0 0.0
  %802 = vmatpush.msra.mxu0 0.0
  %803 = vmatpush.msra.mxu0 0.0
  %804 = vmatpush.msra.mxu0 0.0
  %805 = vmatpush.msra.mxu0 0.0
  %806 = vmatpush.msra.mxu0 0.0
  %807 = vmatpush.msra.mxu0 0.0
  %808 = vmatpush.msra.mxu0 0.0
  %809 = vmatpush.msra.mxu0 0.0
  %810 = vmatpush.msra.mxu0 0.0
  %811 = vmatpush.msra.mxu0 %v595
  %812 = vmatpush.msra.mxu0 %v594
  %813 = vmatmul.f32.gmra.mxu0 %v792
  %v814 = vpop.f32.mrf.mxu0
  %v815 = vadd.f32 0.0, %v814
  %816 = vmatmul.f32.gmra.mxu0 %v795
  %v817 = vpop.f32.mrf.mxu0
  %v818 = vadd.f32 0.0, %v817
  %819 = vdwg.mxu0
  %v821 = vsel %vm600, %v688, 0
  %v824 = vsel %vm600, %v691, 0
  %826 = vmatpush.msra.mxu0 0.0
  %827 = vmatpush.msra.mxu0 0.0
  %828 = vmatpush.msra.mxu0 0.0
  %829 = vmatpush.msra.mxu0 0.0
  %830 = vmatpush.msra.mxu0 0.0
  %831 = vmatpush.msra.mxu0 0.0
  %832 = vmatpush.msra.mxu0 0.0
  %833 = vmatpush.msra.mxu0 0.0
  %834 = vmatpush.msra.mxu0 0.0
  %835 = vmatpush.msra.mxu0 0.0
  %836 = vmatpush.msra.mxu0 0.0
  %837 = vmatpush.msra.mxu0 0.0
  %838 = vmatpush.msra.mxu0 0.0
  %839 = vmatpush.msra.mxu0 0.0
  %840 = vmatpush.msra.mxu0 %v593
  %841 = vmatpush.msra.mxu0 %v592
  %842 = vmatmul.f32.gmra.mxu0 %v821
  %v843 = vpop.f32.mrf.mxu0
  %v844 = vadd.f32 %v815, %v843
  %845 = vmatmul.f32.gmra.mxu0 %v824
  %v846 = vpop.f32.mrf.mxu0
  %v847 = vadd.f32 %v818, %v846
  %848 = vdwg.mxu0
  %849 = vrot.lane.b32.xlu0 %v517, 96
  %v850 = vpop.permute.xlu0 %849
  %851 = vrot.lane.b32.xlu0 %v520, 96
  %v852 = vpop.permute.xlu0 %851
  %853 = vrot.lane.b32.xlu0 %v552, 96
  %v854 = vpop.permute.xlu0 %853
  %855 = vrot.lane.b32.xlu0 %v555, 96
  %v856 = vpop.permute.xlu0 %855
  %v857 = vsel %vm600, %v850, 0
  %v859 = vsel %vm600, %v852, 0
  %v861 = vsel %vm600, %v854, 0
  %v863 = vsel %vm600, %v856, 0
  %865 = vmatpush.xpose.msra.mxu0 0.0
  %866 = vmatpush.xpose.msra.mxu0 0.0
  %867 = vmatpush.xpose.msra.mxu0 0.0
  %868 = vmatpush.xpose.msra.mxu0 0.0
  %869 = vmatpush.xpose.msra.mxu0 0.0
  %870 = vmatpush.xpose.msra.mxu0 0.0
  %871 = vmatpush.xpose.msra.mxu0 0.0
  %872 = vmatpush.xpose.msra.mxu0 0.0
  %873 = vmatpush.xpose.msra.mxu0 0.0
  %874 = vmatpush.xpose.msra.mxu0 0.0
  %875 = vmatpush.xpose.msra.mxu0 0.0
  %876 = vmatpush.xpose.msra.mxu0 0.0
  %877 = vmatpush.xpose.msra.mxu0 0.0
  %878 = vmatpush.xpose.msra.mxu0 0.0
  %879 = vmatpush.xpose.msra.mxu0 %v863
  %880 = vmatpush.xpose.msra.mxu0 %v861
  %881 = vmatmul.f32.gmra.mxu0 %v857
  %v882 = vpop.f32.mrf.mxu0
  %v883 = vadd.f32 %v414, %v882
  %884 = vmatmul.f32.gmra.mxu0 %v859
  %v885 = vpop.f32.mrf.mxu0
  %v886 = vadd.f32 %v415, %v885
  %887 = vdwg.mxu0
  %v888 = vsel %vm636, %v883, -inf
  %889 = vmax.xlane.f32.xlu0 %v888
  %v890 = vpop.xlane.xlu0 %889
  %v891 = vsel %vm640, %v886, -inf
  %892 = vmax.xlane.f32.xlu0 %v891
  %v893 = vpop.xlane.xlu0 %892
  %v894 = vsub.f32 %v883, %v890
  %v895 = vsub.f32 %v886, %v893
  %v896 = vmul.f32 %v894, 1.442695
  %v897 = vpow.pop %v896
  %v898 = vmul.f32 %v895, 1.442695
  %v899 = vpow.pop %v898
  %v900 = vsel %vm636, %v897, 0.0
  %901 = vadd.xlane.f32.xlu0 %v900
  %v902 = vpop.xlane.xlu0 %901
  %v903 = vsel %vm640, %v899, 0.0
  %904 = vadd.xlane.f32.xlu0 %v903
  %v905 = vpop.xlane.xlu0 %904
  %v906 = vrcp.pop %v902
  %v907 = vrcp.pop %v905
  %v908 = vmul.f32 %v897, %v906
  %v909 = vmul.f32 %v899, %v907
  %910 = vrot.lane.b32.xlu0 %v587, 96
  %v911 = vpop.permute.xlu0 %910
  %912 = vrot.lane.b32.xlu0 %v590, 96
  %v913 = vpop.permute.xlu0 %912
  %v916 = vsel %vm636, %v908, 0
  %v919 = vsel %vm636, %v909, 0
  %v921 = vsel %vm666, %v913, 0
  %923 = vmatpush.msra.mxu0 0.0
  %924 = vmatpush.msra.mxu0 0.0
  %925 = vmatpush.msra.mxu0 0.0
  %926 = vmatpush.msra.mxu0 0.0
  %927 = vmatpush.msra.mxu0 0.0
  %928 = vmatpush.msra.mxu0 0.0
  %929 = vmatpush.msra.mxu0 0.0
  %930 = vmatpush.msra.mxu0 0.0
  %931 = vmatpush.msra.mxu0 0.0
  %932 = vmatpush.msra.mxu0 0.0
  %933 = vmatpush.msra.mxu0 0.0
  %934 = vmatpush.msra.mxu0 0.0
  %935 = vmatpush.msra.mxu0 0.0
  %936 = vmatpush.msra.mxu0 0.0
  %937 = vmatpush.msra.mxu0 %v921
  %938 = vmatpush.msra.mxu0 %v911
  %939 = vmatmul.f32.gmra.mxu0 %v916
  %v940 = vpop.f32.mrf.mxu0
  %v941 = vadd.f32 0.0, %v940
  %942 = vmatmul.f32.gmra.mxu0 %v919
  %v943 = vpop.f32.mrf.mxu0
  %v944 = vadd.f32 0.0, %v943
  %945 = vdwg.mxu0
  %v947 = vsel %vm600, %v941, 0
  %v950 = vsel %vm600, %v944, 0
  %952 = vmatpush.msra.mxu0 0.0
  %953 = vmatpush.msra.mxu0 0.0
  %954 = vmatpush.msra.mxu0 0.0
  %955 = vmatpush.msra.mxu0 0.0
  %956 = vmatpush.msra.mxu0 0.0
  %957 = vmatpush.msra.mxu0 0.0
  %958 = vmatpush.msra.mxu0 0.0
  %959 = vmatpush.msra.mxu0 0.0
  %960 = vmatpush.msra.mxu0 0.0
  %961 = vmatpush.msra.mxu0 0.0
  %962 = vmatpush.msra.mxu0 0.0
  %963 = vmatpush.msra.mxu0 0.0
  %964 = vmatpush.msra.mxu0 0.0
  %965 = vmatpush.msra.mxu0 0.0
  %966 = vmatpush.msra.mxu0 %v597
  %967 = vmatpush.msra.mxu0 %v596
  %968 = vmatmul.f32.gmra.mxu0 %v947
  %v969 = vpop.f32.mrf.mxu0
  %v970 = vadd.f32 0.0, %v969
  %971 = vmatmul.f32.gmra.mxu0 %v950
  %v972 = vpop.f32.mrf.mxu0
  %v973 = vadd.f32 0.0, %v972
  %974 = vdwg.mxu0
  %v975 = vadd.f32 %v844, %v970
  %v976 = vadd.f32 %v847, %v973
  %977 = vrot.lane.b32.xlu0 %v517, 80
  %v978 = vpop.permute.xlu0 %977
  %979 = vrot.lane.b32.xlu0 %v520, 80
  %v980 = vpop.permute.xlu0 %979
  %981 = vrot.lane.b32.xlu0 %v552, 80
  %v982 = vpop.permute.xlu0 %981
  %983 = vrot.lane.b32.xlu0 %v555, 80
  %v984 = vpop.permute.xlu0 %983
  %v985 = vsel %vm600, %v978, 0
  %v987 = vsel %vm600, %v980, 0
  %v989 = vsel %vm600, %v982, 0
  %v991 = vsel %vm600, %v984, 0
  %993 = vmatpush.xpose.msra.mxu0 0.0
  %994 = vmatpush.xpose.msra.mxu0 0.0
  %995 = vmatpush.xpose.msra.mxu0 0.0
  %996 = vmatpush.xpose.msra.mxu0 0.0
  %997 = vmatpush.xpose.msra.mxu0 0.0
  %998 = vmatpush.xpose.msra.mxu0 0.0
  %999 = vmatpush.xpose.msra.mxu0 0.0
  %1000 = vmatpush.xpose.msra.mxu0 0.0
  %1001 = vmatpush.xpose.msra.mxu0 0.0
  %1002 = vmatpush.xpose.msra.mxu0 0.0
  %1003 = vmatpush.xpose.msra.mxu0 0.0
  %1004 = vmatpush.xpose.msra.mxu0 0.0
  %1005 = vmatpush.xpose.msra.mxu0 0.0
  %1006 = vmatpush.xpose.msra.mxu0 0.0
  %1007 = vmatpush.xpose.msra.mxu0 %v991
  %1008 = vmatpush.xpose.msra.mxu0 %v989
  %1009 = vmatmul.f32.gmra.mxu0 %v985
  %v1010 = vpop.f32.mrf.mxu0
  %v1011 = vadd.f32 %v414, %v1010
  %1012 = vmatmul.f32.gmra.mxu0 %v987
  %v1013 = vpop.f32.mrf.mxu0
  %v1014 = vadd.f32 %v415, %v1013
  %1015 = vdwg.mxu0
  %v1016 = vsel %vm636, %v1011, -inf
  %1017 = vmax.xlane.f32.xlu0 %v1016
  %v1018 = vpop.xlane.xlu0 %1017
  %v1019 = vsel %vm640, %v1014, -inf
  %1020 = vmax.xlane.f32.xlu0 %v1019
  %v1021 = vpop.xlane.xlu0 %1020
  %v1022 = vsub.f32 %v1011, %v1018
  %v1023 = vsub.f32 %v1014, %v1021
  %v1024 = vmul.f32 %v1022, 1.442695
  %v1025 = vpow.pop %v1024
  %v1026 = vmul.f32 %v1023, 1.442695
  %v1027 = vpow.pop %v1026
  %v1028 = vsel %vm636, %v1025, 0.0
  %1029 = vadd.xlane.f32.xlu0 %v1028
  %v1030 = vpop.xlane.xlu0 %1029
  %v1031 = vsel %vm640, %v1027, 0.0
  %1032 = vadd.xlane.f32.xlu0 %v1031
  %v1033 = vpop.xlane.xlu0 %1032
  %v1034 = vrcp.pop %v1030
  %v1035 = vrcp.pop %v1033
  %v1036 = vmul.f32 %v1025, %v1034
  %v1037 = vmul.f32 %v1027, %v1035
  %1038 = vrot.lane.b32.xlu0 %v587, 80
  %v1039 = vpop.permute.xlu0 %1038
  %1040 = vrot.lane.b32.xlu0 %v590, 80
  %v1041 = vpop.permute.xlu0 %1040
  %v1044 = vsel %vm636, %v1036, 0
  %v1047 = vsel %vm636, %v1037, 0
  %v1049 = vsel %vm666, %v1041, 0
  %1051 = vmatpush.msra.mxu0 0.0
  %1052 = vmatpush.msra.mxu0 0.0
  %1053 = vmatpush.msra.mxu0 0.0
  %1054 = vmatpush.msra.mxu0 0.0
  %1055 = vmatpush.msra.mxu0 0.0
  %1056 = vmatpush.msra.mxu0 0.0
  %1057 = vmatpush.msra.mxu0 0.0
  %1058 = vmatpush.msra.mxu0 0.0
  %1059 = vmatpush.msra.mxu0 0.0
  %1060 = vmatpush.msra.mxu0 0.0
  %1061 = vmatpush.msra.mxu0 0.0
  %1062 = vmatpush.msra.mxu0 0.0
  %1063 = vmatpush.msra.mxu0 0.0
  %1064 = vmatpush.msra.mxu0 0.0
  %1065 = vmatpush.msra.mxu0 %v1049
  %1066 = vmatpush.msra.mxu0 %v1039
  %1067 = vmatmul.f32.gmra.mxu0 %v1044
  %v1068 = vpop.f32.mrf.mxu0
  %v1069 = vadd.f32 0.0, %v1068
  %1070 = vmatmul.f32.gmra.mxu0 %v1047
  %v1071 = vpop.f32.mrf.mxu0
  %v1072 = vadd.f32 0.0, %v1071
  %1073 = vdwg.mxu0
  %v1075 = vsel %vm600, %v1069, 0
  %v1078 = vsel %vm600, %v1072, 0
  %1080 = vmatpush.msra.mxu0 0.0
  %1081 = vmatpush.msra.mxu0 0.0
  %1082 = vmatpush.msra.mxu0 0.0
  %1083 = vmatpush.msra.mxu0 0.0
  %1084 = vmatpush.msra.mxu0 0.0
  %1085 = vmatpush.msra.mxu0 0.0
  %1086 = vmatpush.msra.mxu0 0.0
  %1087 = vmatpush.msra.mxu0 0.0
  %1088 = vmatpush.msra.mxu0 0.0
  %1089 = vmatpush.msra.mxu0 0.0
  %1090 = vmatpush.msra.mxu0 0.0
  %1091 = vmatpush.msra.mxu0 0.0
  %1092 = vmatpush.msra.mxu0 0.0
  %1093 = vmatpush.msra.mxu0 0.0
  %1094 = vmatpush.msra.mxu0 %v599
  %1095 = vmatpush.msra.mxu0 %v598
  %1096 = vmatmul.f32.gmra.mxu0 %v1075
  %v1097 = vpop.f32.mrf.mxu0
  %v1098 = vadd.f32 0.0, %v1097
  %1099 = vmatmul.f32.gmra.mxu0 %v1078
  %v1100 = vpop.f32.mrf.mxu0
  %v1101 = vadd.f32 0.0, %v1100
  %1102 = vdwg.mxu0
  %v1103 = vadd.f32 %v975, %v1098
  %v1104 = vadd.f32 %v976, %v1101
  %v1105 = vadd.f32 %v409, %v1103
  %v1106 = vadd.f32 %v412, %v1104
  %v1107 = vld [vmem:[%s27] sm:$0x1]
  %v1109 = vperm.slane %v1107, 0
  %v1111 = vadd.f32 %v1105, %v1109
  %v1112 = vadd.f32 %v1106, %v1109
  %v1113 = vld [vmem:[%s29] sm:$0x1]
  %v1114 = vld [vmem:[%s31] sm:$0x1]
  %v1115 = vsel %vm418, %v1111, 0.0
  %1116 = vadd.xlane.f32.xlu0 %v1115
  %v1117 = vpop.xlane.xlu0 %1116
  %v1118 = vsel %vm422, %v1112, 0.0
  %1119 = vadd.xlane.f32.xlu0 %v1118
  %v1120 = vpop.xlane.xlu0 %1119
  %v1121 = vmul.f32 %v1117, %v432
  %v1122 = vmul.f32 %v1120, %v432
  %v1123 = vsub.f32 %v1111, %v1121
  %v1124 = vsub.f32 %v1112, %v1122
  %v1125 = vmul.f32 %v1123, %v1123
  %v1126 = vmul.f32 %v1124, %v1124
  %v1127 = vsel %vm418, %v1125, 0.0
  %1128 = vadd.xlane.f32.xlu0 %v1127
  %v1129 = vpop.xlane.xlu0 %1128
  %v1130 = vsel %vm422, %v1126, 0.0
  %1131 = vadd.xlane.f32.xlu0 %v1130
  %v1132 = vpop.xlane.xlu0 %1131
  %v1133 = vmul.f32 %v1129, %v432
  %v1134 = vmul.f32 %v1132, %v432
  %v1135 = vadd.f32 %v1133, 1e-06
  %v1136 = vadd.f32 %v1134, 1e-06
  %v1137 = vrsqrt.pop %v1135
  %v1138 = vmul.f32 %v1137, %v1135
  %v1139 = vmul.f32 %v1138, %v1137
  %v1140 = vmul.f32 0.5, %v1139
  %v1141 = vsub.f32 1.5, %v1140
  %v1142 = vmul.f32 %v1137, %v1141
  %vm1143 = vweird.f32 %v1135
  %vm1144 = vweird.f32 %v1137
  %vm1145 = vmor %vm1143, %vm1144
  %v1146 = vsel %vm1145, %v1137, %v1142
  %v1147 = vrsqrt.pop %v1136
  %v1148 = vmul.f32 %v1147, %v1136
  %v1149 = vmul.f32 %v1148, %v1147
  %v1150 = vmul.f32 0.5, %v1149
  %v1151 = vsub.f32 1.5, %v1150
  %v1152 = vmul.f32 %v1147, %v1151
  %vm1153 = vweird.f32 %v1136
  %vm1154 = vweird.f32 %v1147
  %vm1155 = vmor %vm1153, %vm1154
  %v1156 = vsel %vm1155, %v1147, %v1152
  %v1157 = vmul.f32 %v1123, %v1146
  %v1158 = vmul.f32 %v1124, %v1156
  %v1160 = vperm.slane %v1113, 0
  %v1162 = vmul.f32 %v1157, %v1160
  %v1163 = vmul.f32 %v1158, %v1160
  %v1165 = vperm.slane %v1114, 0
  %v1167 = vadd.f32 %v1162, %v1165
  %v1168 = vadd.f32 %v1163, %v1165
  %v1169 = vld [vmem:[%s33] sm:$0xff]
  %v1170 = vld [vmem:[%s33 + $0x8] sm:$0xff]
  %v1171 = vld [vmem:[%s33 + $0x10] sm:$0xff]
  %v1172 = vld [vmem:[%s33 + $0x18] sm:$0xff]
  %v1173 = vld [vmem:[%s33 + $0x20] sm:$0xff]
  %v1174 = vld [vmem:[%s33 + $0x28] sm:$0xff]
  %v1175 = vld [vmem:[%s33 + $0x30] sm:$0xff]
  %v1176 = vld [vmem:[%s33 + $0x38] sm:$0xff]
  %v1177 = vld [vmem:[%s35] sm:$0x1]
  %v1179 = vperm.slane %v1177, 0
  %v1182 = vsel %vm418, %v1167, 0
  %v1185 = vsel %vm418, %v1168, 0
  %1187 = vmatpush.msra.mxu0 0.0
  %1188 = vmatpush.msra.mxu0 0.0
  %1189 = vmatpush.msra.mxu0 0.0
  %1190 = vmatpush.msra.mxu0 0.0
  %1191 = vmatpush.msra.mxu0 0.0
  %1192 = vmatpush.msra.mxu0 0.0
  %1193 = vmatpush.msra.mxu0 0.0
  %1194 = vmatpush.msra.mxu0 0.0
  %1195 = vmatpush.msra.mxu0 %v1176
  %1196 = vmatpush.msra.mxu0 %v1175
  %1197 = vmatpush.msra.mxu0 %v1174
  %1198 = vmatpush.msra.mxu0 %v1173
  %1199 = vmatpush.msra.mxu0 %v1172
  %1200 = vmatpush.msra.mxu0 %v1171
  %1201 = vmatpush.msra.mxu0 %v1170
  %1202 = vmatpush.msra.mxu0 %v1169
  %1203 = vmatmul.f32.gmra.mxu0 %v1182
  %v1204 = vpop.f32.mrf.mxu0
  %v1205 = vadd.f32 %v1179, %v1204
  %1206 = vmatmul.f32.gmra.mxu0 %v1185
  %v1207 = vpop.f32.mrf.mxu0
  %v1208 = vadd.f32 %v1179, %v1207
  %1209 = vdwg.mxu0
  %v1210 = vmul.f32 %v1205, 0.5
  %v1211 = vmul.f32 %v1208, 0.5
  %v1212 = vmul.f32 %v1205, 0.70710677
  %v1213 = vmul.f32 %v1208, 0.70710677
  %v1214 = vand.u32 2147483647, %v1212
  %v1215 = vand.u32 2147483647, %v1213
  %v1216 = vmul.f32 %v1214, 0.3275911
  %v1217 = vmul.f32 %v1215, 0.3275911
  %v1218 = vadd.f32 %v1216, 1.0
  %v1219 = vadd.f32 %v1217, 1.0
  %v1220 = vrcp.pop %v1218
  %v1221 = vmul.f32 %v1218, %v1220
  %v1222 = vsub.f32 1.0, %v1221
  %v1223 = vmul.f32 %v1220, %v1222
  %v1224 = vadd.f32 %v1220, %v1223
  %vm1225 = vweird.f32 %v1218
  %vm1226 = vweird.f32 %v1220
  %vm1227 = vmor %vm1225, %vm1226
  %v1228 = vsel %vm1227, %v1220, %v1224
  %v1229 = vand.u32 2147483647, %v1218
  %vm1230 = vcmp.eq.f32.partialorder %v1229, 8.507059e+37
  %v1231 = vand.u32 %v1218, 2147483648
  %v1232 = vor.u32 1.1754944e-38, %v1231
  %v1233 = vsel %vm1230, %v1232, %v1228
  %v1234 = vmul.f32 1.0, %v1233
  %v1235 = vrcp.pop %v1219
  %v1236 = vmul.f32 %v1219, %v1235
  %v1237 = vsub.f32 1.0, %v1236
  %v1238 = vmul.f32 %v1235, %v1237
  %v1239 = vadd.f32 %v1235, %v1238
  %vm1240 = vweird.f32 %v1219
  %vm1241 = vweird.f32 %v1235
  %vm1242 = vmor %vm1240, %vm1241
  %v1243 = vsel %vm1242, %v1235, %v1239
  %v1244 = vand.u32 2147483647, %v1219
  %vm1245 = vcmp.eq.f32.partialorder %v1244, 8.507059e+37
  %v1246 = vand.u32 %v1219, 2147483648
  %v1247 = vor.u32 1.1754944e-38, %v1246
  %v1248 = vsel %vm1245, %v1247, %v1243
  %v1249 = vmul.f32 1.0, %v1248
  %v1250 = vmul.f32 %v1234, 1.0614054
  %v1251 = vmul.f32 %v1249, 1.0614054
  %v1252 = vadd.f32 %v1250, -1.4531521
  %v1253 = vadd.f32 %v1251, -1.4531521
  %v1254 = vmul.f32 %v1252, %v1234
  %v1255 = vmul.f32 %v1253, %v1249
  %v1256 = vadd.f32 %v1254, 1.4214138
  %v1257 = vadd.f32 %v1255, 1.4214138
  %v1258 = vmul.f32 %v1256, %v1234
  %v1259 = vmul.f32 %v1257, %v1249
  %v1260 = vadd.f32 %v1258, -0.28449672
  %v1261 = vadd.f32 %v1259, -0.28449672
  %v1262 = vmul.f32 %v1260, %v1234
  %v1263 = vmul.f32 %v1261, %v1249
  %v1264 = vadd.f32 %v1262, 0.2548296
  %v1265 = vadd.f32 %v1263, 0.2548296
  %v1266 = vmul.f32 %v1264, %v1234
  %v1267 = vmul.f32 %v1265, %v1249
  %v1268 = vmul.f32 %v1214, %v1214
  %v1269 = vmul.f32 %v1215, %v1215
  %v1270 = vsub.f32 0.0, %v1268
  %v1271 = vsub.f32 0.0, %v1269
  %v1272 = vmul.f32 %v1270, 1.442695
  %v1273 = vpow.pop %v1272
  %v1274 = vmul.f32 %v1271, 1.442695
  %v1275 = vpow.pop %v1274
  %v1276 = vmul.f32 %v1266, %v1273
  %v1277 = vmul.f32 %v1267, %v1275
  %v1278 = vsub.f32 1.0, %v1276
  %v1279 = vsub.f32 1.0, %v1277
  %vm1280 = vcmp.ge.f32.partialorder %v1212, 0.0
  %vm1281 = vcmp.ge.f32.partialorder %v1213, 0.0
  %v1282 = vsub.f32 0.0, %v1278
  %v1283 = vsub.f32 0.0, %v1279
  %v1284 = vsel %vm1280, %v1278, %v1282
  %v1285 = vsel %vm1281, %v1279, %v1283
  %v1286 = vadd.f32 %v1284, 1.0
  %v1287 = vadd.f32 %v1285, 1.0
  %v1288 = vmul.f32 %v1210, %v1286
  %v1289 = vmul.f32 %v1211, %v1287
  %v1290 = vld [vmem:[%s37] sm:$0xff]
  %v1291 = vld [vmem:[%s37 + $0x8] sm:$0xff]
  %v1292 = vld [vmem:[%s37 + $0x10] sm:$0xff]
  %v1293 = vld [vmem:[%s37 + $0x18] sm:$0xff]
  %v1294 = vld [vmem:[%s37 + $0x20] sm:$0xff]
  %v1295 = vld [vmem:[%s37 + $0x28] sm:$0xff]
  %v1296 = vld [vmem:[%s37 + $0x30] sm:$0xff]
  %v1297 = vld [vmem:[%s37 + $0x38] sm:$0xff]
  %v1298 = vld [vmem:[%s37 + $0x40] sm:$0xff]
  %v1299 = vld [vmem:[%s37 + $0x48] sm:$0xff]
  %v1300 = vld [vmem:[%s37 + $0x50] sm:$0xff]
  %v1301 = vld [vmem:[%s37 + $0x58] sm:$0xff]
  %v1302 = vld [vmem:[%s37 + $0x60] sm:$0xff]
  %v1303 = vld [vmem:[%s37 + $0x68] sm:$0xff]
  %v1304 = vld [vmem:[%s37 + $0x70] sm:$0xff]
  %v1305 = vld [vmem:[%s37 + $0x78] sm:$0xff]
  %v1306 = vld [vmem:[%s39] sm:$0x1]
  %v1308 = vperm.slane %v1306, 0
  %1310 = vmatpush.msra.mxu0 %v1305
  %1311 = vmatpush.msra.mxu0 %v1304
  %1312 = vmatpush.msra.mxu0 %v1303
  %1313 = vmatpush.msra.mxu0 %v1302
  %1314 = vmatpush.msra.mxu0 %v1301
  %1315 = vmatpush.msra.mxu0 %v1300
  %1316 = vmatpush.msra.mxu0 %v1299
  %1317 = vmatpush.msra.mxu0 %v1298
  %1318 = vmatpush.msra.mxu0 %v1297
  %1319 = vmatpush.msra.mxu0 %v1296
  %1320 = vmatpush.msra.mxu0 %v1295
  %1321 = vmatpush.msra.mxu0 %v1294
  %1322 = vmatpush.msra.mxu0 %v1293
  %1323 = vmatpush.msra.mxu0 %v1292
  %1324 = vmatpush.msra.mxu0 %v1291
  %1325 = vmatpush.msra.mxu0 %v1290
  %1326 = vmatmul.f32.gmra.mxu0 %v1288
  %v1327 = vpop.f32.mrf.mxu0
  %v1328 = vadd.f32 %v1308, %v1327
  %1329 = vmatmul.f32.gmra.mxu0 %v1289
  %v1330 = vpop.f32.mrf.mxu0
  %v1331 = vadd.f32 %v1308, %v1330
  %1332 = vdwg.mxu0
  %v1333 = vadd.f32 %v1111, %v1328
  %v1334 = vadd.f32 %v1112, %v1331
  %v1335 = vld [vmem:[%s41] sm:$0x1]
  %v1336 = vld [vmem:[%s43] sm:$0x1]
  %v1337 = vsel %vm418, %v1333, 0.0
  %1338 = vadd.xlane.f32.xlu0 %v1337
  %v1339 = vpop.xlane.xlu0 %1338
  %v1340 = vsel %vm422, %v1334, 0.0
  %1341 = vadd.xlane.f32.xlu0 %v1340
  %v1342 = vpop.xlane.xlu0 %1341
  %v1343 = vmul.f32 %v1339, %v432
  %v1344 = vmul.f32 %v1342, %v432
  %v1345 = vsub.f32 %v1333, %v1343
  %v1346 = vsub.f32 %v1334, %v1344
  %v1347 = vmul.f32 %v1345, %v1345
  %v1348 = vmul.f32 %v1346, %v1346
  %v1349 = vsel %vm418, %v1347, 0.0
  %1350 = vadd.xlane.f32.xlu0 %v1349
  %v1351 = vpop.xlane.xlu0 %1350
  %v1352 = vsel %vm422, %v1348, 0.0
  %1353 = vadd.xlane.f32.xlu0 %v1352
  %v1354 = vpop.xlane.xlu0 %1353
  %v1355 = vmul.f32 %v1351, %v432
  %v1356 = vmul.f32 %v1354, %v432
  %v1357 = vadd.f32 %v1355, 1e-06
  %v1358 = vadd.f32 %v1356, 1e-06
  %v1359 = vrsqrt.pop %v1357
  %v1360 = vmul.f32 %v1359, %v1357
  %v1361 = vmul.f32 %v1360, %v1359
  %v1362 = vmul.f32 0.5, %v1361
  %v1363 = vsub.f32 1.5, %v1362
  %v1364 = vmul.f32 %v1359, %v1363
  %vm1365 = vweird.f32 %v1357
  %vm1366 = vweird.f32 %v1359
  %vm1367 = vmor %vm1365, %vm1366
  %v1368 = vsel %vm1367, %v1359, %v1364
  %v1369 = vrsqrt.pop %v1358
  %v1370 = vmul.f32 %v1369, %v1358
  %v1371 = vmul.f32 %v1370, %v1369
  %v1372 = vmul.f32 0.5, %v1371
  %v1373 = vsub.f32 1.5, %v1372
  %v1374 = vmul.f32 %v1369, %v1373
  %vm1375 = vweird.f32 %v1358
  %vm1376 = vweird.f32 %v1369
  %vm1377 = vmor %vm1375, %vm1376
  %v1378 = vsel %vm1377, %v1369, %v1374
  %v1379 = vmul.f32 %v1345, %v1368
  %v1380 = vmul.f32 %v1346, %v1378
  %v1382 = vperm.slane %v1335, 0
  %v1384 = vmul.f32 %v1379, %v1382
  %v1385 = vmul.f32 %v1380, %v1382
  %v1387 = vperm.slane %v1336, 0
  %v1389 = vadd.f32 %v1384, %v1387
  %v1390 = vadd.f32 %v1385, %v1387
  %v1391 = vld [vmem:[%s45] sm:$0xff]
  %v1392 = vld [vmem:[%s45 + $0x8] sm:$0xff]
  %v1393 = vld [vmem:[%s45 + $0x10] sm:$0xff]
  %v1394 = vld [vmem:[%s45 + $0x18] sm:$0xff]
  %v1395 = vld [vmem:[%s45 + $0x20] sm:$0xff]
  %v1396 = vld [vmem:[%s45 + $0x28] sm:$0xff]
  %v1397 = vld [vmem:[%s45 + $0x30] sm:$0xff]
  %v1398 = vld [vmem:[%s45 + $0x38] sm:$0xff]
  %v1399 = vld [vmem:[%s47] sm:$0x1]
  %v1401 = vperm.slane %v1399, 0
  %v1404 = vsel %vm418, %v1389, 0
  %v1407 = vsel %vm418, %v1390, 0
  %1409 = vmatpush.msra.mxu0 0.0
  %1410 = vmatpush.msra.mxu0 0.0
  %1411 = vmatpush.msra.mxu0 0.0
  %1412 = vmatpush.msra.mxu0 0.0
  %1413 = vmatpush.msra.mxu0 0.0
  %1414 = vmatpush.msra.mxu0 0.0
  %1415 = vmatpush.msra.mxu0 0.0
  %1416 = vmatpush.msra.mxu0 0.0
  %1417 = vmatpush.msra.mxu0 %v1398
  %1418 = vmatpush.msra.mxu0 %v1397
  %1419 = vmatpush.msra.mxu0 %v1396
  %1420 = vmatpush.msra.mxu0 %v1395
  %1421 = vmatpush.msra.mxu0 %v1394
  %1422 = vmatpush.msra.mxu0 %v1393
  %1423 = vmatpush.msra.mxu0 %v1392
  %1424 = vmatpush.msra.mxu0 %v1391
  %1425 = vmatmul.f32.gmra.mxu0 %v1404
  %v1426 = vpop.f32.mrf.mxu0
  %v1427 = vadd.f32 %v1401, %v1426
  %1428 = vmatmul.f32.gmra.mxu0 %v1407
  %v1429 = vpop.f32.mrf.mxu0
  %v1430 = vadd.f32 %v1401, %v1429
  %1431 = vdwg.mxu0
  %v1432 = vld [vmem:[%s49] sm:$0xff]
  %v1433 = vld [vmem:[%s49 + $0x8] sm:$0xff]
  %v1434 = vld [vmem:[%s49 + $0x10] sm:$0xff]
  %v1435 = vld [vmem:[%s49 + $0x18] sm:$0xff]
  %v1436 = vld [vmem:[%s49 + $0x20] sm:$0xff]
  %v1437 = vld [vmem:[%s49 + $0x28] sm:$0xff]
  %v1438 = vld [vmem:[%s49 + $0x30] sm:$0xff]
  %v1439 = vld [vmem:[%s49 + $0x38] sm:$0xff]
  %v1440 = vld [vmem:[%s51] sm:$0x1]
  %v1442 = vperm.slane %v1440, 0
  %1444 = vmatpush.msra.mxu0 0.0
  %1445 = vmatpush.msra.mxu0 0.0
  %1446 = vmatpush.msra.mxu0 0.0
  %1447 = vmatpush.msra.mxu0 0.0
  %1448 = vmatpush.msra.mxu0 0.0
  %1449 = vmatpush.msra.mxu0 0.0
  %1450 = vmatpush.msra.mxu0 0.0
  %1451 = vmatpush.msra.mxu0 0.0
  %1452 = vmatpush.msra.mxu0 %v1439
  %1453 = vmatpush.msra.mxu0 %v1438
  %1454 = vmatpush.msra.mxu0 %v1437
  %1455 = vmatpush.msra.mxu0 %v1436
  %1456 = vmatpush.msra.mxu0 %v1435
  %1457 = vmatpush.msra.mxu0 %v1434
  %1458 = vmatpush.msra.mxu0 %v1433
  %1459 = vmatpush.msra.mxu0 %v1432
  %1460 = vmatmul.f32.gmra.mxu0 %v1404
  %v1461 = vpop.f32.mrf.mxu0
  %v1462 = vadd.f32 %v1442, %v1461
  %1463 = vmatmul.f32.gmra.mxu0 %v1407
  %v1464 = vpop.f32.mrf.mxu0
  %v1465 = vadd.f32 %v1442, %v1464
  %1466 = vdwg.mxu0
  %v1467 = vld [vmem:[%s53] sm:$0xff]
  %v1468 = vld [vmem:[%s53 + $0x8] sm:$0xff]
  %v1469 = vld [vmem:[%s53 + $0x10] sm:$0xff]
  %v1470 = vld [vmem:[%s53 + $0x18] sm:$0xff]
  %v1471 = vld [vmem:[%s53 + $0x20] sm:$0xff]
  %v1472 = vld [vmem:[%s53 + $0x28] sm:$0xff]
  %v1473 = vld [vmem:[%s53 + $0x30] sm:$0xff]
  %v1474 = vld [vmem:[%s53 + $0x38] sm:$0xff]
  %v1475 = vld [vmem:[%s55] sm:$0x1]
  %v1477 = vperm.slane %v1475, 0
  %1479 = vmatpush.msra.mxu0 0.0
  %1480 = vmatpush.msra.mxu0 0.0
  %1481 = vmatpush.msra.mxu0 0.0
  %1482 = vmatpush.msra.mxu0 0.0
  %1483 = vmatpush.msra.mxu0 0.0
  %1484 = vmatpush.msra.mxu0 0.0
  %1485 = vmatpush.msra.mxu0 0.0
  %1486 = vmatpush.msra.mxu0 0.0
  %1487 = vmatpush.msra.mxu0 %v1474
  %1488 = vmatpush.msra.mxu0 %v1473
  %1489 = vmatpush.msra.mxu0 %v1472
  %1490 = vmatpush.msra.mxu0 %v1471
  %1491 = vmatpush.msra.mxu0 %v1470
  %1492 = vmatpush.msra.mxu0 %v1469
  %1493 = vmatpush.msra.mxu0 %v1468
  %1494 = vmatpush.msra.mxu0 %v1467
  %1495 = vmatmul.f32.gmra.mxu0 %v1404
  %v1496 = vpop.f32.mrf.mxu0
  %v1497 = vadd.f32 %v1477, %v1496
  %1498 = vmatmul.f32.gmra.mxu0 %v1407
  %v1499 = vpop.f32.mrf.mxu0
  %v1500 = vadd.f32 %v1477, %v1499
  %1501 = vdwg.mxu0
  %v1502 = vld [vmem:[%s57] sm:$0xff]
  %v1503 = vld [vmem:[%s57 + $0x8] sm:$0xff]
  %v1504 = vld [vmem:[%s57 + $0x10] sm:$0xff]
  %v1505 = vld [vmem:[%s57 + $0x18] sm:$0xff]
  %v1506 = vld [vmem:[%s57 + $0x20] sm:$0xff]
  %v1507 = vld [vmem:[%s57 + $0x28] sm:$0xff]
  %v1508 = vld [vmem:[%s57 + $0x30] sm:$0xff]
  %v1509 = vld [vmem:[%s57 + $0x38] sm:$0xff]
  %v1511 = vsel %vm600, %v1427, 0
  %v1514 = vsel %vm600, %v1430, 0
  %v1517 = vsel %vm600, %v1462, 0
  %v1520 = vsel %vm600, %v1465, 0
  %1522 = vmatpush.xpose.msra.mxu0 0.0
  %1523 = vmatpush.xpose.msra.mxu0 0.0
  %1524 = vmatpush.xpose.msra.mxu0 0.0
  %1525 = vmatpush.xpose.msra.mxu0 0.0
  %1526 = vmatpush.xpose.msra.mxu0 0.0
  %1527 = vmatpush.xpose.msra.mxu0 0.0
  %1528 = vmatpush.xpose.msra.mxu0 0.0
  %1529 = vmatpush.xpose.msra.mxu0 0.0
  %1530 = vmatpush.xpose.msra.mxu0 0.0
  %1531 = vmatpush.xpose.msra.mxu0 0.0
  %1532 = vmatpush.xpose.msra.mxu0 0.0
  %1533 = vmatpush.xpose.msra.mxu0 0.0
  %1534 = vmatpush.xpose.msra.mxu0 0.0
  %1535 = vmatpush.xpose.msra.mxu0 0.0
  %1536 = vmatpush.xpose.msra.mxu0 %v1520
  %1537 = vmatpush.xpose.msra.mxu0 %v1517
  %1538 = vmatmul.f32.gmra.mxu0 %v1511
  %v1539 = vpop.f32.mrf.mxu0
  %v1540 = vadd.f32 %v414, %v1539
  %1541 = vmatmul.f32.gmra.mxu0 %v1514
  %v1542 = vpop.f32.mrf.mxu0
  %v1543 = vadd.f32 %v415, %v1542
  %1544 = vdwg.mxu0
  %v1545 = vsel %vm636, %v1540, -inf
  %1546 = vmax.xlane.f32.xlu0 %v1545
  %v1547 = vpop.xlane.xlu0 %1546
  %v1548 = vsel %vm640, %v1543, -inf
  %1549 = vmax.xlane.f32.xlu0 %v1548
  %v1550 = vpop.xlane.xlu0 %1549
  %v1551 = vsub.f32 %v1540, %v1547
  %v1552 = vsub.f32 %v1543, %v1550
  %v1553 = vmul.f32 %v1551, 1.442695
  %v1554 = vpow.pop %v1553
  %v1555 = vmul.f32 %v1552, 1.442695
  %v1556 = vpow.pop %v1555
  %v1557 = vsel %vm636, %v1554, 0.0
  %1558 = vadd.xlane.f32.xlu0 %v1557
  %v1559 = vpop.xlane.xlu0 %1558
  %v1560 = vsel %vm640, %v1556, 0.0
  %1561 = vadd.xlane.f32.xlu0 %v1560
  %v1562 = vpop.xlane.xlu0 %1561
  %v1563 = vrcp.pop %v1559
  %v1564 = vrcp.pop %v1562
  %v1565 = vmul.f32 %v1554, %v1563
  %v1566 = vmul.f32 %v1556, %v1564
  %v1568 = vsel %vm636, %v1565, 0
  %v1571 = vsel %vm636, %v1566, 0
  %v1574 = vsel %vm666, %v1500, 0
  %1576 = vmatpush.msra.mxu0 0.0
  %1577 = vmatpush.msra.mxu0 0.0
  %1578 = vmatpush.msra.mxu0 0.0
  %1579 = vmatpush.msra.mxu0 0.0
  %1580 = vmatpush.msra.mxu0 0.0
  %1581 = vmatpush.msra.mxu0 0.0
  %1582 = vmatpush.msra.mxu0 0.0
  %1583 = vmatpush.msra.mxu0 0.0
  %1584 = vmatpush.msra.mxu0 0.0
  %1585 = vmatpush.msra.mxu0 0.0
  %1586 = vmatpush.msra.mxu0 0.0
  %1587 = vmatpush.msra.mxu0 0.0
  %1588 = vmatpush.msra.mxu0 0.0
  %1589 = vmatpush.msra.mxu0 0.0
  %1590 = vmatpush.msra.mxu0 %v1574
  %1591 = vmatpush.msra.mxu0 %v1497
  %1592 = vmatmul.f32.gmra.mxu0 %v1568
  %v1593 = vpop.f32.mrf.mxu0
  %v1594 = vadd.f32 0.0, %v1593
  %1595 = vmatmul.f32.gmra.mxu0 %v1571
  %v1596 = vpop.f32.mrf.mxu0
  %v1597 = vadd.f32 0.0, %v1596
  %1598 = vdwg.mxu0
  %1599 = vrot.lane.b32.xlu0 %v1427, 112
  %v1600 = vpop.permute.xlu0 %1599
  %1601 = vrot.lane.b32.xlu0 %v1430, 112
  %v1602 = vpop.permute.xlu0 %1601
  %1603 = vrot.lane.b32.xlu0 %v1462, 112
  %v1604 = vpop.permute.xlu0 %1603
  %1605 = vrot.lane.b32.xlu0 %v1465, 112
  %v1606 = vpop.permute.xlu0 %1605
  %v1607 = vsel %vm600, %v1600, 0
  %v1609 = vsel %vm600, %v1602, 0
  %v1611 = vsel %vm600, %v1604, 0
  %v1613 = vsel %vm600, %v1606, 0
  %1615 = vmatpush.xpose.msra.mxu0 0.0
  %1616 = vmatpush.xpose.msra.mxu0 0.0
  %1617 = vmatpush.xpose.msra.mxu0 0.0
  %1618 = vmatpush.xpose.msra.mxu0 0.0
  %1619 = vmatpush.xpose.msra.mxu0 0.0
  %1620 = vmatpush.xpose.msra.mxu0 0.0
  %1621 = vmatpush.xpose.msra.mxu0 0.0
  %1622 = vmatpush.xpose.msra.mxu0 0.0
  %1623 = vmatpush.xpose.msra.mxu0 0.0
  %1624 = vmatpush.xpose.msra.mxu0 0.0
  %1625 = vmatpush.xpose.msra.mxu0 0.0
  %1626 = vmatpush.xpose.msra.mxu0 0.0
  %1627 = vmatpush.xpose.msra.mxu0 0.0
  %1628 = vmatpush.xpose.msra.mxu0 0.0
  %1629 = vmatpush.xpose.msra.mxu0 %v1613
  %1630 = vmatpush.xpose.msra.mxu0 %v1611
  %1631 = vmatmul.f32.gmra.mxu0 %v1607
  %v1632 = vpop.f32.mrf.mxu0
  %v1633 = vadd.f32 %v414, %v1632
  %1634 = vmatmul.f32.gmra.mxu0 %v1609
  %v1635 = vpop.f32.mrf.mxu0
  %v1636 = vadd.f32 %v415, %v1635
  %1637 = vdwg.mxu0
  %v1638 = vsel %vm636, %v1633, -inf
  %1639 = vmax.xlane.f32.xlu0 %v1638
  %v1640 = vpop.xlane.xlu0 %1639
  %v1641 = vsel %vm640, %v1636, -inf
  %1642 = vmax.xlane.f32.xlu0 %v1641
  %v1643 = vpop.xlane.xlu0 %1642
  %v1644 = vsub.f32 %v1633, %v1640
  %v1645 = vsub.f32 %v1636, %v1643
  %v1646 = vmul.f32 %v1644, 1.442695
  %v1647 = vpow.pop %v1646
  %v1648 = vmul.f32 %v1645, 1.442695
  %v1649 = vpow.pop %v1648
  %v1650 = vsel %vm636, %v1647, 0.0
  %1651 = vadd.xlane.f32.xlu0 %v1650
  %v1652 = vpop.xlane.xlu0 %1651
  %v1653 = vsel %vm640, %v1649, 0.0
  %1654 = vadd.xlane.f32.xlu0 %v1653
  %v1655 = vpop.xlane.xlu0 %1654
  %v1656 = vrcp.pop %v1652
  %v1657 = vrcp.pop %v1655
  %v1658 = vmul.f32 %v1647, %v1656
  %v1659 = vmul.f32 %v1649, %v1657
  %1661 = vrot.lane.b32.xlu0 %v1497, 112
  %v1662 = vpop.permute.xlu0 %1661
  %1663 = vrot.lane.b32.xlu0 %v1500, 112
  %v1664 = vpop.permute.xlu0 %1663
  %v1667 = vsel %vm636, %v1658, 0
  %v1670 = vsel %vm636, %v1659, 0
  %v1672 = vsel %vm666, %v1664, 0
  %1674 = vmatpush.msra.mxu0 0.0
  %1675 = vmatpush.msra.mxu0 0.0
  %1676 = vmatpush.msra.mxu0 0.0
  %1677 = vmatpush.msra.mxu0 0.0
  %1678 = vmatpush.msra.mxu0 0.0
  %1679 = vmatpush.msra.mxu0 0.0
  %1680 = vmatpush.msra.mxu0 0.0
  %1681 = vmatpush.msra.mxu0 0.0
  %1682 = vmatpush.msra.mxu0 0.0
  %1683 = vmatpush.msra.mxu0 0.0
  %1684 = vmatpush.msra.mxu0 0.0
  %1685 = vmatpush.msra.mxu0 0.0
  %1686 = vmatpush.msra.mxu0 0.0
  %1687 = vmatpush.msra.mxu0 0.0
  %1688 = vmatpush.msra.mxu0 %v1672
  %1689 = vmatpush.msra.mxu0 %v1662
  %1690 = vmatmul.f32.gmra.mxu0 %v1667
  %v1691 = vpop.f32.mrf.mxu0
  %v1692 = vadd.f32 0.0, %v1691
  %1693 = vmatmul.f32.gmra.mxu0 %v1670
  %v1694 = vpop.f32.mrf.mxu0
  %v1695 = vadd.f32 0.0, %v1694
  %1696 = vdwg.mxu0
  %v1698 = vsel %vm600, %v1692, 0
  %v1701 = vsel %vm600, %v1695, 0
  %1703 = vmatpush.msra.mxu0 0.0
  %1704 = vmatpush.msra.mxu0 0.0
  %1705 = vmatpush.msra.mxu0 0.0
  %1706 = vmatpush.msra.mxu0 0.0
  %1707 = vmatpush.msra.mxu0 0.0
  %1708 = vmatpush.msra.mxu0 0.0
  %1709 = vmatpush.msra.mxu0 0.0
  %1710 = vmatpush.msra.mxu0 0.0
  %1711 = vmatpush.msra.mxu0 0.0
  %1712 = vmatpush.msra.mxu0 0.0
  %1713 = vmatpush.msra.mxu0 0.0
  %1714 = vmatpush.msra.mxu0 0.0
  %1715 = vmatpush.msra.mxu0 0.0
  %1716 = vmatpush.msra.mxu0 0.0
  %1717 = vmatpush.msra.mxu0 %v1505
  %1718 = vmatpush.msra.mxu0 %v1504
  %1719 = vmatmul.f32.gmra.mxu0 %v1698
  %v1720 = vpop.f32.mrf.mxu0
  %v1721 = vadd.f32 0.0, %v1720
  %1722 = vmatmul.f32.gmra.mxu0 %v1701
  %v1723 = vpop.f32.mrf.mxu0
  %v1724 = vadd.f32 0.0, %v1723
  %1725 = vdwg.mxu0
  %v1727 = vsel %vm600, %v1594, 0
  %v1730 = vsel %vm600, %v1597, 0
  %1732 = vmatpush.msra.mxu0 0.0
  %1733 = vmatpush.msra.mxu0 0.0
  %1734 = vmatpush.msra.mxu0 0.0
  %1735 = vmatpush.msra.mxu0 0.0
  %1736 = vmatpush.msra.mxu0 0.0
  %1737 = vmatpush.msra.mxu0 0.0
  %1738 = vmatpush.msra.mxu0 0.0
  %1739 = vmatpush.msra.mxu0 0.0
  %1740 = vmatpush.msra.mxu0 0.0
  %1741 = vmatpush.msra.mxu0 0.0
  %1742 = vmatpush.msra.mxu0 0.0
  %1743 = vmatpush.msra.mxu0 0.0
  %1744 = vmatpush.msra.mxu0 0.0
  %1745 = vmatpush.msra.mxu0 0.0
  %1746 = vmatpush.msra.mxu0 %v1503
  %1747 = vmatpush.msra.mxu0 %v1502
  %1748 = vmatmul.f32.gmra.mxu0 %v1727
  %v1749 = vpop.f32.mrf.mxu0
  %v1750 = vadd.f32 %v1721, %v1749
  %1751 = vmatmul.f32.gmra.mxu0 %v1730
  %v1752 = vpop.f32.mrf.mxu0
  %v1753 = vadd.f32 %v1724, %v1752
  %1754 = vdwg.mxu0
  %1755 = vrot.lane.b32.xlu0 %v1427, 96
  %v1756 = vpop.permute.xlu0 %1755
  %1757 = vrot.lane.b32.xlu0 %v1430, 96
  %v1758 = vpop.permute.xlu0 %1757
  %1759 = vrot.lane.b32.xlu0 %v1462, 96
  %v1760 = vpop.permute.xlu0 %1759
  %1761 = vrot.lane.b32.xlu0 %v1465, 96
  %v1762 = vpop.permute.xlu0 %1761
  %v1763 = vsel %vm600, %v1756, 0
  %v1765 = vsel %vm600, %v1758, 0
  %v1767 = vsel %vm600, %v1760, 0
  %v1769 = vsel %vm600, %v1762, 0
  %1771 = vmatpush.xpose.msra.mxu0 0.0
  %1772 = vmatpush.xpose.msra.mxu0 0.0
  %1773 = vmatpush.xpose.msra.mxu0 0.0
  %1774 = vmatpush.xpose.msra.mxu0 0.0
  %1775 = vmatpush.xpose.msra.mxu0 0.0
  %1776 = vmatpush.xpose.msra.mxu0 0.0
  %1777 = vmatpush.xpose.msra.mxu0 0.0
  %1778 = vmatpush.xpose.msra.mxu0 0.0
  %1779 = vmatpush.xpose.msra.mxu0 0.0
  %1780 = vmatpush.xpose.msra.mxu0 0.0
  %1781 = vmatpush.xpose.msra.mxu0 0.0
  %1782 = vmatpush.xpose.msra.mxu0 0.0
  %1783 = vmatpush.xpose.msra.mxu0 0.0
  %1784 = vmatpush.xpose.msra.mxu0 0.0
  %1785 = vmatpush.xpose.msra.mxu0 %v1769
  %1786 = vmatpush.xpose.msra.mxu0 %v1767
  %1787 = vmatmul.f32.gmra.mxu0 %v1763
  %v1788 = vpop.f32.mrf.mxu0
  %v1789 = vadd.f32 %v414, %v1788
  %1790 = vmatmul.f32.gmra.mxu0 %v1765
  %v1791 = vpop.f32.mrf.mxu0
  %v1792 = vadd.f32 %v415, %v1791
  %1793 = vdwg.mxu0
  %v1794 = vsel %vm636, %v1789, -inf
  %1795 = vmax.xlane.f32.xlu0 %v1794
  %v1796 = vpop.xlane.xlu0 %1795
  %v1797 = vsel %vm640, %v1792, -inf
  %1798 = vmax.xlane.f32.xlu0 %v1797
  %v1799 = vpop.xlane.xlu0 %1798
  %v1800 = vsub.f32 %v1789, %v1796
  %v1801 = vsub.f32 %v1792, %v1799
  %v1802 = vmul.f32 %v1800, 1.442695
  %v1803 = vpow.pop %v1802
  %v1804 = vmul.f32 %v1801, 1.442695
  %v1805 = vpow.pop %v1804
  %v1806 = vsel %vm636, %v1803, 0.0
  %1807 = vadd.xlane.f32.xlu0 %v1806
  %v1808 = vpop.xlane.xlu0 %1807
  %v1809 = vsel %vm640, %v1805, 0.0
  %1810 = vadd.xlane.f32.xlu0 %v1809
  %v1811 = vpop.xlane.xlu0 %1810
  %v1812 = vrcp.pop %v1808
  %v1813 = vrcp.pop %v1811
  %v1814 = vmul.f32 %v1803, %v1812
  %v1815 = vmul.f32 %v1805, %v1813
  %1816 = vrot.lane.b32.xlu0 %v1497, 96
  %v1817 = vpop.permute.xlu0 %1816
  %1818 = vrot.lane.b32.xlu0 %v1500, 96
  %v1819 = vpop.permute.xlu0 %1818
  %v1822 = vsel %vm636, %v1814, 0
  %v1825 = vsel %vm636, %v1815, 0
  %v1827 = vsel %vm666, %v1819, 0
  %1829 = vmatpush.msra.mxu0 0.0
  %1830 = vmatpush.msra.mxu0 0.0
  %1831 = vmatpush.msra.mxu0 0.0
  %1832 = vmatpush.msra.mxu0 0.0
  %1833 = vmatpush.msra.mxu0 0.0
  %1834 = vmatpush.msra.mxu0 0.0
  %1835 = vmatpush.msra.mxu0 0.0
  %1836 = vmatpush.msra.mxu0 0.0
  %1837 = vmatpush.msra.mxu0 0.0
  %1838 = vmatpush.msra.mxu0 0.0
  %1839 = vmatpush.msra.mxu0 0.0
  %1840 = vmatpush.msra.mxu0 0.0
  %1841 = vmatpush.msra.mxu0 0.0
  %1842 = vmatpush.msra.mxu0 0.0
  %1843 = vmatpush.msra.mxu0 %v1827
  %1844 = vmatpush.msra.mxu0 %v1817
  %1845 = vmatmul.f32.gmra.mxu0 %v1822
  %v1846 = vpop.f32.mrf.mxu0
  %v1847 = vadd.f32 0.0, %v1846
  %1848 = vmatmul.f32.gmra.mxu0 %v1825
  %v1849 = vpop.f32.mrf.mxu0
  %v1850 = vadd.f32 0.0, %v1849
  %1851 = vdwg.mxu0
  %v1853 = vsel %vm600, %v1847, 0
  %v1856 = vsel %vm600, %v1850, 0
  %1858 = vmatpush.msra.mxu0 0.0
  %1859 = vmatpush.msra.mxu0 0.0
  %1860 = vmatpush.msra.mxu0 0.0
  %1861 = vmatpush.msra.mxu0 0.0
  %1862 = vmatpush.msra.mxu0 0.0
  %1863 = vmatpush.msra.mxu0 0.0
  %1864 = vmatpush.msra.mxu0 0.0
  %1865 = vmatpush.msra.mxu0 0.0
  %1866 = vmatpush.msra.mxu0 0.0
  %1867 = vmatpush.msra.mxu0 0.0
  %1868 = vmatpush.msra.mxu0 0.0
  %1869 = vmatpush.msra.mxu0 0.0
  %1870 = vmatpush.msra.mxu0 0.0
  %1871 = vmatpush.msra.mxu0 0.0
  %1872 = vmatpush.msra.mxu0 %v1507
  %1873 = vmatpush.msra.mxu0 %v1506
  %1874 = vmatmul.f32.gmra.mxu0 %v1853
  %v1875 = vpop.f32.mrf.mxu0
  %v1876 = vadd.f32 0.0, %v1875
  %1877 = vmatmul.f32.gmra.mxu0 %v1856
  %v1878 = vpop.f32.mrf.mxu0
  %v1879 = vadd.f32 0.0, %v1878
  %1880 = vdwg.mxu0
  %v1881 = vadd.f32 %v1750, %v1876
  %v1882 = vadd.f32 %v1753, %v1879
  %1883 = vrot.lane.b32.xlu0 %v1427, 80
  %v1884 = vpop.permute.xlu0 %1883
  %1885 = vrot.lane.b32.xlu0 %v1430, 80
  %v1886 = vpop.permute.xlu0 %1885
  %1887 = vrot.lane.b32.xlu0 %v1462, 80
  %v1888 = vpop.permute.xlu0 %1887
  %1889 = vrot.lane.b32.xlu0 %v1465, 80
  %v1890 = vpop.permute.xlu0 %1889
  %v1891 = vsel %vm600, %v1884, 0
  %v1893 = vsel %vm600, %v1886, 0
  %v1895 = vsel %vm600, %v1888, 0
  %v1897 = vsel %vm600, %v1890, 0
  %1899 = vmatpush.xpose.msra.mxu0 0.0
  %1900 = vmatpush.xpose.msra.mxu0 0.0
  %1901 = vmatpush.xpose.msra.mxu0 0.0
  %1902 = vmatpush.xpose.msra.mxu0 0.0
  %1903 = vmatpush.xpose.msra.mxu0 0.0
  %1904 = vmatpush.xpose.msra.mxu0 0.0
  %1905 = vmatpush.xpose.msra.mxu0 0.0
  %1906 = vmatpush.xpose.msra.mxu0 0.0
  %1907 = vmatpush.xpose.msra.mxu0 0.0
  %1908 = vmatpush.xpose.msra.mxu0 0.0
  %1909 = vmatpush.xpose.msra.mxu0 0.0
  %1910 = vmatpush.xpose.msra.mxu0 0.0
  %1911 = vmatpush.xpose.msra.mxu0 0.0
  %1912 = vmatpush.xpose.msra.mxu0 0.0
  %1913 = vmatpush.xpose.msra.mxu0 %v1897
  %1914 = vmatpush.xpose.msra.mxu0 %v1895
  %1915 = vmatmul.f32.gmra.mxu0 %v1891
  %v1916 = vpop.f32.mrf.mxu0
  %v1917 = vadd.f32 %v414, %v1916
  %1918 = vmatmul.f32.gmra.mxu0 %v1893
  %v1919 = vpop.f32.mrf.mxu0
  %v1920 = vadd.f32 %v415, %v1919
  %1921 = vdwg.mxu0
  %v1922 = vsel %vm636, %v1917, -inf
  %1923 = vmax.xlane.f32.xlu0 %v1922
  %v1924 = vpop.xlane.xlu0 %1923
  %v1925 = vsel %vm640, %v1920, -inf
  %1926 = vmax.xlane.f32.xlu0 %v1925
  %v1927 = vpop.xlane.xlu0 %1926
  %v1928 = vsub.f32 %v1917, %v1924
  %v1929 = vsub.f32 %v1920, %v1927
  %v1930 = vmul.f32 %v1928, 1.442695
  %v1931 = vpow.pop %v1930
  %v1932 = vmul.f32 %v1929, 1.442695
  %v1933 = vpow.pop %v1932
  %v1934 = vsel %vm636, %v1931, 0.0
  %1935 = vadd.xlane.f32.xlu0 %v1934
  %v1936 = vpop.xlane.xlu0 %1935
  %v1937 = vsel %vm640, %v1933, 0.0
  %1938 = vadd.xlane.f32.xlu0 %v1937
  %v1939 = vpop.xlane.xlu0 %1938
  %v1940 = vrcp.pop %v1936
  %v1941 = vrcp.pop %v1939
  %v1942 = vmul.f32 %v1931, %v1940
  %v1943 = vmul.f32 %v1933, %v1941
  %1944 = vrot.lane.b32.xlu0 %v1497, 80
  %v1945 = vpop.permute.xlu0 %1944
  %1946 = vrot.lane.b32.xlu0 %v1500, 80
  %v1947 = vpop.permute.xlu0 %1946
  %v1950 = vsel %vm636, %v1942, 0
  %v1953 = vsel %vm636, %v1943, 0
  %v1955 = vsel %vm666, %v1947, 0
  %1957 = vmatpush.msra.mxu0 0.0
  %1958 = vmatpush.msra.mxu0 0.0
  %1959 = vmatpush.msra.mxu0 0.0
  %1960 = vmatpush.msra.mxu0 0.0
  %1961 = vmatpush.msra.mxu0 0.0
  %1962 = vmatpush.msra.mxu0 0.0
  %1963 = vmatpush.msra.mxu0 0.0
  %1964 = vmatpush.msra.mxu0 0.0
  %1965 = vmatpush.msra.mxu0 0.0
  %1966 = vmatpush.msra.mxu0 0.0
  %1967 = vmatpush.msra.mxu0 0.0
  %1968 = vmatpush.msra.mxu0 0.0
  %1969 = vmatpush.msra.mxu0 0.0
  %1970 = vmatpush.msra.mxu0 0.0
  %1971 = vmatpush.msra.mxu0 %v1955
  %1972 = vmatpush.msra.mxu0 %v1945
  %1973 = vmatmul.f32.gmra.mxu0 %v1950
  %v1974 = vpop.f32.mrf.mxu0
  %v1975 = vadd.f32 0.0, %v1974
  %1976 = vmatmul.f32.gmra.mxu0 %v1953
  %v1977 = vpop.f32.mrf.mxu0
  %v1978 = vadd.f32 0.0, %v1977
  %1979 = vdwg.mxu0
  %v1981 = vsel %vm600, %v1975, 0
  %v1984 = vsel %vm600, %v1978, 0
  %1986 = vmatpush.msra.mxu0 0.0
  %1987 = vmatpush.msra.mxu0 0.0
  %1988 = vmatpush.msra.mxu0 0.0
  %1989 = vmatpush.msra.mxu0 0.0
  %1990 = vmatpush.msra.mxu0 0.0
  %1991 = vmatpush.msra.mxu0 0.0
  %1992 = vmatpush.msra.mxu0 0.0
  %1993 = vmatpush.msra.mxu0 0.0
  %1994 = vmatpush.msra.mxu0 0.0
  %1995 = vmatpush.msra.mxu0 0.0
  %1996 = vmatpush.msra.mxu0 0.0
  %1997 = vmatpush.msra.mxu0 0.0
  %1998 = vmatpush.msra.mxu0 0.0
  %1999 = vmatpush.msra.mxu0 0.0
  %2000 = vmatpush.msra.mxu0 %v1509
  %2001 = vmatpush.msra.mxu0 %v1508
  %2002 = vmatmul.f32.gmra.mxu0 %v1981
  %v2003 = vpop.f32.mrf.mxu0
  %v2004 = vadd.f32 0.0, %v2003
  %2005 = vmatmul.f32.gmra.mxu0 %v1984
  %v2006 = vpop.f32.mrf.mxu0
  %v2007 = vadd.f32 0.0, %v2006
  %2008 = vdwg.mxu0
  %v2009 = vadd.f32 %v1881, %v2004
  %v2010 = vadd.f32 %v1882, %v2007
  %v2011 = vadd.f32 %v1333, %v2009
  %v2012 = vadd.f32 %v1334, %v2010
  %v2013 = vld [vmem:[%s59] sm:$0x1]
  %v2015 = vperm.slane %v2013, 0
  %v2017 = vadd.f32 %v2011, %v2015
  %v2018 = vadd.f32 %v2012, %v2015
  %v2019 = vld [vmem:[%s61] sm:$0x1]
  %v2020 = vld [vmem:[%s63] sm:$0x1]
  %v2021 = vsel %vm418, %v2017, 0.0
  %2022 = vadd.xlane.f32.xlu0 %v2021
  %v2023 = vpop.xlane.xlu0 %2022
  %v2024 = vsel %vm422, %v2018, 0.0
  %2025 = vadd.xlane.f32.xlu0 %v2024
  %v2026 = vpop.xlane.xlu0 %2025
  %v2027 = vmul.f32 %v2023, %v432
  %v2028 = vmul.f32 %v2026, %v432
  %v2029 = vsub.f32 %v2017, %v2027
  %v2030 = vsub.f32 %v2018, %v2028
  %v2031 = vmul.f32 %v2029, %v2029
  %v2032 = vmul.f32 %v2030, %v2030
  %v2033 = vsel %vm418, %v2031, 0.0
  %2034 = vadd.xlane.f32.xlu0 %v2033
  %v2035 = vpop.xlane.xlu0 %2034
  %v2036 = vsel %vm422, %v2032, 0.0
  %2037 = vadd.xlane.f32.xlu0 %v2036
  %v2038 = vpop.xlane.xlu0 %2037
  %v2039 = vmul.f32 %v2035, %v432
  %v2040 = vmul.f32 %v2038, %v432
  %v2041 = vadd.f32 %v2039, 1e-06
  %v2042 = vadd.f32 %v2040, 1e-06
  %v2043 = vrsqrt.pop %v2041
  %v2044 = vmul.f32 %v2043, %v2041
  %v2045 = vmul.f32 %v2044, %v2043
  %v2046 = vmul.f32 0.5, %v2045
  %v2047 = vsub.f32 1.5, %v2046
  %v2048 = vmul.f32 %v2043, %v2047
  %vm2049 = vweird.f32 %v2041
  %vm2050 = vweird.f32 %v2043
  %vm2051 = vmor %vm2049, %vm2050
  %v2052 = vsel %vm2051, %v2043, %v2048
  %v2053 = vrsqrt.pop %v2042
  %v2054 = vmul.f32 %v2053, %v2042
  %v2055 = vmul.f32 %v2054, %v2053
  %v2056 = vmul.f32 0.5, %v2055
  %v2057 = vsub.f32 1.5, %v2056
  %v2058 = vmul.f32 %v2053, %v2057
  %vm2059 = vweird.f32 %v2042
  %vm2060 = vweird.f32 %v2053
  %vm2061 = vmor %vm2059, %vm2060
  %v2062 = vsel %vm2061, %v2053, %v2058
  %v2063 = vmul.f32 %v2029, %v2052
  %v2064 = vmul.f32 %v2030, %v2062
  %v2066 = vperm.slane %v2019, 0
  %v2068 = vmul.f32 %v2063, %v2066
  %v2069 = vmul.f32 %v2064, %v2066
  %v2071 = vperm.slane %v2020, 0
  %v2073 = vadd.f32 %v2068, %v2071
  %v2074 = vadd.f32 %v2069, %v2071
  %v2075 = vld [vmem:[%s65] sm:$0xff]
  %v2076 = vld [vmem:[%s65 + $0x8] sm:$0xff]
  %v2077 = vld [vmem:[%s65 + $0x10] sm:$0xff]
  %v2078 = vld [vmem:[%s65 + $0x18] sm:$0xff]
  %v2079 = vld [vmem:[%s65 + $0x20] sm:$0xff]
  %v2080 = vld [vmem:[%s65 + $0x28] sm:$0xff]
  %v2081 = vld [vmem:[%s65 + $0x30] sm:$0xff]
  %v2082 = vld [vmem:[%s65 + $0x38] sm:$0xff]
  %v2083 = vld [vmem:[%s67] sm:$0x1]
  %v2085 = vperm.slane %v2083, 0
  %v2088 = vsel %vm418, %v2073, 0
  %v2091 = vsel %vm418, %v2074, 0
  %2093 = vmatpush.msra.mxu0 0.0
  %2094 = vmatpush.msra.mxu0 0.0
  %2095 = vmatpush.msra.mxu0 0.0
  %2096 = vmatpush.msra.mxu0 0.0
  %2097 = vmatpush.msra.mxu0 0.0
  %2098 = vmatpush.msra.mxu0 0.0
  %2099 = vmatpush.msra.mxu0 0.0
  %2100 = vmatpush.msra.mxu0 0.0
  %2101 = vmatpush.msra.mxu0 %v2082
  %2102 = vmatpush.msra.mxu0 %v2081
  %2103 = vmatpush.msra.mxu0 %v2080
  %2104 = vmatpush.msra.mxu0 %v2079
  %2105 = vmatpush.msra.mxu0 %v2078
  %2106 = vmatpush.msra.mxu0 %v2077
  %2107 = vmatpush.msra.mxu0 %v2076
  %2108 = vmatpush.msra.mxu0 %v2075
  %2109 = vmatmul.f32.gmra.mxu0 %v2088
  %v2110 = vpop.f32.mrf.mxu0
  %v2111 = vadd.f32 %v2085, %v2110
  %2112 = vmatmul.f32.gmra.mxu0 %v2091
  %v2113 = vpop.f32.mrf.mxu0
  %v2114 = vadd.f32 %v2085, %v2113
  %2115 = vdwg.mxu0
  %v2116 = vmul.f32 %v2111, 0.5
  %v2117 = vmul.f32 %v2114, 0.5
  %v2118 = vmul.f32 %v2111, 0.70710677
  %v2119 = vmul.f32 %v2114, 0.70710677
  %v2120 = vand.u32 2147483647, %v2118
  %v2121 = vand.u32 2147483647, %v2119
  %v2122 = vmul.f32 %v2120, 0.3275911
  %v2123 = vmul.f32 %v2121, 0.3275911
  %v2124 = vadd.f32 %v2122, 1.0
  %v2125 = vadd.f32 %v2123, 1.0
  %v2126 = vrcp.pop %v2124
  %v2127 = vmul.f32 %v2124, %v2126
  %v2128 = vsub.f32 1.0, %v2127
  %v2129 = vmul.f32 %v2126, %v2128
  %v2130 = vadd.f32 %v2126, %v2129
  %vm2131 = vweird.f32 %v2124
  %vm2132 = vweird.f32 %v2126
  %vm2133 = vmor %vm2131, %vm2132
  %v2134 = vsel %vm2133, %v2126, %v2130
  %v2135 = vand.u32 2147483647, %v2124
  %vm2136 = vcmp.eq.f32.partialorder %v2135, 8.507059e+37
  %v2137 = vand.u32 %v2124, 2147483648
  %v2138 = vor.u32 1.1754944e-38, %v2137
  %v2139 = vsel %vm2136, %v2138, %v2134
  %v2140 = vmul.f32 1.0, %v2139
  %v2141 = vrcp.pop %v2125
  %v2142 = vmul.f32 %v2125, %v2141
  %v2143 = vsub.f32 1.0, %v2142
  %v2144 = vmul.f32 %v2141, %v2143
  %v2145 = vadd.f32 %v2141, %v2144
  %vm2146 = vweird.f32 %v2125
  %vm2147 = vweird.f32 %v2141
  %vm2148 = vmor %vm2146, %vm2147
  %v2149 = vsel %vm2148, %v2141, %v2145
  %v2150 = vand.u32 2147483647, %v2125
  %vm2151 = vcmp.eq.f32.partialorder %v2150, 8.507059e+37
  %v2152 = vand.u32 %v2125, 2147483648
  %v2153 = vor.u32 1.1754944e-38, %v2152
  %v2154 = vsel %vm2151, %v2153, %v2149
  %v2155 = vmul.f32 1.0, %v2154
  %v2156 = vmul.f32 %v2140, 1.0614054
  %v2157 = vmul.f32 %v2155, 1.0614054
  %v2158 = vadd.f32 %v2156, -1.4531521
  %v2159 = vadd.f32 %v2157, -1.4531521
  %v2160 = vmul.f32 %v2158, %v2140
  %v2161 = vmul.f32 %v2159, %v2155
  %v2162 = vadd.f32 %v2160, 1.4214138
  %v2163 = vadd.f32 %v2161, 1.4214138
  %v2164 = vmul.f32 %v2162, %v2140
  %v2165 = vmul.f32 %v2163, %v2155
  %v2166 = vadd.f32 %v2164, -0.28449672
  %v2167 = vadd.f32 %v2165, -0.28449672
  %v2168 = vmul.f32 %v2166, %v2140
  %v2169 = vmul.f32 %v2167, %v2155
  %v2170 = vadd.f32 %v2168, 0.2548296
  %v2171 = vadd.f32 %v2169, 0.2548296
  %v2172 = vmul.f32 %v2170, %v2140
  %v2173 = vmul.f32 %v2171, %v2155
  %v2174 = vmul.f32 %v2120, %v2120
  %v2175 = vmul.f32 %v2121, %v2121
  %v2176 = vsub.f32 0.0, %v2174
  %v2177 = vsub.f32 0.0, %v2175
  %v2178 = vmul.f32 %v2176, 1.442695
  %v2179 = vpow.pop %v2178
  %v2180 = vmul.f32 %v2177, 1.442695
  %v2181 = vpow.pop %v2180
  %v2182 = vmul.f32 %v2172, %v2179
  %v2183 = vmul.f32 %v2173, %v2181
  %v2184 = vsub.f32 1.0, %v2182
  %v2185 = vsub.f32 1.0, %v2183
  %vm2186 = vcmp.ge.f32.partialorder %v2118, 0.0
  %vm2187 = vcmp.ge.f32.partialorder %v2119, 0.0
  %v2188 = vsub.f32 0.0, %v2184
  %v2189 = vsub.f32 0.0, %v2185
  %v2190 = vsel %vm2186, %v2184, %v2188
  %v2191 = vsel %vm2187, %v2185, %v2189
  %v2192 = vadd.f32 %v2190, 1.0
  %v2193 = vadd.f32 %v2191, 1.0
  %v2194 = vmul.f32 %v2116, %v2192
  %v2195 = vmul.f32 %v2117, %v2193
  %v2196 = vld [vmem:[%s69] sm:$0xff]
  %v2197 = vld [vmem:[%s69 + $0x8] sm:$0xff]
  %v2198 = vld [vmem:[%s69 + $0x10] sm:$0xff]
  %v2199 = vld [vmem:[%s69 + $0x18] sm:$0xff]
  %v2200 = vld [vmem:[%s69 + $0x20] sm:$0xff]
  %v2201 = vld [vmem:[%s69 + $0x28] sm:$0xff]
  %v2202 = vld [vmem:[%s69 + $0x30] sm:$0xff]
  %v2203 = vld [vmem:[%s69 + $0x38] sm:$0xff]
  %v2204 = vld [vmem:[%s69 + $0x40] sm:$0xff]
  %v2205 = vld [vmem:[%s69 + $0x48] sm:$0xff]
  %v2206 = vld [vmem:[%s69 + $0x50] sm:$0xff]
  %v2207 = vld [vmem:[%s69 + $0x58] sm:$0xff]
  %v2208 = vld [vmem:[%s69 + $0x60] sm:$0xff]
  %v2209 = vld [vmem:[%s69 + $0x68] sm:$0xff]
  %v2210 = vld [vmem:[%s69 + $0x70] sm:$0xff]
  %v2211 = vld [vmem:[%s69 + $0x78] sm:$0xff]
  %v2212 = vld [vmem:[%s71] sm:$0x1]
  %v2214 = vperm.slane %v2212, 0
  %2216 = vmatpush.msra.mxu0 %v2211
  %2217 = vmatpush.msra.mxu0 %v2210
  %2218 = vmatpush.msra.mxu0 %v2209
  %2219 = vmatpush.msra.mxu0 %v2208
  %2220 = vmatpush.msra.mxu0 %v2207
  %2221 = vmatpush.msra.mxu0 %v2206
  %2222 = vmatpush.msra.mxu0 %v2205
  %2223 = vmatpush.msra.mxu0 %v2204
  %2224 = vmatpush.msra.mxu0 %v2203
  %2225 = vmatpush.msra.mxu0 %v2202
  %2226 = vmatpush.msra.mxu0 %v2201
  %2227 = vmatpush.msra.mxu0 %v2200
  %2228 = vmatpush.msra.mxu0 %v2199
  %2229 = vmatpush.msra.mxu0 %v2198
  %2230 = vmatpush.msra.mxu0 %v2197
  %2231 = vmatpush.msra.mxu0 %v2196
  %2232 = vmatmul.f32.gmra.mxu0 %v2194
  %v2233 = vpop.f32.mrf.mxu0
  %v2234 = vadd.f32 %v2214, %v2233
  %2235 = vmatmul.f32.gmra.mxu0 %v2195
  %v2236 = vpop.f32.mrf.mxu0
  %2237 = vdwg.mxu0
  %v2238 = vadd.f32 %v2017, %v2234
  %v2239 = vld [vmem:[%s73] sm:$0x1]
  %v2240 = vld [vmem:[%s75] sm:$0x1]
  %v2241 = vsel %vm418, %v2238, 0.0
  %2242 = vadd.xlane.f32.xlu0 %v2241
  %v2243 = vpop.xlane.xlu0 %2242
  %v2244 = vmul.f32 %v2243, %v432
  %v2245 = vsub.f32 %v2238, %v2244
  %v2246 = vmul.f32 %v2245, %v2245
  %v2247 = vsel %vm418, %v2246, 0.0
  %2248 = vadd.xlane.f32.xlu0 %v2247
  %v2249 = vpop.xlane.xlu0 %2248
  %v2250 = vmul.f32 %v2249, %v432
  %v2251 = vadd.f32 %v2250, 1e-06
  %v2252 = vrsqrt.pop %v2251
  %v2253 = vmul.f32 %v2252, %v2251
  %v2254 = vmul.f32 %v2253, %v2252
  %v2255 = vmul.f32 0.5, %v2254
  %v2256 = vsub.f32 1.5, %v2255
  %v2257 = vmul.f32 %v2252, %v2256
  %vm2258 = vweird.f32 %v2251
  %vm2259 = vweird.f32 %v2252
  %vm2260 = vmor %vm2258, %vm2259
  %v2261 = vsel %vm2260, %v2252, %v2257
  %v2262 = vmul.f32 %v2245, %v2261
  %v2264 = vperm.slane %v2239, 0
  %v2266 = vmul.f32 %v2262, %v2264
  %v2268 = vperm.slane %v2240, 0
  %v2270 = vadd.f32 %v2266, %v2268
  %v2271 = vld [vmem:[%s77] sm:$0xff]
  %v2272 = vld [vmem:[%s77 + $0x8] sm:$0xff]
  %v2273 = vld [vmem:[%s77 + $0x10] sm:$0xff]
  %v2274 = vld [vmem:[%s77 + $0x18] sm:$0xff]
  %v2275 = vld [vmem:[%s77 + $0x20] sm:$0xff]
  %v2276 = vld [vmem:[%s77 + $0x28] sm:$0xff]
  %v2277 = vld [vmem:[%s77 + $0x30] sm:$0xff]
  %v2278 = vld [vmem:[%s77 + $0x38] sm:$0xff]
  %v2279 = vld [vmem:[%s79] sm:$0x1]
  %v2281 = vperm.slane %v2279, 0
  %v2284 = vsel %vm418, %v2270, 0
  %2286 = vmatpush.msra.mxu0 0.0
  %2287 = vmatpush.msra.mxu0 0.0
  %2288 = vmatpush.msra.mxu0 0.0
  %2289 = vmatpush.msra.mxu0 0.0
  %2290 = vmatpush.msra.mxu0 0.0
  %2291 = vmatpush.msra.mxu0 0.0
  %2292 = vmatpush.msra.mxu0 0.0
  %2293 = vmatpush.msra.mxu0 0.0
  %2294 = vmatpush.msra.mxu0 %v2278
  %2295 = vmatpush.msra.mxu0 %v2277
  %2296 = vmatpush.msra.mxu0 %v2276
  %2297 = vmatpush.msra.mxu0 %v2275
  %2298 = vmatpush.msra.mxu0 %v2274
  %2299 = vmatpush.msra.mxu0 %v2273
  %2300 = vmatpush.msra.mxu0 %v2272
  %2301 = vmatpush.msra.mxu0 %v2271
  %2302 = vmatmul.f32.gmra.mxu0 %v2284
  %v2303 = vpop.f32.mrf.mxu0
  %v2304 = vadd.f32 %v2281, %v2303
  %2305 = vdwg.mxu0
  %2306 = vst [vmem:[%s81] sm:$0xff] %v2304
  // Predicated region
  $region162: #{vit_forward.1} parent=0 // pred_check
    _
  $region163: #{vit_forward.1} parent=0 // pred_check_branch
    %2308 = sbr.rel (0) target = $region165
  $region164: #{vit_forward.1} parent=0 // pred_region
    _
  $region165: #{vit_forward.1} parent=0 // pred_fallthru
    _
  // Predicated region
  $region166: #{vit_forward.1} parent=0 // pred_check
    _
  $region167: #{vit_forward.1} parent=0 // pred_check_branch
    %2310 = sbr.rel (0) target = $region169
  $region168: #{vit_forward.1} parent=0 // pred_region
    _
  $region169: #{vit_forward.1} parent=0 // pred_fallthru
    _

</llo_original>
